<compile_context>
chip_gen: v7x
topology: tpu7x:2x2x1
jax: 0.10.0
libtpu: 0.0.40
codegen_flags: <defaults>
</compile_context>

<pallas_src>
import functools

import jax
import jax.numpy as jnp
from jax import lax
from jax.experimental import pallas as pl
from jax.experimental.pallas import tpu as pltpu

EMBED_DIM = 64
NUM_HEADS = 4
HEAD_DIM = EMBED_DIM // NUM_HEADS
SEQ_LEN = 40                     # heavy_budget = 40 -> top-k per quarter range = int(40/40) = 1
BATCH = 2
SCALING = HEAD_DIM ** -0.5       # 0.25, exactly representable -> folding into wq/bq is bit-exact
BH = BATCH * NUM_HEADS
BT = BATCH * SEQ_LEN


def _act_fakequant(x):
    # SmoothQuant quantize_activation_per_token_absmax (n_bits=8): clamp scale, no value clamp.
    amax = jnp.max(jnp.abs(x), axis=-1, keepdims=True)
    scales = jnp.maximum(amax, 1e-5) / 127.0
    return jnp.round(x / scales) * scales


# --------------- kernel 1: fused W8A8 QKV projection + accumulated attention score ---------------

def _qkv_score_kernel(x_ref, w_ref, b_ref, q_ref, k_ref, v_ref, acc_ref):
    # x_ref: (BT, E);  w_ref: (E, 3E) = [wq*scaling | wk | wv];  b_ref: (1, 3E).
    xq = _act_fakequant(x_ref[...])              # per-token act fake-quant computed ONCE for q/k/v
    proj = jnp.dot(xq, w_ref[...], preferred_element_type=jnp.float32) + b_ref[...]

    q = proj[:, 0 * EMBED_DIM:1 * EMBED_DIM]     # already includes the head_dim**-0.5 scaling
    k = proj[:, 1 * EMBED_DIM:2 * EMBED_DIM]
    v = proj[:, 2 * EMBED_DIM:3 * EMBED_DIM]
    q_ref[...] = q
    k_ref[...] = k
    v_ref[...] = v

    # first attention pass: sum over (batch, head, query row) of softmax(q k^T), all in this step
    acc = jnp.zeros((1, SEQ_LEN), jnp.float32)
    for b in range(BATCH):
        rows = slice(b * SEQ_LEN, (b + 1) * SEQ_LEN)
        for h in range(NUM_HEADS):
            cols = slice(h * HEAD_DIM, (h + 1) * HEAD_DIM)
            qbh = q[rows, cols]
            kbh = k[rows, cols]
            s = jnp.dot(qbh, kbh.T, preferred_element_type=jnp.float32)
            s = s - jnp.max(s, axis=-1, keepdims=True)
            p = jnp.exp(s)
            # selection-only quantity -> approximate EUP reciprocal is harmless here
            p = p * pl.reciprocal(jnp.sum(p, axis=-1, keepdims=True), approx=True)
            acc = acc + jnp.sum(p, axis=0, keepdims=True)

    # normalize:  / row_vector ([S, S-1, ..., 1])  and  / (bsz * num_heads)
    row_vec = (SEQ_LEN - lax.broadcasted_iota(jnp.int32, (1, SEQ_LEN), 1)).astype(jnp.float32)
    acc_ref[...] = acc / row_vec / float(BH)


def qkv_proj_and_score(x2, w_qkv, b_qkv):
    # No grid: whole arrays live in VMEM, one kernel invocation.
    return pl.pallas_call(
        _qkv_score_kernel,
        out_shape=(
            jax.ShapeDtypeStruct((BT, EMBED_DIM), jnp.float32),   # q (scaled)
            jax.ShapeDtypeStruct((BT, EMBED_DIM), jnp.float32),   # k
            jax.ShapeDtypeStruct((BT, EMBED_DIM), jnp.float32),   # v
            jax.ShapeDtypeStruct((1, SEQ_LEN), jnp.float32),      # normalized accumulated score
        ),
    )(x2, w_qkv, b_qkv)


# ------- kernel 2: fused mixed-precision K/V quant + select + attention + W8A8 out_proj ----------

def _attn_mixedquant_outproj_kernel(idx_ref, q_ref, k_ref, v_ref, wo_ref, bo_ref,
                                    out_ref, kq_ref, vq_ref, attn_scratch):
    q = q_ref[...]        # (BT, E)
    k = k_ref[...]
    v = v_ref[...]

    # fake_quant_mix (8-bit): per-sequence-row scale taken from batch 0 only ("[0]" indexing),
    # scale = max|k0| / 127 then clamp(1e-5).
    k0 = k[0:SEQ_LEN, :]
    smix = jnp.maximum(jnp.max(jnp.abs(k0), axis=-1, keepdims=True) / 127.0, 1e-5)   # (S, 1)
    smix_full = jnp.concatenate([smix] * BATCH, axis=0)                               # (BT, 1)
    k_mix = jnp.round(k / smix_full) * smix_full

    # fake_quant (4-bit): per-row scale = clamp(max|k|, 1e-5) / 7
    s4 = jnp.maximum(jnp.max(jnp.abs(k), axis=-1, keepdims=True), 1e-5) / 7.0
    k_q4 = jnp.round(k / s4) * s4

    # important-token mixed select (replaces the XLA gather/scatter): sequence positions listed in
    # idx_ref (SMEM, scalar prefetch) keep the 8-bit rows, the rest the 4-bit rows (all batches).
    pos = lax.broadcasted_iota(jnp.int32, (SEQ_LEN, 1), 0)
    pos = jnp.concatenate([pos] * BATCH, axis=0)                                      # (BT, 1)
    important = pos == idx_ref[0]
    for t in range(1, idx_ref.shape[0]):
        important = jnp.logical_or(important, pos == idx_ref[t])
    key_q = jnp.where(important, k_mix, k_q4)

    # fake_quant_v (8-bit): per-batch, per-feature scale over the sequence axis
    v_parts = []
    for b in range(BATCH):
        vb = v[b * SEQ_LEN:(b + 1) * SEQ_LEN, :]
        sv = jnp.maximum(jnp.max(jnp.abs(vb), axis=0, keepdims=True), 1e-5) / 127.0   # (1, E)
        v_parts.append(jnp.round(vb / sv) * sv)
    value_q = jnp.concatenate(v_parts, axis=0)

    kq_ref[...] = key_q
    vq_ref[...] = value_q

    # second (real) attention with mixed-precision K/V -- all batch*head pairs in this one step
    for b in range(BATCH):
        rows = slice(b * SEQ_LEN, (b + 1) * SEQ_LEN)
        for h in range(NUM_HEADS):
            cols = slice(h * HEAD_DIM, (h + 1) * HEAD_DIM)
            qbh = q[rows, cols]
            kbh = key_q[rows, cols]
            vbh = value_q[rows, cols]
            s = jnp.dot(qbh, kbh.T, preferred_element_type=jnp.float32)
            s = s - jnp.max(s, axis=-1, keepdims=True)
            p = jnp.exp(s)
            p = p / jnp.sum(p, axis=-1, keepdims=True)
            attn_scratch[rows, cols] = jnp.dot(p, vbh, preferred_element_type=jnp.float32)

    # fused out_proj (W8A8: per-token activation fake-quant + matmul + bias)
    aq = _act_fakequant(attn_scratch[...])
    out_ref[...] = jnp.dot(aq, wo_ref[...], preferred_element_type=jnp.float32) + bo_ref[...]


def attn_mixedquant_outproj(topk_idx, q2, k2, v2, wo, bo):
    grid_spec = pltpu.PrefetchScalarGridSpec(
        num_scalar_prefetch=1,                    # topk_idx -> SMEM
        grid=(1,),
        in_specs=[
            pl.BlockSpec((BT, EMBED_DIM), lambda i, idx: (0, 0)),
            pl.BlockSpec((BT, EMBED_DIM), lambda i, idx: (0, 0)),
            pl.BlockSpec((BT, EMBED_DIM), lambda i, idx: (0, 0)),
            pl.BlockSpec((EMBED_DIM, EMBED_DIM), lambda i, idx: (0, 0)),
            pl.BlockSpec((1, EMBED_DIM), lambda i, idx: (0, 0)),
        ],
        out_specs=(
            pl.BlockSpec((BT, EMBED_DIM), lambda i, idx: (0, 0)),
            pl.BlockSpec((BT, EMBED_DIM), lambda i, idx: (0, 0)),
            pl.BlockSpec((BT, EMBED_DIM), lambda i, idx: (0, 0)),
        ),
        scratch_shapes=[pltpu.VMEM((BT, EMBED_DIM), jnp.float32)],
    )
    return pl.pallas_call(
        _attn_mixedquant_outproj_kernel,
        out_shape=(
            jax.ShapeDtypeStruct((BT, EMBED_DIM), jnp.float32),   # attn_output (flat)
            jax.ShapeDtypeStruct((BT, EMBED_DIM), jnp.float32),   # quantized key_states (flat)
            jax.ShapeDtypeStruct((BT, EMBED_DIM), jnp.float32),   # quantized value_states (flat)
        ),
        grid_spec=grid_spec,
    )(topk_idx, q2, k2, v2, wo, bo)


# ------------------------------------------- wrapper ---------------------------------------------

def cal_scale_opt_attention(hidden_states, params):
    B, T, E = hidden_states.shape
    H, Dh = NUM_HEADS, HEAD_DIM
    x2 = hidden_states.reshape(B * T, E)

    # fused q/k/v projection + first attention pass (Pallas, one grid step)
    q2, k2, v2, acc = qkv_proj_and_score(x2, params["w_qkv"], params["b_qkv"])

    # group-wise top-k over 4 equal ranges of the sequence (4 scalars; stays at the XLA level)
    heavy_budget = T
    ratios = [0.25, 0.25, 0.25, 0.25]
    k_top = int(heavy_budget / 40)
    ranges = []
    start = 1
    for i, ratio in enumerate(ratios):
        range_size = int(heavy_budget * ratio)
        end = min(start + range_size - 1, heavy_budget) if i < len(ratios) - 1 else heavy_budget
        ranges.append((start, end))
        start = end + 1
    topk_list = []
    for (s0, e0) in ranges:
        part = acc[:, s0 - 1:e0]
        _, idxs = jax.lax.top_k(part, k_top)
        topk_list.append(idxs + (s0 - 1))
    tmp_topk_index = jnp.concatenate(topk_list, axis=-1).reshape(-1).astype(jnp.int32)

    # fused mixed-precision K/V quant + select + attention + out_proj (Pallas, one grid step)
    attn2, key_q2, value_q2 = attn_mixedquant_outproj(
        tmp_topk_index, q2, k2, v2, params["wo"], params["bo"])

    attn_output = attn2.reshape(B, T, E)
    key_states = key_q2.reshape(B, T, H, Dh).transpose(0, 2, 1, 3)    # (B, H, S, Dh)
    value_states = value_q2.reshape(B, T, H, Dh).transpose(0, 2, 1, 3)
    past_key_value = (key_states, value_states)
    # output_attentions=False -> attn_weights_reshaped is None
    return attn_output, None, past_key_value


def fq_weight_per_channel(w):
    # SmoothQuant quantize_weight_per_channel_absmax, n_bits=8.  w: (out, in)
    amax = jnp.max(jnp.abs(w), axis=-1, keepdims=True)
    scales = jnp.maximum(amax, 1e-5) / 127.0
    return jnp.round(w / scales) * scales


if __name__ == "__main__":
    key = jax.random.PRNGKey(0)
    keys = jax.random.split(key, 9)

    def mk_w(kk):
        w = jax.random.normal(kk, (EMBED_DIM, EMBED_DIM), jnp.float32) * 0.05
        return fq_weight_per_channel(w)          # (out, in), fake-quantized

    def mk_b(kk):
        return jax.random.normal(kk, (1, EMBED_DIM), jnp.float32) * 0.01

    wq = mk_w(keys[0]) * SCALING                 # fold head_dim**-0.5 (exactly 0.25) into q_proj
    bq = mk_b(keys[1]) * SCALING
    wk, bk = mk_w(keys[2]), mk_b(keys[3])
    wv, bv = mk_w(keys[4]), mk_b(keys[5])
    wo, bo = mk_w(keys[6]), mk_b(keys[7])

    params = {
        "w_qkv": jnp.concatenate([wq.T, wk.T, wv.T], axis=1),   # (in, 3*out) = (64, 192)
        "b_qkv": jnp.concatenate([bq, bk, bv], axis=1),         # (1, 192)
        "wo": wo.T,                                             # stored pre-transposed (in, out)
        "bo": bo,
    }
    x = jax.random.normal(keys[8], (BATCH, SEQ_LEN, EMBED_DIM), jnp.float32)

    fwd = jax.jit(functools.partial(cal_scale_opt_attention, params=params))
    attn_output, attn_weights, past_kv = fwd(x)
    jax.block_until_ready(attn_output)
    jax.block_until_ready(past_kv)
    assert attn_output.shape == (BATCH, SEQ_LEN, EMBED_DIM)
    assert attn_weights is None
    assert past_kv[0].shape == (BATCH, NUM_HEADS, SEQ_LEN, HEAD_DIM)
    assert past_kv[1].shape == (BATCH, NUM_HEADS, SEQ_LEN, HEAD_DIM)
    print("KERNEL_OK")
</pallas_src>

<mosaic_0001>
module attributes {stable_mosaic.version = 11 : i64} {
  func.func @_qkv_score_kernel(%arg0: memref<80x64xf32, #tpu.memory_space<vmem>>, %arg1: memref<64x192xf32, #tpu.memory_space<vmem>>, %arg2: memref<1x192xf32, #tpu.memory_space<vmem>>, %arg3: memref<80x64xf32, #tpu.memory_space<vmem>>, %arg4: memref<80x64xf32, #tpu.memory_space<vmem>>, %arg5: memref<80x64xf32, #tpu.memory_space<vmem>>, %arg6: memref<1x40xf32, #tpu.memory_space<vmem>>) attributes {dimension_semantics = [], scalar_prefetch = 0 : i64, scratch_operands = 0 : i64, tpu.core_type = #tpu.core_type<tc>} {
    %c0 = arith.constant 0 : index
    %c0_0 = arith.constant 0 : index
    %0 = vector.load %arg0[%c0, %c0_0] : memref<80x64xf32, #tpu.memory_space<vmem>>, vector<80x64xf32>
    %1 = math.absf %0 : vector<80x64xf32>
    %cst = arith.constant dense<0xFF800000> : vector<80xf32>
    %2 = vector.multi_reduction <maximumf>, %1, %cst [1] : vector<80x64xf32> to vector<80xf32>
    %3 = vector.shape_cast %2 : vector<80xf32> to vector<80x1xf32>
    %cst_1 = arith.constant 9.99999974E-6 : f32
    %4 = vector.broadcast %cst_1 : f32 to vector<80x1xf32>
    %5 = arith.maximumf %3, %4 : vector<80x1xf32>
    %cst_2 = arith.constant 1.270000e+02 : f32
    %6 = vector.broadcast %cst_2 : f32 to vector<80x1xf32>
    %7 = arith.divf %5, %6 : vector<80x1xf32>
    %8 = vector.broadcast %7 : vector<80x1xf32> to vector<80x64xf32>
    %9 = arith.divf %0, %8 : vector<80x64xf32>
    %10 = math.roundeven %9 : vector<80x64xf32>
    %11 = vector.broadcast %7 : vector<80x1xf32> to vector<80x64xf32>
    %12 = arith.mulf %10, %11 : vector<80x64xf32>
    %c0_3 = arith.constant 0 : index
    %c0_4 = arith.constant 0 : index
    %13 = vector.load %arg1[%c0_3, %c0_4] : memref<64x192xf32, #tpu.memory_space<vmem>>, vector<64x192xf32>
    %cst_5 = arith.constant dense<0.000000e+00> : vector<80x192xf32>
    %14 = tpu.matmul %12, %13, %cst_5 {dimension_numbers = #tpu.dot_dimension_numbers<[1], [0], [0], [1], [0, 0, 1, 1], [], []>} : vector<80x64xf32>, vector<64x192xf32>, vector<80x192xf32> -> vector<80x192xf32>
    %c0_6 = arith.constant 0 : index
    %c0_7 = arith.constant 0 : index
    %15 = vector.load %arg2[%c0_6, %c0_7] : memref<1x192xf32, #tpu.memory_space<vmem>>, vector<1x192xf32>
    %16 = vector.broadcast %15 : vector<1x192xf32> to vector<80x192xf32>
    %17 = arith.addf %14, %16 : vector<80x192xf32>
    %18 = vector.extract_strided_slice %17 {offsets = [0, 0], sizes = [80, 64], strides = [1, 1]} : vector<80x192xf32> to vector<80x64xf32>
    %19 = vector.extract_strided_slice %17 {offsets = [0, 64], sizes = [80, 64], strides = [1, 1]} : vector<80x192xf32> to vector<80x64xf32>
    %20 = vector.extract_strided_slice %17 {offsets = [0, 128], sizes = [80, 64], strides = [1, 1]} : vector<80x192xf32> to vector<80x64xf32>
    %c0_8 = arith.constant 0 : index
    %c0_9 = arith.constant 0 : index
    %21 = vector.load %arg3[%c0_8, %c0_9] : memref<80x64xf32, #tpu.memory_space<vmem>>, vector<80x64xf32>
    tpu.vector_store %arg3[%c0_8, %c0_9], %18 {strides = array<i32>} : memref<80x64xf32, #tpu.memory_space<vmem>>, vector<80x64xf32>,
    %c0_10 = arith.constant 0 : index
    %c0_11 = arith.constant 0 : index
    %22 = vector.load %arg4[%c0_10, %c0_11] : memref<80x64xf32, #tpu.memory_space<vmem>>, vector<80x64xf32>
    tpu.vector_store %arg4[%c0_10, %c0_11], %19 {strides = array<i32>} : memref<80x64xf32, #tpu.memory_space<vmem>>, vector<80x64xf32>,
    %c0_12 = arith.constant 0 : index
    %c0_13 = arith.constant 0 : index
    %23 = vector.load %arg5[%c0_12, %c0_13] : memref<80x64xf32, #tpu.memory_space<vmem>>, vector<80x64xf32>
    tpu.vector_store %arg5[%c0_12, %c0_13], %20 {strides = array<i32>} : memref<80x64xf32, #tpu.memory_space<vmem>>, vector<80x64xf32>,
    %cst_14 = arith.constant 0.000000e+00 : f32
    %24 = vector.broadcast %cst_14 : f32 to vector<1x40xf32>
    %25 = vector.extract_strided_slice %18 {offsets = [0, 0], sizes = [40, 16], strides = [1, 1]} : vector<80x64xf32> to vector<40x16xf32>
    %26 = vector.extract_strided_slice %19 {offsets = [0, 0], sizes = [40, 16], strides = [1, 1]} : vector<80x64xf32> to vector<40x16xf32>
    %27 = tpu.transpose %26, [1, 0] : vector<40x16xf32> -> vector<16x40xf32>
    %cst_15 = arith.constant dense<0.000000e+00> : vector<40x40xf32>
    %28 = tpu.matmul %25, %27, %cst_15 {dimension_numbers = #tpu.dot_dimension_numbers<[1], [0], [0], [1], [0, 0, 1, 1], [], []>} : vector<40x16xf32>, vector<16x40xf32>, vector<40x40xf32> -> vector<40x40xf32>
    %cst_16 = arith.constant dense<0xFF800000> : vector<40xf32>
    %29 = vector.multi_reduction <maximumf>, %28, %cst_16 [1] : vector<40x40xf32> to vector<40xf32>
    %30 = vector.shape_cast %29 : vector<40xf32> to vector<40x1xf32>
    %31 = vector.broadcast %30 : vector<40x1xf32> to vector<40x40xf32>
    %32 = arith.subf %28, %31 : vector<40x40xf32>
    %33 = math.exp %32 : vector<40x40xf32>
    %cst_17 = arith.constant dense<0.000000e+00> : vector<40xf32>
    %34 = vector.multi_reduction <add>, %33, %cst_17 [1] : vector<40x40xf32> to vector<40xf32>
    %35 = vector.shape_cast %34 : vector<40xf32> to vector<40x1xf32>
    %36 = tpu.reciprocal %35 {approx = true} : vector<40x1xf32> -> vector<40x1xf32>
    %37 = vector.broadcast %36 : vector<40x1xf32> to vector<40x40xf32>
    %38 = arith.mulf %33, %37 : vector<40x40xf32>
    %cst_18 = arith.constant dense<0.000000e+00> : vector<40xf32>
    %39 = vector.multi_reduction <add>, %38, %cst_18 [0] : vector<40x40xf32> to vector<40xf32>
    %40 = vector.shape_cast %39 : vector<40xf32> to vector<1x40xf32>
    %41 = arith.addf %24, %40 : vector<1x40xf32>
    %42 = vector.extract_strided_slice %18 {offsets = [0, 16], sizes = [40, 16], strides = [1, 1]} : vector<80x64xf32> to vector<40x16xf32>
    %43 = vector.extract_strided_slice %19 {offsets = [0, 16], sizes = [40, 16], strides = [1, 1]} : vector<80x64xf32> to vector<40x16xf32>
    %44 = tpu.transpose %43, [1, 0] : vector<40x16xf32> -> vector<16x40xf32>
    %cst_19 = arith.constant dense<0.000000e+00> : vector<40x40xf32>
    %45 = tpu.matmul %42, %44, %cst_19 {dimension_numbers = #tpu.dot_dimension_numbers<[1], [0], [0], [1], [0, 0, 1, 1], [], []>} : vector<40x16xf32>, vector<16x40xf32>, vector<40x40xf32> -> vector<40x40xf32>
    %cst_20 = arith.constant dense<0xFF800000> : vector<40xf32>
    %46 = vector.multi_reduction <maximumf>, %45, %cst_20 [1] : vector<40x40xf32> to vector<40xf32>
    %47 = vector.shape_cast %46 : vector<40xf32> to vector<40x1xf32>
    %48 = vector.broadcast %47 : vector<40x1xf32> to vector<40x40xf32>
    %49 = arith.subf %45, %48 : vector<40x40xf32>
    %50 = math.exp %49 : vector<40x40xf32>
    %cst_21 = arith.constant dense<0.000000e+00> : vector<40xf32>
    %51 = vector.multi_reduction <add>, %50, %cst_21 [1] : vector<40x40xf32> to vector<40xf32>
    %52 = vector.shape_cast %51 : vector<40xf32> to vector<40x1xf32>
    %53 = tpu.reciprocal %52 {approx = true} : vector<40x1xf32> -> vector<40x1xf32>
    %54 = vector.broadcast %53 : vector<40x1xf32> to vector<40x40xf32>
    %55 = arith.mulf %50, %54 : vector<40x40xf32>
    %cst_22 = arith.constant dense<0.000000e+00> : vector<40xf32>
    %56 = vector.multi_reduction <add>, %55, %cst_22 [0] : vector<40x40xf32> to vector<40xf32>
    %57 = vector.shape_cast %56 : vector<40xf32> to vector<1x40xf32>
    %58 = arith.addf %41, %57 : vector<1x40xf32>
    %59 = vector.extract_strided_slice %18 {offsets = [0, 32], sizes = [40, 16], strides = [1, 1]} : vector<80x64xf32> to vector<40x16xf32>
    %60 = vector.extract_strided_slice %19 {offsets = [0, 32], sizes = [40, 16], strides = [1, 1]} : vector<80x64xf32> to vector<40x16xf32>
    %61 = tpu.transpose %60, [1, 0] : vector<40x16xf32> -> vector<16x40xf32>
    %cst_23 = arith.constant dense<0.000000e+00> : vector<40x40xf32>
    %62 = tpu.matmul %59, %61, %cst_23 {dimension_numbers = #tpu.dot_dimension_numbers<[1], [0], [0], [1], [0, 0, 1, 1], [], []>} : vector<40x16xf32>, vector<16x40xf32>, vector<40x40xf32> -> vector<40x40xf32>
    %cst_24 = arith.constant dense<0xFF800000> : vector<40xf32>
    %63 = vector.multi_reduction <maximumf>, %62, %cst_24 [1] : vector<40x40xf32> to vector<40xf32>
    %64 = vector.shape_cast %63 : vector<40xf32> to vector<40x1xf32>
    %65 = vector.broadcast %64 : vector<40x1xf32> to vector<40x40xf32>
    %66 = arith.subf %62, %65 : vector<40x40xf32>
    %67 = math.exp %66 : vector<40x40xf32>
    %cst_25 = arith.constant dense<0.000000e+00> : vector<40xf32>
    %68 = vector.multi_reduction <add>, %67, %cst_25 [1] : vector<40x40xf32> to vector<40xf32>
    %69 = vector.shape_cast %68 : vector<40xf32> to vector<40x1xf32>
    %70 = tpu.reciprocal %69 {approx = true} : vector<40x1xf32> -> vector<40x1xf32>
    %71 = vector.broadcast %70 : vector<40x1xf32> to vector<40x40xf32>
    %72 = arith.mulf %67, %71 : vector<40x40xf32>
    %cst_26 = arith.constant dense<0.000000e+00> : vector<40xf32>
    %73 = vector.multi_reduction <add>, %72, %cst_26 [0] : vector<40x40xf32> to vector<40xf32>
    %74 = vector.shape_cast %73 : vector<40xf32> to vector<1x40xf32>
    %75 = arith.addf %58, %74 : vector<1x40xf32>
    %76 = vector.extract_strided_slice %18 {offsets = [0, 48], sizes = [40, 16], strides = [1, 1]} : vector<80x64xf32> to vector<40x16xf32>
    %77 = vector.extract_strided_slice %19 {offsets = [0, 48], sizes = [40, 16], strides = [1, 1]} : vector<80x64xf32> to vector<40x16xf32>
    %78 = tpu.transpose %77, [1, 0] : vector<40x16xf32> -> vector<16x40xf32>
    %cst_27 = arith.constant dense<0.000000e+00> : vector<40x40xf32>
    %79 = tpu.matmul %76, %78, %cst_27 {dimension_numbers = #tpu.dot_dimension_numbers<[1], [0], [0], [1], [0, 0, 1, 1], [], []>} : vector<40x16xf32>, vector<16x40xf32>, vector<40x40xf32> -> vector<40x40xf32>
    %cst_28 = arith.constant dense<0xFF800000> : vector<40xf32>
    %80 = vector.multi_reduction <maximumf>, %79, %cst_28 [1] : vector<40x40xf32> to vector<40xf32>
    %81 = vector.shape_cast %80 : vector<40xf32> to vector<40x1xf32>
    %82 = vector.broadcast %81 : vector<40x1xf32> to vector<40x40xf32>
    %83 = arith.subf %79, %82 : vector<40x40xf32>
    %84 = math.exp %83 : vector<40x40xf32>
    %cst_29 = arith.constant dense<0.000000e+00> : vector<40xf32>
    %85 = vector.multi_reduction <add>, %84, %cst_29 [1] : vector<40x40xf32> to vector<40xf32>
    %86 = vector.shape_cast %85 : vector<40xf32> to vector<40x1xf32>
    %87 = tpu.reciprocal %86 {approx = true} : vector<40x1xf32> -> vector<40x1xf32>
    %88 = vector.broadcast %87 : vector<40x1xf32> to vector<40x40xf32>
    %89 = arith.mulf %84, %88 : vector<40x40xf32>
    %cst_30 = arith.constant dense<0.000000e+00> : vector<40xf32>
    %90 = vector.multi_reduction <add>, %89, %cst_30 [0] : vector<40x40xf32> to vector<40xf32>
    %91 = vector.shape_cast %90 : vector<40xf32> to vector<1x40xf32>
    %92 = arith.addf %75, %91 : vector<1x40xf32>
    %93 = vector.extract_strided_slice %18 {offsets = [40, 0], sizes = [40, 16], strides = [1, 1]} : vector<80x64xf32> to vector<40x16xf32>
    %94 = vector.extract_strided_slice %19 {offsets = [40, 0], sizes = [40, 16], strides = [1, 1]} : vector<80x64xf32> to vector<40x16xf32>
    %95 = tpu.transpose %94, [1, 0] : vector<40x16xf32> -> vector<16x40xf32>
    %cst_31 = arith.constant dense<0.000000e+00> : vector<40x40xf32>
    %96 = tpu.matmul %93, %95, %cst_31 {dimension_numbers = #tpu.dot_dimension_numbers<[1], [0], [0], [1], [0, 0, 1, 1], [], []>} : vector<40x16xf32>, vector<16x40xf32>, vector<40x40xf32> -> vector<40x40xf32>
    %cst_32 = arith.constant dense<0xFF800000> : vector<40xf32>
    %97 = vector.multi_reduction <maximumf>, %96, %cst_32 [1] : vector<40x40xf32> to vector<40xf32>
    %98 = vector.shape_cast %97 : vector<40xf32> to vector<40x1xf32>
    %99 = vector.broadcast %98 : vector<40x1xf32> to vector<40x40xf32>
    %100 = arith.subf %96, %99 : vector<40x40xf32>
    %101 = math.exp %100 : vector<40x40xf32>
    %cst_33 = arith.constant dense<0.000000e+00> : vector<40xf32>
    %102 = vector.multi_reduction <add>, %101, %cst_33 [1] : vector<40x40xf32> to vector<40xf32>
    %103 = vector.shape_cast %102 : vector<40xf32> to vector<40x1xf32>
    %104 = tpu.reciprocal %103 {approx = true} : vector<40x1xf32> -> vector<40x1xf32>
    %105 = vector.broadcast %104 : vector<40x1xf32> to vector<40x40xf32>
    %106 = arith.mulf %101, %105 : vector<40x40xf32>
    %cst_34 = arith.constant dense<0.000000e+00> : vector<40xf32>
    %107 = vector.multi_reduction <add>, %106, %cst_34 [0] : vector<40x40xf32> to vector<40xf32>
    %108 = vector.shape_cast %107 : vector<40xf32> to vector<1x40xf32>
    %109 = arith.addf %92, %108 : vector<1x40xf32>
    %110 = vector.extract_strided_slice %18 {offsets = [40, 16], sizes = [40, 16], strides = [1, 1]} : vector<80x64xf32> to vector<40x16xf32>
    %111 = vector.extract_strided_slice %19 {offsets = [40, 16], sizes = [40, 16], strides = [1, 1]} : vector<80x64xf32> to vector<40x16xf32>
    %112 = tpu.transpose %111, [1, 0] : vector<40x16xf32> -> vector<16x40xf32>
    %cst_35 = arith.constant dense<0.000000e+00> : vector<40x40xf32>
    %113 = tpu.matmul %110, %112, %cst_35 {dimension_numbers = #tpu.dot_dimension_numbers<[1], [0], [0], [1], [0, 0, 1, 1], [], []>} : vector<40x16xf32>, vector<16x40xf32>, vector<40x40xf32> -> vector<40x40xf32>
    %cst_36 = arith.constant dense<0xFF800000> : vector<40xf32>
    %114 = vector.multi_reduction <maximumf>, %113, %cst_36 [1] : vector<40x40xf32> to vector<40xf32>
    %115 = vector.shape_cast %114 : vector<40xf32> to vector<40x1xf32>
    %116 = vector.broadcast %115 : vector<40x1xf32> to vector<40x40xf32>
    %117 = arith.subf %113, %116 : vector<40x40xf32>
    %118 = math.exp %117 : vector<40x40xf32>
    %cst_37 = arith.constant dense<0.000000e+00> : vector<40xf32>
    %119 = vector.multi_reduction <add>, %118, %cst_37 [1] : vector<40x40xf32> to vector<40xf32>
    %120 = vector.shape_cast %119 : vector<40xf32> to vector<40x1xf32>
    %121 = tpu.reciprocal %120 {approx = true} : vector<40x1xf32> -> vector<40x1xf32>
    %122 = vector.broadcast %121 : vector<40x1xf32> to vector<40x40xf32>
    %123 = arith.mulf %118, %122 : vector<40x40xf32>
    %cst_38 = arith.constant dense<0.000000e+00> : vector<40xf32>
    %124 = vector.multi_reduction <add>, %123, %cst_38 [0] : vector<40x40xf32> to vector<40xf32>
    %125 = vector.shape_cast %124 : vector<40xf32> to vector<1x40xf32>
    %126 = arith.addf %109, %125 : vector<1x40xf32>
    %127 = vector.extract_strided_slice %18 {offsets = [40, 32], sizes = [40, 16], strides = [1, 1]} : vector<80x64xf32> to vector<40x16xf32>
    %128 = vector.extract_strided_slice %19 {offsets = [40, 32], sizes = [40, 16], strides = [1, 1]} : vector<80x64xf32> to vector<40x16xf32>
    %129 = tpu.transpose %128, [1, 0] : vector<40x16xf32> -> vector<16x40xf32>
    %cst_39 = arith.constant dense<0.000000e+00> : vector<40x40xf32>
    %130 = tpu.matmul %127, %129, %cst_39 {dimension_numbers = #tpu.dot_dimension_numbers<[1], [0], [0], [1], [0, 0, 1, 1], [], []>} : vector<40x16xf32>, vector<16x40xf32>, vector<40x40xf32> -> vector<40x40xf32>
    %cst_40 = arith.constant dense<0xFF800000> : vector<40xf32>
    %131 = vector.multi_reduction <maximumf>, %130, %cst_40 [1] : vector<40x40xf32> to vector<40xf32>
    %132 = vector.shape_cast %131 : vector<40xf32> to vector<40x1xf32>
    %133 = vector.broadcast %132 : vector<40x1xf32> to vector<40x40xf32>
    %134 = arith.subf %130, %133 : vector<40x40xf32>
    %135 = math.exp %134 : vector<40x40xf32>
    %cst_41 = arith.constant dense<0.000000e+00> : vector<40xf32>
    %136 = vector.multi_reduction <add>, %135, %cst_41 [1] : vector<40x40xf32> to vector<40xf32>
    %137 = vector.shape_cast %136 : vector<40xf32> to vector<40x1xf32>
    %138 = tpu.reciprocal %137 {approx = true} : vector<40x1xf32> -> vector<40x1xf32>
    %139 = vector.broadcast %138 : vector<40x1xf32> to vector<40x40xf32>
    %140 = arith.mulf %135, %139 : vector<40x40xf32>
    %cst_42 = arith.constant dense<0.000000e+00> : vector<40xf32>
    %141 = vector.multi_reduction <add>, %140, %cst_42 [0] : vector<40x40xf32> to vector<40xf32>
    %142 = vector.shape_cast %141 : vector<40xf32> to vector<1x40xf32>
    %143 = arith.addf %126, %142 : vector<1x40xf32>
    %144 = vector.extract_strided_slice %18 {offsets = [40, 48], sizes = [40, 16], strides = [1, 1]} : vector<80x64xf32> to vector<40x16xf32>
    %145 = vector.extract_strided_slice %19 {offsets = [40, 48], sizes = [40, 16], strides = [1, 1]} : vector<80x64xf32> to vector<40x16xf32>
    %146 = tpu.transpose %145, [1, 0] : vector<40x16xf32> -> vector<16x40xf32>
    %cst_43 = arith.constant dense<0.000000e+00> : vector<40x40xf32>
    %147 = tpu.matmul %144, %146, %cst_43 {dimension_numbers = #tpu.dot_dimension_numbers<[1], [0], [0], [1], [0, 0, 1, 1], [], []>} : vector<40x16xf32>, vector<16x40xf32>, vector<40x40xf32> -> vector<40x40xf32>
    %cst_44 = arith.constant dense<0xFF800000> : vector<40xf32>
    %148 = vector.multi_reduction <maximumf>, %147, %cst_44 [1] : vector<40x40xf32> to vector<40xf32>
    %149 = vector.shape_cast %148 : vector<40xf32> to vector<40x1xf32>
    %150 = vector.broadcast %149 : vector<40x1xf32> to vector<40x40xf32>
    %151 = arith.subf %147, %150 : vector<40x40xf32>
    %152 = math.exp %151 : vector<40x40xf32>
    %cst_45 = arith.constant dense<0.000000e+00> : vector<40xf32>
    %153 = vector.multi_reduction <add>, %152, %cst_45 [1] : vector<40x40xf32> to vector<40xf32>
    %154 = vector.shape_cast %153 : vector<40xf32> to vector<40x1xf32>
    %155 = tpu.reciprocal %154 {approx = true} : vector<40x1xf32> -> vector<40x1xf32>
    %156 = vector.broadcast %155 : vector<40x1xf32> to vector<40x40xf32>
    %157 = arith.mulf %152, %156 : vector<40x40xf32>
    %cst_46 = arith.constant dense<0.000000e+00> : vector<40xf32>
    %158 = vector.multi_reduction <add>, %157, %cst_46 [0] : vector<40x40xf32> to vector<40xf32>
    %159 = vector.shape_cast %158 : vector<40xf32> to vector<1x40xf32>
    %160 = arith.addf %143, %159 : vector<1x40xf32>
    %161 = tpu.iota {dimensions = array<i32: 1>} : vector<1x40xi32>
    %c40_i32 = arith.constant 40 : i32
    %162 = vector.broadcast %c40_i32 : i32 to vector<1x40xi32>
    %163 = arith.subi %162, %161 : vector<1x40xi32>
    %164 = arith.sitofp %163 : vector<1x40xi32> to vector<1x40xf32>
    %165 = arith.divf %160, %164 : vector<1x40xf32>
    %cst_47 = arith.constant 8.000000e+00 : f32
    %166 = vector.broadcast %cst_47 : f32 to vector<1x40xf32>
    %167 = arith.divf %165, %166 : vector<1x40xf32>
    %c0_48 = arith.constant 0 : index
    %c0_49 = arith.constant 0 : index
    %168 = vector.load %arg6[%c0_48, %c0_49] : memref<1x40xf32, #tpu.memory_space<vmem>>, vector<1x40xf32>
    tpu.vector_store %arg6[%c0_48, %c0_49], %167 {strides = array<i32>} : memref<1x40xf32, #tpu.memory_space<vmem>>, vector<1x40xf32>,
    return
  }
}

module attributes {stable_mosaic.version = 11 : i64} {
  func.func @_attn_mixedquant_outproj_kernel(%arg0: i32, %arg1: memref<4xi32, #tpu.memory_space<smem>>, %arg2: memref<80x64xf32, #tpu.memory_space<vmem>>, %arg3: memref<80x64xf32, #tpu.memory_space<vmem>>, %arg4: memref<80x64xf32, #tpu.memory_space<vmem>>, %arg5: memref<64x64xf32, #tpu.memory_space<vmem>>, %arg6: memref<1x64xf32, #tpu.memory_space<vmem>>, %arg7: memref<80x64xf32, #tpu.memory_space<vmem>>, %arg8: memref<80x64xf32, #tpu.memory_space<vmem>>, %arg9: memref<80x64xf32, #tpu.memory_space<vmem>>, %arg10: memref<80x64xf32, #tpu.memory_space<vmem>>) attributes {dimension_semantics = [#tpu.dimension_semantics<arbitrary>], iteration_bounds = array<i64: 1>, scalar_prefetch = 1 : i64, scratch_operands = 1 : i64, tpu.core_type = #tpu.core_type<tc>, window_params = [{pipeline_mode = #tpu.pipeline_mode<synchronous>, transform_indices = @transform_0, window_bounds = array<i64: 80, 64>}, {pipeline_mode = #tpu.pipeline_mode<synchronous>, transform_indices = @transform_1, window_bounds = array<i64: 80, 64>}, {pipeline_mode = #tpu.pipeline_mode<synchronous>, transform_indices = @transform_2, window_bounds = array<i64: 80, 64>}, {pipeline_mode = #tpu.pipeline_mode<synchronous>, transform_indices = @transform_3, window_bounds = array<i64: 64, 64>}, {pipeline_mode = #tpu.pipeline_mode<synchronous>, transform_indices = @transform_4, window_bounds = array<i64: 1, 64>}, {pipeline_mode = #tpu.pipeline_mode<synchronous>, transform_indices = @transform_5, window_bounds = array<i64: 80, 64>}, {pipeline_mode = #tpu.pipeline_mode<synchronous>, transform_indices = @transform_6, window_bounds = array<i64: 80, 64>}, {pipeline_mode = #tpu.pipeline_mode<synchronous>, transform_indices = @transform_7, window_bounds = array<i64: 80, 64>}]} {
    %c0 = arith.constant 0 : index
    %c0_0 = arith.constant 0 : index
    %0 = vector.load %arg2[%c0, %c0_0] : memref<80x64xf32, #tpu.memory_space<vmem>>, vector<80x64xf32>
    %c0_1 = arith.constant 0 : index
    %c0_2 = arith.constant 0 : index
    %1 = vector.load %arg3[%c0_1, %c0_2] : memref<80x64xf32, #tpu.memory_space<vmem>>, vector<80x64xf32>
    %c0_3 = arith.constant 0 : index
    %c0_4 = arith.constant 0 : index
    %2 = vector.load %arg4[%c0_3, %c0_4] : memref<80x64xf32, #tpu.memory_space<vmem>>, vector<80x64xf32>
    %3 = vector.extract_strided_slice %1 {offsets = [0, 0], sizes = [40, 64], strides = [1, 1]} : vector<80x64xf32> to vector<40x64xf32>
    %4 = math.absf %3 : vector<40x64xf32>
    %cst = arith.constant dense<0xFF800000> : vector<40xf32>
    %5 = vector.multi_reduction <maximumf>, %4, %cst [1] : vector<40x64xf32> to vector<40xf32>
    %6 = vector.shape_cast %5 : vector<40xf32> to vector<40x1xf32>
    %cst_5 = arith.constant 1.270000e+02 : f32
    %7 = vector.broadcast %cst_5 : f32 to vector<40x1xf32>
    %8 = arith.divf %6, %7 : vector<40x1xf32>
    %cst_6 = arith.constant 9.99999974E-6 : f32
    %9 = vector.broadcast %cst_6 : f32 to vector<40x1xf32>
    %10 = arith.maximumf %8, %9 : vector<40x1xf32>
    %11 = tpu.concatenate %10, %10 in 0 : vector<40x1xf32>, vector<40x1xf32> -> vector<80x1xf32>
    %12 = vector.broadcast %11 : vector<80x1xf32> to vector<80x64xf32>
    %13 = arith.divf %1, %12 : vector<80x64xf32>
    %14 = math.roundeven %13 : vector<80x64xf32>
    %15 = vector.broadcast %11 : vector<80x1xf32> to vector<80x64xf32>
    %16 = arith.mulf %14, %15 : vector<80x64xf32>
    %17 = math.absf %1 : vector<80x64xf32>
    %cst_7 = arith.constant dense<0xFF800000> : vector<80xf32>
    %18 = vector.multi_reduction <maximumf>, %17, %cst_7 [1] : vector<80x64xf32> to vector<80xf32>
    %19 = vector.shape_cast %18 : vector<80xf32> to vector<80x1xf32>
    %cst_8 = arith.constant 9.99999974E-6 : f32
    %20 = vector.broadcast %cst_8 : f32 to vector<80x1xf32>
    %21 = arith.maximumf %19, %20 : vector<80x1xf32>
    %cst_9 = arith.constant 7.000000e+00 : f32
    %22 = vector.broadcast %cst_9 : f32 to vector<80x1xf32>
    %23 = arith.divf %21, %22 : vector<80x1xf32>
    %24 = vector.broadcast %23 : vector<80x1xf32> to vector<80x64xf32>
    %25 = arith.divf %1, %24 : vector<80x64xf32>
    %26 = math.roundeven %25 : vector<80x64xf32>
    %27 = vector.broadcast %23 : vector<80x1xf32> to vector<80x64xf32>
    %28 = arith.mulf %26, %27 : vector<80x64xf32>
    %29 = tpu.iota {dimensions = array<i32: 0>} : vector<40x1xi32>
    %30 = tpu.concatenate %29, %29 in 0 : vector<40x1xi32>, vector<40x1xi32> -> vector<80x1xi32>
    %c0_10 = arith.constant 0 : index
    %31 = memref.load %arg1[%c0_10] : memref<4xi32, #tpu.memory_space<smem>>
    %32 = vector.broadcast %31 : i32 to vector<80x1xi32>
    %33 = arith.cmpi eq, %30, %32 : vector<80x1xi32>
    %c1 = arith.constant 1 : index
    %34 = memref.load %arg1[%c1] : memref<4xi32, #tpu.memory_space<smem>>
    %35 = vector.broadcast %34 : i32 to vector<80x1xi32>
    %36 = arith.cmpi eq, %30, %35 : vector<80x1xi32>
    %37 = arith.ori %33, %36 : vector<80x1xi1>
    %c2 = arith.constant 2 : index
    %38 = memref.load %arg1[%c2] : memref<4xi32, #tpu.memory_space<smem>>
    %39 = vector.broadcast %38 : i32 to vector<80x1xi32>
    %40 = arith.cmpi eq, %30, %39 : vector<80x1xi32>
    %41 = arith.ori %37, %40 : vector<80x1xi1>
    %c3 = arith.constant 3 : index
    %42 = memref.load %arg1[%c3] : memref<4xi32, #tpu.memory_space<smem>>
    %43 = vector.broadcast %42 : i32 to vector<80x1xi32>
    %44 = arith.cmpi eq, %30, %43 : vector<80x1xi32>
    %45 = arith.ori %41, %44 : vector<80x1xi1>
    %46 = vector.shape_cast %45 : vector<80x1xi1> to vector<80x1xi1>
    %47 = vector.broadcast %46 : vector<80x1xi1> to vector<80x64xi1>
    %48 = arith.select %47, %16, %28 : vector<80x64xi1>, vector<80x64xf32>
    %49 = vector.extract_strided_slice %2 {offsets = [0, 0], sizes = [40, 64], strides = [1, 1]} : vector<80x64xf32> to vector<40x64xf32>
    %50 = math.absf %49 : vector<40x64xf32>
    %cst_11 = arith.constant dense<0xFF800000> : vector<64xf32>
    %51 = vector.multi_reduction <maximumf>, %50, %cst_11 [0] : vector<40x64xf32> to vector<64xf32>
    %52 = vector.shape_cast %51 : vector<64xf32> to vector<1x64xf32>
    %cst_12 = arith.constant 9.99999974E-6 : f32
    %53 = vector.broadcast %cst_12 : f32 to vector<1x64xf32>
    %54 = arith.maximumf %52, %53 : vector<1x64xf32>
    %cst_13 = arith.constant 1.270000e+02 : f32
    %55 = vector.broadcast %cst_13 : f32 to vector<1x64xf32>
    %56 = arith.divf %54, %55 : vector<1x64xf32>
    %57 = vector.broadcast %56 : vector<1x64xf32> to vector<40x64xf32>
    %58 = arith.divf %49, %57 : vector<40x64xf32>
    %59 = math.roundeven %58 : vector<40x64xf32>
    %60 = vector.broadcast %56 : vector<1x64xf32> to vector<40x64xf32>
    %61 = arith.mulf %59, %60 : vector<40x64xf32>
    %62 = vector.extract_strided_slice %2 {offsets = [40, 0], sizes = [40, 64], strides = [1, 1]} : vector<80x64xf32> to vector<40x64xf32>
    %63 = math.absf %62 : vector<40x64xf32>
    %cst_14 = arith.constant dense<0xFF800000> : vector<64xf32>
    %64 = vector.multi_reduction <maximumf>, %63, %cst_14 [0] : vector<40x64xf32> to vector<64xf32>
    %65 = vector.shape_cast %64 : vector<64xf32> to vector<1x64xf32>
    %cst_15 = arith.constant 9.99999974E-6 : f32
    %66 = vector.broadcast %cst_15 : f32 to vector<1x64xf32>
    %67 = arith.maximumf %65, %66 : vector<1x64xf32>
    %cst_16 = arith.constant 1.270000e+02 : f32
    %68 = vector.broadcast %cst_16 : f32 to vector<1x64xf32>
    %69 = arith.divf %67, %68 : vector<1x64xf32>
    %70 = vector.broadcast %69 : vector<1x64xf32> to vector<40x64xf32>
    %71 = arith.divf %62, %70 : vector<40x64xf32>
    %72 = math.roundeven %71 : vector<40x64xf32>
    %73 = vector.broadcast %69 : vector<1x64xf32> to vector<40x64xf32>
    %74 = arith.mulf %72, %73 : vector<40x64xf32>
    %75 = tpu.concatenate %61, %74 in 0 : vector<40x64xf32>, vector<40x64xf32> -> vector<80x64xf32>
    %c0_17 = arith.constant 0 : index
    %c0_18 = arith.constant 0 : index
    %76 = vector.load %arg8[%c0_17, %c0_18] : memref<80x64xf32, #tpu.memory_space<vmem>>, vector<80x64xf32>
    tpu.vector_store %arg8[%c0_17, %c0_18], %48 {strides = array<i32>} : memref<80x64xf32, #tpu.memory_space<vmem>>, vector<80x64xf32>,
    %c0_19 = arith.constant 0 : index
    %c0_20 = arith.constant 0 : index
    %77 = vector.load %arg9[%c0_19, %c0_20] : memref<80x64xf32, #tpu.memory_space<vmem>>, vector<80x64xf32>
    tpu.vector_store %arg9[%c0_19, %c0_20], %75 {strides = array<i32>} : memref<80x64xf32, #tpu.memory_space<vmem>>, vector<80x64xf32>,
    %78 = vector.extract_strided_slice %0 {offsets = [0, 0], sizes = [40, 16], strides = [1, 1]} : vector<80x64xf32> to vector<40x16xf32>
    %79 = vector.extract_strided_slice %48 {offsets = [0, 0], sizes = [40, 16], strides = [1, 1]} : vector<80x64xf32> to vector<40x16xf32>
    %80 = vector.extract_strided_slice %75 {offsets = [0, 0], sizes = [40, 16], strides = [1, 1]} : vector<80x64xf32> to vector<40x16xf32>
    %81 = tpu.transpose %79, [1, 0] : vector<40x16xf32> -> vector<16x40xf32>
    %cst_21 = arith.constant dense<0.000000e+00> : vector<40x40xf32>
    %82 = tpu.matmul %78, %81, %cst_21 {dimension_numbers = #tpu.dot_dimension_numbers<[1], [0], [0], [1], [0, 0, 1, 1], [], []>} : vector<40x16xf32>, vector<16x40xf32>, vector<40x40xf32> -> vector<40x40xf32>
    %cst_22 = arith.constant dense<0xFF800000> : vector<40xf32>
    %83 = vector.multi_reduction <maximumf>, %82, %cst_22 [1] : vector<40x40xf32> to vector<40xf32>
    %84 = vector.shape_cast %83 : vector<40xf32> to vector<40x1xf32>
    %85 = vector.broadcast %84 : vector<40x1xf32> to vector<40x40xf32>
    %86 = arith.subf %82, %85 : vector<40x40xf32>
    %87 = math.exp %86 : vector<40x40xf32>
    %cst_23 = arith.constant dense<0.000000e+00> : vector<40xf32>
    %88 = vector.multi_reduction <add>, %87, %cst_23 [1] : vector<40x40xf32> to vector<40xf32>
    %89 = vector.shape_cast %88 : vector<40xf32> to vector<40x1xf32>
    %90 = vector.broadcast %89 : vector<40x1xf32> to vector<40x40xf32>
    %91 = arith.divf %87, %90 : vector<40x40xf32>
    %cst_24 = arith.constant dense<0.000000e+00> : vector<40x16xf32>
    %92 = tpu.matmul %91, %80, %cst_24 {dimension_numbers = #tpu.dot_dimension_numbers<[1], [0], [0], [1], [0, 0, 1, 1], [], []>} : vector<40x40xf32>, vector<40x16xf32>, vector<40x16xf32> -> vector<40x16xf32>
    %c0_25 = arith.constant 0 : index
    %c0_26 = arith.constant 0 : index
    %93 = vector.load %arg10[%c0_25, %c0_26] : memref<80x64xf32, #tpu.memory_space<vmem>>, vector<40x16xf32>
    tpu.vector_store %arg10[%c0_25, %c0_26], %92 {strides = array<i32>} : memref<80x64xf32, #tpu.memory_space<vmem>>, vector<40x16xf32>,
    %94 = vector.extract_strided_slice %0 {offsets = [0, 16], sizes = [40, 16], strides = [1, 1]} : vector<80x64xf32> to vector<40x16xf32>
    %95 = vector.extract_strided_slice %48 {offsets = [0, 16], sizes = [40, 16], strides = [1, 1]} : vector<80x64xf32> to vector<40x16xf32>
    %96 = vector.extract_strided_slice %75 {offsets = [0, 16], sizes = [40, 16], strides = [1, 1]} : vector<80x64xf32> to vector<40x16xf32>
    %97 = tpu.transpose %95, [1, 0] : vector<40x16xf32> -> vector<16x40xf32>
    %cst_27 = arith.constant dense<0.000000e+00> : vector<40x40xf32>
    %98 = tpu.matmul %94, %97, %cst_27 {dimension_numbers = #tpu.dot_dimension_numbers<[1], [0], [0], [1], [0, 0, 1, 1], [], []>} : vector<40x16xf32>, vector<16x40xf32>, vector<40x40xf32> -> vector<40x40xf32>
    %cst_28 = arith.constant dense<0xFF800000> : vector<40xf32>
    %99 = vector.multi_reduction <maximumf>, %98, %cst_28 [1] : vector<40x40xf32> to vector<40xf32>
    %100 = vector.shape_cast %99 : vector<40xf32> to vector<40x1xf32>
    %101 = vector.broadcast %100 : vector<40x1xf32> to vector<40x40xf32>
    %102 = arith.subf %98, %101 : vector<40x40xf32>
    %103 = math.exp %102 : vector<40x40xf32>
    %cst_29 = arith.constant dense<0.000000e+00> : vector<40xf32>
    %104 = vector.multi_reduction <add>, %103, %cst_29 [1] : vector<40x40xf32> to vector<40xf32>
    %105 = vector.shape_cast %104 : vector<40xf32> to vector<40x1xf32>
    %106 = vector.broadcast %105 : vector<40x1xf32> to vector<40x40xf32>
    %107 = arith.divf %103, %106 : vector<40x40xf32>
    %cst_30 = arith.constant dense<0.000000e+00> : vector<40x16xf32>
    %108 = tpu.matmul %107, %96, %cst_30 {dimension_numbers = #tpu.dot_dimension_numbers<[1], [0], [0], [1], [0, 0, 1, 1], [], []>} : vector<40x40xf32>, vector<40x16xf32>, vector<40x16xf32> -> vector<40x16xf32>
    %c0_31 = arith.constant 0 : index
    %c16 = arith.constant 16 : index
    %109 = vector.load %arg10[%c0_31, %c16] : memref<80x64xf32, #tpu.memory_space<vmem>>, vector<40x16xf32>
    tpu.vector_store %arg10[%c0_31, %c16], %108 {strides = array<i32>} : memref<80x64xf32, #tpu.memory_space<vmem>>, vector<40x16xf32>,
    %110 = vector.extract_strided_slice %0 {offsets = [0, 32], sizes = [40, 16], strides = [1, 1]} : vector<80x64xf32> to vector<40x16xf32>
    %111 = vector.extract_strided_slice %48 {offsets = [0, 32], sizes = [40, 16], strides = [1, 1]} : vector<80x64xf32> to vector<40x16xf32>
    %112 = vector.extract_strided_slice %75 {offsets = [0, 32], sizes = [40, 16], strides = [1, 1]} : vector<80x64xf32> to vector<40x16xf32>
    %113 = tpu.transpose %111, [1, 0] : vector<40x16xf32> -> vector<16x40xf32>
    %cst_32 = arith.constant dense<0.000000e+00> : vector<40x40xf32>
    %114 = tpu.matmul %110, %113, %cst_32 {dimension_numbers = #tpu.dot_dimension_numbers<[1], [0], [0], [1], [0, 0, 1, 1], [], []>} : vector<40x16xf32>, vector<16x40xf32>, vector<40x40xf32> -> vector<40x40xf32>
    %cst_33 = arith.constant dense<0xFF800000> : vector<40xf32>
    %115 = vector.multi_reduction <maximumf>, %114, %cst_33 [1] : vector<40x40xf32> to vector<40xf32>
    %116 = vector.shape_cast %115 : vector<40xf32> to vector<40x1xf32>
    %117 = vector.broadcast %116 : vector<40x1xf32> to vector<40x40xf32>
    %118 = arith.subf %114, %117 : vector<40x40xf32>
    %119 = math.exp %118 : vector<40x40xf32>
    %cst_34 = arith.constant dense<0.000000e+00> : vector<40xf32>
    %120 = vector.multi_reduction <add>, %119, %cst_34 [1] : vector<40x40xf32> to vector<40xf32>
    %121 = vector.shape_cast %120 : vector<40xf32> to vector<40x1xf32>
    %122 = vector.broadcast %121 : vector<40x1xf32> to vector<40x40xf32>
    %123 = arith.divf %119, %122 : vector<40x40xf32>
    %cst_35 = arith.constant dense<0.000000e+00> : vector<40x16xf32>
    %124 = tpu.matmul %123, %112, %cst_35 {dimension_numbers = #tpu.dot_dimension_numbers<[1], [0], [0], [1], [0, 0, 1, 1], [], []>} : vector<40x40xf32>, vector<40x16xf32>, vector<40x16xf32> -> vector<40x16xf32>
    %c0_36 = arith.constant 0 : index
    %c32 = arith.constant 32 : index
    %125 = vector.load %arg10[%c0_36, %c32] : memref<80x64xf32, #tpu.memory_space<vmem>>, vector<40x16xf32>
    tpu.vector_store %arg10[%c0_36, %c32], %124 {strides = array<i32>} : memref<80x64xf32, #tpu.memory_space<vmem>>, vector<40x16xf32>,
    %126 = vector.extract_strided_slice %0 {offsets = [0, 48], sizes = [40, 16], strides = [1, 1]} : vector<80x64xf32> to vector<40x16xf32>
    %127 = vector.extract_strided_slice %48 {offsets = [0, 48], sizes = [40, 16], strides = [1, 1]} : vector<80x64xf32> to vector<40x16xf32>
    %128 = vector.extract_strided_slice %75 {offsets = [0, 48], sizes = [40, 16], strides = [1, 1]} : vector<80x64xf32> to vector<40x16xf32>
    %129 = tpu.transpose %127, [1, 0] : vector<40x16xf32> -> vector<16x40xf32>
    %cst_37 = arith.constant dense<0.000000e+00> : vector<40x40xf32>
    %130 = tpu.matmul %126, %129, %cst_37 {dimension_numbers = #tpu.dot_dimension_numbers<[1], [0], [0], [1], [0, 0, 1, 1], [], []>} : vector<40x16xf32>, vector<16x40xf32>, vector<40x40xf32> -> vector<40x40xf32>
    %cst_38 = arith.constant dense<0xFF800000> : vector<40xf32>
    %131 = vector.multi_reduction <maximumf>, %130, %cst_38 [1] : vector<40x40xf32> to vector<40xf32>
    %132 = vector.shape_cast %131 : vector<40xf32> to vector<40x1xf32>
    %133 = vector.broadcast %132 : vector<40x1xf32> to vector<40x40xf32>
    %134 = arith.subf %130, %133 : vector<40x40xf32>
    %135 = math.exp %134 : vector<40x40xf32>
    %cst_39 = arith.constant dense<0.000000e+00> : vector<40xf32>
    %136 = vector.multi_reduction <add>, %135, %cst_39 [1] : vector<40x40xf32> to vector<40xf32>
    %137 = vector.shape_cast %136 : vector<40xf32> to vector<40x1xf32>
    %138 = vector.broadcast %137 : vector<40x1xf32> to vector<40x40xf32>
    %139 = arith.divf %135, %138 : vector<40x40xf32>
    %cst_40 = arith.constant dense<0.000000e+00> : vector<40x16xf32>
    %140 = tpu.matmul %139, %128, %cst_40 {dimension_numbers = #tpu.dot_dimension_numbers<[1], [0], [0], [1], [0, 0, 1, 1], [], []>} : vector<40x40xf32>, vector<40x16xf32>, vector<40x16xf32> -> vector<40x16xf32>
    %c0_41 = arith.constant 0 : index
    %c48 = arith.constant 48 : index
    %141 = vector.load %arg10[%c0_41, %c48] : memref<80x64xf32, #tpu.memory_space<vmem>>, vector<40x16xf32>
    tpu.vector_store %arg10[%c0_41, %c48], %140 {strides = array<i32>} : memref<80x64xf32, #tpu.memory_space<vmem>>, vector<40x16xf32>,
    %142 = vector.extract_strided_slice %0 {offsets = [40, 0], sizes = [40, 16], strides = [1, 1]} : vector<80x64xf32> to vector<40x16xf32>
    %143 = vector.extract_strided_slice %48 {offsets = [40, 0], sizes = [40, 16], strides = [1, 1]} : vector<80x64xf32> to vector<40x16xf32>
    %144 = vector.extract_strided_slice %75 {offsets = [40, 0], sizes = [40, 16], strides = [1, 1]} : vector<80x64xf32> to vector<40x16xf32>
    %145 = tpu.transpose %143, [1, 0] : vector<40x16xf32> -> vector<16x40xf32>
    %cst_42 = arith.constant dense<0.000000e+00> : vector<40x40xf32>
    %146 = tpu.matmul %142, %145, %cst_42 {dimension_numbers = #tpu.dot_dimension_numbers<[1], [0], [0], [1], [0, 0, 1, 1], [], []>} : vector<40x16xf32>, vector<16x40xf32>, vector<40x40xf32> -> vector<40x40xf32>
    %cst_43 = arith.constant dense<0xFF800000> : vector<40xf32>
    %147 = vector.multi_reduction <maximumf>, %146, %cst_43 [1] : vector<40x40xf32> to vector<40xf32>
    %148 = vector.shape_cast %147 : vector<40xf32> to vector<40x1xf32>
    %149 = vector.broadcast %148 : vector<40x1xf32> to vector<40x40xf32>
    %150 = arith.subf %146, %149 : vector<40x40xf32>
    %151 = math.exp %150 : vector<40x40xf32>
    %cst_44 = arith.constant dense<0.000000e+00> : vector<40xf32>
    %152 = vector.multi_reduction <add>, %151, %cst_44 [1] : vector<40x40xf32> to vector<40xf32>
    %153 = vector.shape_cast %152 : vector<40xf32> to vector<40x1xf32>
    %154 = vector.broadcast %153 : vector<40x1xf32> to vector<40x40xf32>
    %155 = arith.divf %151, %154 : vector<40x40xf32>
    %cst_45 = arith.constant dense<0.000000e+00> : vector<40x16xf32>
    %156 = tpu.matmul %155, %144, %cst_45 {dimension_numbers = #tpu.dot_dimension_numbers<[1], [0], [0], [1], [0, 0, 1, 1], [], []>} : vector<40x40xf32>, vector<40x16xf32>, vector<40x16xf32> -> vector<40x16xf32>
    %c40 = arith.constant 40 : index
    %c0_46 = arith.constant 0 : index
    %157 = vector.load %arg10[%c40, %c0_46] : memref<80x64xf32, #tpu.memory_space<vmem>>, vector<40x16xf32>
    tpu.vector_store %arg10[%c40, %c0_46], %156 {strides = array<i32>} : memref<80x64xf32, #tpu.memory_space<vmem>>, vector<40x16xf32>,
    %158 = vector.extract_strided_slice %0 {offsets = [40, 16], sizes = [40, 16], strides = [1, 1]} : vector<80x64xf32> to vector<40x16xf32>
    %159 = vector.extract_strided_slice %48 {offsets = [40, 16], sizes = [40, 16], strides = [1, 1]} : vector<80x64xf32> to vector<40x16xf32>
    %160 = vector.extract_strided_slice %75 {offsets = [40, 16], sizes = [40, 16], strides = [1, 1]} : vector<80x64xf32> to vector<40x16xf32>
    %161 = tpu.transpose %159, [1, 0] : vector<40x16xf32> -> vector<16x40xf32>
    %cst_47 = arith.constant dense<0.000000e+00> : vector<40x40xf32>
    %162 = tpu.matmul %158, %161, %cst_47 {dimension_numbers = #tpu.dot_dimension_numbers<[1], [0], [0], [1], [0, 0, 1, 1], [], []>} : vector<40x16xf32>, vector<16x40xf32>, vector<40x40xf32> -> vector<40x40xf32>
    %cst_48 = arith.constant dense<0xFF800000> : vector<40xf32>
    %163 = vector.multi_reduction <maximumf>, %162, %cst_48 [1] : vector<40x40xf32> to vector<40xf32>
    %164 = vector.shape_cast %163 : vector<40xf32> to vector<40x1xf32>
    %165 = vector.broadcast %164 : vector<40x1xf32> to vector<40x40xf32>
    %166 = arith.subf %162, %165 : vector<40x40xf32>
    %167 = math.exp %166 : vector<40x40xf32>
    %cst_49 = arith.constant dense<0.000000e+00> : vector<40xf32>
    %168 = vector.multi_reduction <add>, %167, %cst_49 [1] : vector<40x40xf32> to vector<40xf32>
    %169 = vector.shape_cast %168 : vector<40xf32> to vector<40x1xf32>
    %170 = vector.broadcast %169 : vector<40x1xf32> to vector<40x40xf32>
    %171 = arith.divf %167, %170 : vector<40x40xf32>
    %cst_50 = arith.constant dense<0.000000e+00> : vector<40x16xf32>
    %172 = tpu.matmul %171, %160, %cst_50 {dimension_numbers = #tpu.dot_dimension_numbers<[1], [0], [0], [1], [0, 0, 1, 1], [], []>} : vector<40x40xf32>, vector<40x16xf32>, vector<40x16xf32> -> vector<40x16xf32>
    %c40_51 = arith.constant 40 : index
    %c16_52 = arith.constant 16 : index
    %173 = vector.load %arg10[%c40_51, %c16_52] : memref<80x64xf32, #tpu.memory_space<vmem>>, vector<40x16xf32>
    tpu.vector_store %arg10[%c40_51, %c16_52], %172 {strides = array<i32>} : memref<80x64xf32, #tpu.memory_space<vmem>>, vector<40x16xf32>,
    %174 = vector.extract_strided_slice %0 {offsets = [40, 32], sizes = [40, 16], strides = [1, 1]} : vector<80x64xf32> to vector<40x16xf32>
    %175 = vector.extract_strided_slice %48 {offsets = [40, 32], sizes = [40, 16], strides = [1, 1]} : vector<80x64xf32> to vector<40x16xf32>
    %176 = vector.extract_strided_slice %75 {offsets = [40, 32], sizes = [40, 16], strides = [1, 1]} : vector<80x64xf32> to vector<40x16xf32>
    %177 = tpu.transpose %175, [1, 0] : vector<40x16xf32> -> vector<16x40xf32>
    %cst_53 = arith.constant dense<0.000000e+00> : vector<40x40xf32>
    %178 = tpu.matmul %174, %177, %cst_53 {dimension_numbers = #tpu.dot_dimension_numbers<[1], [0], [0], [1], [0, 0, 1, 1], [], []>} : vector<40x16xf32>, vector<16x40xf32>, vector<40x40xf32> -> vector<40x40xf32>
    %cst_54 = arith.constant dense<0xFF800000> : vector<40xf32>
    %179 = vector.multi_reduction <maximumf>, %178, %cst_54 [1] : vector<40x40xf32> to vector<40xf32>
    %180 = vector.shape_cast %179 : vector<40xf32> to vector<40x1xf32>
    %181 = vector.broadcast %180 : vector<40x1xf32> to vector<40x40xf32>
    %182 = arith.subf %178, %181 : vector<40x40xf32>
    %183 = math.exp %182 : vector<40x40xf32>
    %cst_55 = arith.constant dense<0.000000e+00> : vector<40xf32>
    %184 = vector.multi_reduction <add>, %183, %cst_55 [1] : vector<40x40xf32> to vector<40xf32>
    %185 = vector.shape_cast %184 : vector<40xf32> to vector<40x1xf32>
    %186 = vector.broadcast %185 : vector<40x1xf32> to vector<40x40xf32>
    %187 = arith.divf %183, %186 : vector<40x40xf32>
    %cst_56 = arith.constant dense<0.000000e+00> : vector<40x16xf32>
    %188 = tpu.matmul %187, %176, %cst_56 {dimension_numbers = #tpu.dot_dimension_numbers<[1], [0], [0], [1], [0, 0, 1, 1], [], []>} : vector<40x40xf32>, vector<40x16xf32>, vector<40x16xf32> -> vector<40x16xf32>
    %c40_57 = arith.constant 40 : index
    %c32_58 = arith.constant 32 : index
    %189 = vector.load %arg10[%c40_57, %c32_58] : memref<80x64xf32, #tpu.memory_space<vmem>>, vector<40x16xf32>
    tpu.vector_store %arg10[%c40_57, %c32_58], %188 {strides = array<i32>} : memref<80x64xf32, #tpu.memory_space<vmem>>, vector<40x16xf32>,
    %190 = vector.extract_strided_slice %0 {offsets = [40, 48], sizes = [40, 16], strides = [1, 1]} : vector<80x64xf32> to vector<40x16xf32>
    %191 = vector.extract_strided_slice %48 {offsets = [40, 48], sizes = [40, 16], strides = [1, 1]} : vector<80x64xf32> to vector<40x16xf32>
    %192 = vector.extract_strided_slice %75 {offsets = [40, 48], sizes = [40, 16], strides = [1, 1]} : vector<80x64xf32> to vector<40x16xf32>
    %193 = tpu.transpose %191, [1, 0] : vector<40x16xf32> -> vector<16x40xf32>
    %cst_59 = arith.constant dense<0.000000e+00> : vector<40x40xf32>
    %194 = tpu.matmul %190, %193, %cst_59 {dimension_numbers = #tpu.dot_dimension_numbers<[1], [0], [0], [1], [0, 0, 1, 1], [], []>} : vector<40x16xf32>, vector<16x40xf32>, vector<40x40xf32> -> vector<40x40xf32>
    %cst_60 = arith.constant dense<0xFF800000> : vector<40xf32>
    %195 = vector.multi_reduction <maximumf>, %194, %cst_60 [1] : vector<40x40xf32> to vector<40xf32>
    %196 = vector.shape_cast %195 : vector<40xf32> to vector<40x1xf32>
    %197 = vector.broadcast %196 : vector<40x1xf32> to vector<40x40xf32>
    %198 = arith.subf %194, %197 : vector<40x40xf32>
    %199 = math.exp %198 : vector<40x40xf32>
    %cst_61 = arith.constant dense<0.000000e+00> : vector<40xf32>
    %200 = vector.multi_reduction <add>, %199, %cst_61 [1] : vector<40x40xf32> to vector<40xf32>
    %201 = vector.shape_cast %200 : vector<40xf32> to vector<40x1xf32>
    %202 = vector.broadcast %201 : vector<40x1xf32> to vector<40x40xf32>
    %203 = arith.divf %199, %202 : vector<40x40xf32>
    %cst_62 = arith.constant dense<0.000000e+00> : vector<40x16xf32>
    %204 = tpu.matmul %203, %192, %cst_62 {dimension_numbers = #tpu.dot_dimension_numbers<[1], [0], [0], [1], [0, 0, 1, 1], [], []>} : vector<40x40xf32>, vector<40x16xf32>, vector<40x16xf32> -> vector<40x16xf32>
    %c40_63 = arith.constant 40 : index
    %c48_64 = arith.constant 48 : index
    %205 = vector.load %arg10[%c40_63, %c48_64] : memref<80x64xf32, #tpu.memory_space<vmem>>, vector<40x16xf32>
    tpu.vector_store %arg10[%c40_63, %c48_64], %204 {strides = array<i32>} : memref<80x64xf32, #tpu.memory_space<vmem>>, vector<40x16xf32>,
    %c0_65 = arith.constant 0 : index
    %c0_66 = arith.constant 0 : index
    %206 = vector.load %arg10[%c0_65, %c0_66] : memref<80x64xf32, #tpu.memory_space<vmem>>, vector<80x64xf32>
    %207 = math.absf %206 : vector<80x64xf32>
    %cst_67 = arith.constant dense<0xFF800000> : vector<80xf32>
    %208 = vector.multi_reduction <maximumf>, %207, %cst_67 [1] : vector<80x64xf32> to vector<80xf32>
    %209 = vector.shape_cast %208 : vector<80xf32> to vector<80x1xf32>
    %cst_68 = arith.constant 9.99999974E-6 : f32
    %210 = vector.broadcast %cst_68 : f32 to vector<80x1xf32>
    %211 = arith.maximumf %209, %210 : vector<80x1xf32>
    %cst_69 = arith.constant 1.270000e+02 : f32
    %212 = vector.broadcast %cst_69 : f32 to vector<80x1xf32>
    %213 = arith.divf %211, %212 : vector<80x1xf32>
    %214 = vector.broadcast %213 : vector<80x1xf32> to vector<80x64xf32>
    %215 = arith.divf %206, %214 : vector<80x64xf32>
    %216 = math.roundeven %215 : vector<80x64xf32>
    %217 = vector.broadcast %213 : vector<80x1xf32> to vector<80x64xf32>
    %218 = arith.mulf %216, %217 : vector<80x64xf32>
    %c0_70 = arith.constant 0 : index
    %c0_71 = arith.constant 0 : index
    %219 = vector.load %arg5[%c0_70, %c0_71] : memref<64x64xf32, #tpu.memory_space<vmem>>, vector<64x64xf32>
    %cst_72 = arith.constant dense<0.000000e+00> : vector<80x64xf32>
    %220 = tpu.matmul %218, %219, %cst_72 {dimension_numbers = #tpu.dot_dimension_numbers<[1], [0], [0], [1], [0, 0, 1, 1], [], []>} : vector<80x64xf32>, vector<64x64xf32>, vector<80x64xf32> -> vector<80x64xf32>
    %c0_73 = arith.constant 0 : index
    %c0_74 = arith.constant 0 : index
    %221 = vector.load %arg6[%c0_73, %c0_74] : memref<1x64xf32, #tpu.memory_space<vmem>>, vector<1x64xf32>
    %222 = vector.broadcast %221 : vector<1x64xf32> to vector<80x64xf32>
    %223 = arith.addf %220, %222 : vector<80x64xf32>
    %c0_75 = arith.constant 0 : index
    %c0_76 = arith.constant 0 : index
    %224 = vector.load %arg7[%c0_75, %c0_76] : memref<80x64xf32, #tpu.memory_space<vmem>>, vector<80x64xf32>
    tpu.vector_store %arg7[%c0_75, %c0_76], %223 {strides = array<i32>} : memref<80x64xf32, #tpu.memory_space<vmem>>, vector<80x64xf32>,
    return
  }
  func.func @transform_0(%arg0: i32, %arg1: memref<4xi32, #tpu.memory_space<smem>>) -> (i32, i32) {
    %c0_i32 = arith.constant 0 : i32
    %c0_i32_0 = arith.constant 0 : i32
    %c0_i32_1 = arith.constant 0 : i32
    return %c0_i32, %c0_i32_0 : i32, i32
  }
  func.func @transform_1(%arg0: i32, %arg1: memref<4xi32, #tpu.memory_space<smem>>) -> (i32, i32) {
    %c0_i32 = arith.constant 0 : i32
    %c0_i32_0 = arith.constant 0 : i32
    %c0_i32_1 = arith.constant 0 : i32
    return %c0_i32, %c0_i32_0 : i32, i32
  }
  func.func @transform_2(%arg0: i32, %arg1: memref<4xi32, #tpu.memory_space<smem>>) -> (i32, i32) {
    %c0_i32 = arith.constant 0 : i32
    %c0_i32_0 = arith.constant 0 : i32
    %c0_i32_1 = arith.constant 0 : i32
    return %c0_i32, %c0_i32_0 : i32, i32
  }
  func.func @transform_3(%arg0: i32, %arg1: memref<4xi32, #tpu.memory_space<smem>>) -> (i32, i32) {
    %c0_i32 = arith.constant 0 : i32
    %c0_i32_0 = arith.constant 0 : i32
    %c0_i32_1 = arith.constant 0 : i32
    return %c0_i32, %c0_i32_0 : i32, i32
  }
  func.func @transform_4(%arg0: i32, %arg1: memref<4xi32, #tpu.memory_space<smem>>) -> (i32, i32) {
    %c0_i32 = arith.constant 0 : i32
    %c0_i32_0 = arith.constant 0 : i32
    %c0_i32_1 = arith.constant 0 : i32
    return %c0_i32, %c0_i32_0 : i32, i32
  }
  func.func @transform_5(%arg0: i32, %arg1: memref<4xi32, #tpu.memory_space<smem>>) -> (i32, i32) {
    %c0_i32 = arith.constant 0 : i32
    %c0_i32_0 = arith.constant 0 : i32
    %c0_i32_1 = arith.constant 0 : i32
    return %c0_i32, %c0_i32_0 : i32, i32
  }
  func.func @transform_6(%arg0: i32, %arg1: memref<4xi32, #tpu.memory_space<smem>>) -> (i32, i32) {
    %c0_i32 = arith.constant 0 : i32
    %c0_i32_0 = arith.constant 0 : i32
    %c0_i32_1 = arith.constant 0 : i32
    return %c0_i32, %c0_i32_0 : i32, i32
  }
  func.func @transform_7(%arg0: i32, %arg1: memref<4xi32, #tpu.memory_space<smem>>) -> (i32, i32) {
    %c0_i32 = arith.constant 0 : i32
    %c0_i32_0 = arith.constant 0 : i32
    %c0_i32_1 = arith.constant 0 : i32
    return %c0_i32, %c0_i32_0 : i32, i32
  }
}

</mosaic_0001>

<llo_original>
// kernel: cal_scale_opt_attention.2
$region0: #{cal_scale_opt_attention.2}
  #allocation0 [shape = 'u32[]', space=smem, size = 0x4, offset = 0x4, fixed_abs, tag = 'smem constant byte address 0x4 - core index']
  #allocation1 [shape = 'u32[144,128]{1,0:T(1,128)}', space=vmem, size = 0x12000, scoped, tag = 'internal scratch']
  %s0 = inlined_call_operand.hbm [shape: f32[80,64], index: 0, kind: input, shape index: {}]
  %s1 = inlined_call_operand.hbm [shape: f32[64,192], index: 1, kind: input, shape index: {}]
  %s2 = inlined_call_operand.vmem [shape: f32[1,192], index: 2, kind: input, shape index: {}]
  %s3 = inlined_call_operand.vmem [shape: f32[80,64], index: 3, kind: output, shape index: {0}]
  %s4 = inlined_call_operand.vmem [shape: f32[80,64], index: 4, kind: output, shape index: {1}]
  %s5 = inlined_call_operand.vmem [shape: f32[80,64], index: 5, kind: output, shape index: {2}]
  %s6 = inlined_call_operand.vmem [shape: f32[1,40], index: 6, kind: output, shape index: {3}]
  %7 = xla_tuple %s3, %s4, %s5, %s6
  %s8 = sld [smem:[#allocation0]]
  $region54: #{cal_scale_opt_attention.2} parent=0
    _
  %s10 = ssub.s32 1, %s8
  %s11 = scalar_select 0, %s10, %s8
  $region1: #{cal_scale_opt_attention.2} parent=0
    #allocation2 [shape = 'u8[40960]{0}', space=vmem, size = 0xa000, scoped, tag = 'input window, operand 0, single buffered']
    #allocation3 [shape = 's32[1]{0}', space=sflag, size = 0x4, scoped, tag = 'scoped memory for cal_scale_opt_attention.2']
    #allocation4 [shape = 'u8[65536]{0}', space=vmem, size = 0x10000, scoped, tag = 'input window, operand 1, single buffered']
    #allocation5 [shape = 's32[1]{0}', space=sflag, size = 0x4, scoped, tag = 'scoped memory for cal_scale_opt_attention.2']
    %12 = vsyncpa [#allocation3], 0
    %13 = vsyncpa [#allocation5], 0
    // Predicated region
    $region2: #{cal_scale_opt_attention.2} parent=1 // pred_check
      _
    $region3: #{cal_scale_opt_attention.2} parent=1 // pred_check_branch
      %15 = sbr.rel (0) target = $region5
    $region4: #{cal_scale_opt_attention.2} parent=1 // pred_region
      %s17 = ssub.s32 1280, 1280
      %18 = vsyncadd [#allocation3], %s17
      %s19 = sshll.u32 [#allocation2], 4
      %s20 = int_to_ptr.vmem [resolvable:$true] %s19
      %25 = dma.hbm_to_vmem [thread:$0]  %s0, 1280, %s20, [#allocation3], 128, 128, 8
    $region5: #{cal_scale_opt_attention.2} parent=1 // pred_fallthru
      _
    // Predicated region
    $region6: #{cal_scale_opt_attention.2} parent=1 // pred_check
      _
    $region7: #{cal_scale_opt_attention.2} parent=1 // pred_check_branch
      %27 = sbr.rel (0) target = $region9
    $region8: #{cal_scale_opt_attention.2} parent=1 // pred_region
      %s29 = ssub.s32 2048, 2048
      %30 = vsyncadd [#allocation5], %s29
      %s31 = sshll.u32 [#allocation4], 4
      %s32 = int_to_ptr.vmem [resolvable:$true] %s31
      %37 = dma.hbm_to_vmem [thread:$0]  %s1, 2048, %s32, [#allocation5], 256, 256, 16
    $region9: #{cal_scale_opt_attention.2} parent=1 // pred_fallthru
      _
    // Predicated region
    $region10: #{cal_scale_opt_attention.2} parent=1 // pred_check
      _
    $region11: #{cal_scale_opt_attention.2} parent=1 // pred_check_branch
      %39 = sbr.rel (0) target = $region13
    $region12: #{cal_scale_opt_attention.2} parent=1 // pred_region
      _
    $region13: #{cal_scale_opt_attention.2} parent=1 // pred_fallthru
      _
    // Predicated region
    $region14: #{cal_scale_opt_attention.2} parent=1 // pred_check
      _
    $region15: #{cal_scale_opt_attention.2} parent=1 // pred_check_branch
      %41 = sbr.rel (0) target = $region17
    $region16: #{cal_scale_opt_attention.2} parent=1 // pred_region
      %42 = dma.done [#allocation3], 1280
    $region17: #{cal_scale_opt_attention.2} parent=1 // pred_fallthru
      _
    // Predicated region
    $region18: #{cal_scale_opt_attention.2} parent=1 // pred_check
      _
    $region19: #{cal_scale_opt_attention.2} parent=1 // pred_check_branch
      %44 = sbr.rel (0) target = $region21
    $region20: #{cal_scale_opt_attention.2} parent=1 // pred_region
      %45 = dma.done [#allocation5], 2048
    $region21: #{cal_scale_opt_attention.2} parent=1 // pred_fallthru
      _
    %v46 = vld [vmem:[#allocation2] sm:$0xff]
    %v47 = vld [vmem:[#allocation2 + $0x8] sm:$0xff]
    %v48 = vld [vmem:[#allocation2 + $0x10] sm:$0xff]
    %v49 = vld [vmem:[#allocation2 + $0x18] sm:$0xff]
    %v50 = vld [vmem:[#allocation2 + $0x20] sm:$0xff]
    %v51 = vld [vmem:[#allocation2 + $0x28] sm:$0xff]
    %v52 = vld [vmem:[#allocation2 + $0x30] sm:$0xff]
    %v53 = vld [vmem:[#allocation2 + $0x38] sm:$0xff]
    %v54 = vld [vmem:[#allocation2 + $0x40] sm:$0xff]
    %v55 = vld [vmem:[#allocation2 + $0x48] sm:$0xff]
    %v56 = vand.u32 2147483647, %v46
    %v57 = vand.u32 2147483647, %v47
    %v58 = vand.u32 2147483647, %v48
    %v59 = vand.u32 2147483647, %v49
    %v60 = vand.u32 2147483647, %v50
    %v61 = vand.u32 2147483647, %v51
    %v62 = vand.u32 2147483647, %v52
    %v63 = vand.u32 2147483647, %v53
    %v64 = vand.u32 2147483647, %v54
    %v65 = vand.u32 2147483647, %v55
    %vm66 = vcmask 523264
    %v67 = vsel %vm66, %v56, -inf
    %68 = vmax.xlane.f32.xlu0 %v67
    %v69 = vpop.xlane.xlu0 %68
    %v70 = vsel %vm66, %v57, -inf
    %71 = vmax.xlane.f32.xlu0 %v70
    %v72 = vpop.xlane.xlu0 %71
    %v73 = vsel %vm66, %v58, -inf
    %74 = vmax.xlane.f32.xlu0 %v73
    %v75 = vpop.xlane.xlu0 %74
    %v76 = vsel %vm66, %v59, -inf
    %77 = vmax.xlane.f32.xlu0 %v76
    %v78 = vpop.xlane.xlu0 %77
    %v79 = vsel %vm66, %v60, -inf
    %80 = vmax.xlane.f32.xlu0 %v79
    %v81 = vpop.xlane.xlu0 %80
    %v82 = vsel %vm66, %v61, -inf
    %83 = vmax.xlane.f32.xlu0 %v82
    %v84 = vpop.xlane.xlu0 %83
    %v85 = vsel %vm66, %v62, -inf
    %86 = vmax.xlane.f32.xlu0 %v85
    %v87 = vpop.xlane.xlu0 %86
    %v88 = vsel %vm66, %v63, -inf
    %89 = vmax.xlane.f32.xlu0 %v88
    %v90 = vpop.xlane.xlu0 %89
    %v91 = vsel %vm66, %v64, -inf
    %92 = vmax.xlane.f32.xlu0 %v91
    %v93 = vpop.xlane.xlu0 %92
    %v94 = vsel %vm66, %v65, -inf
    %95 = vmax.xlane.f32.xlu0 %v94
    %v96 = vpop.xlane.xlu0 %95
    %v97 = vmax.f32 %v69, 1e-05
    %v98 = vmax.f32 %v72, 1e-05
    %v99 = vmax.f32 %v75, 1e-05
    %v100 = vmax.f32 %v78, 1e-05
    %v101 = vmax.f32 %v81, 1e-05
    %v102 = vmax.f32 %v84, 1e-05
    %v103 = vmax.f32 %v87, 1e-05
    %v104 = vmax.f32 %v90, 1e-05
    %v105 = vmax.f32 %v93, 1e-05
    %v106 = vmax.f32 %v96, 1e-05
    %v107 = vrcp.pop 127.0
    %v108 = vmul.f32 %v97, %v107
    %v109 = vmul.f32 %v98, %v107
    %v110 = vmul.f32 %v99, %v107
    %v111 = vmul.f32 %v100, %v107
    %v112 = vmul.f32 %v101, %v107
    %v113 = vmul.f32 %v102, %v107
    %v114 = vmul.f32 %v103, %v107
    %v115 = vmul.f32 %v104, %v107
    %v116 = vmul.f32 %v105, %v107
    %v117 = vmul.f32 %v106, %v107
    %v118 = vrcp.pop %v108
    %v119 = vmul.f32 %v46, %v118
    %v120 = vrcp.pop %v109
    %v121 = vmul.f32 %v47, %v120
    %v122 = vrcp.pop %v110
    %v123 = vmul.f32 %v48, %v122
    %v124 = vrcp.pop %v111
    %v125 = vmul.f32 %v49, %v124
    %v126 = vrcp.pop %v112
    %v127 = vmul.f32 %v50, %v126
    %v128 = vrcp.pop %v113
    %v129 = vmul.f32 %v51, %v128
    %v130 = vrcp.pop %v114
    %v131 = vmul.f32 %v52, %v130
    %v132 = vrcp.pop %v115
    %v133 = vmul.f32 %v53, %v132
    %v134 = vrcp.pop %v116
    %v135 = vmul.f32 %v54, %v134
    %v136 = vrcp.pop %v117
    %v137 = vmul.f32 %v55, %v136
    %v138 = vround.ne.pseudo %v119
    %v139 = vround.ne.pseudo %v121
    %v140 = vround.ne.pseudo %v123
    %v141 = vround.ne.pseudo %v125
    %v142 = vround.ne.pseudo %v127
    %v143 = vround.ne.pseudo %v129
    %v144 = vround.ne.pseudo %v131
    %v145 = vround.ne.pseudo %v133
    %v146 = vround.ne.pseudo %v135
    %v147 = vround.ne.pseudo %v137
    %v148 = vmul.f32 %v138, %v108
    %v149 = vmul.f32 %v139, %v109
    %v150 = vmul.f32 %v140, %v110
    %v151 = vmul.f32 %v141, %v111
    %v152 = vmul.f32 %v142, %v112
    %v153 = vmul.f32 %v143, %v113
    %v154 = vmul.f32 %v144, %v114
    %v155 = vmul.f32 %v145, %v115
    %v156 = vmul.f32 %v146, %v116
    %v157 = vmul.f32 %v147, %v117
    %v158 = vld [vmem:[#allocation4] sm:$0xff]
    %v159 = vld [vmem:[#allocation4 + $0x8] sm:$0xff]
    %v160 = vld [vmem:[#allocation4 + $0x10] sm:$0xff]
    %v161 = vld [vmem:[#allocation4 + $0x18] sm:$0xff]
    %v162 = vld [vmem:[#allocation4 + $0x20] sm:$0xff]
    %v163 = vld [vmem:[#allocation4 + $0x28] sm:$0xff]
    %v164 = vld [vmem:[#allocation4 + $0x30] sm:$0xff]
    %v165 = vld [vmem:[#allocation4 + $0x38] sm:$0xff]
    %v166 = vld [vmem:[#allocation4 + $0x40] sm:$0xff]
    %v167 = vld [vmem:[#allocation4 + $0x48] sm:$0xff]
    %v168 = vld [vmem:[#allocation4 + $0x50] sm:$0xff]
    %v169 = vld [vmem:[#allocation4 + $0x58] sm:$0xff]
    %v170 = vld [vmem:[#allocation4 + $0x60] sm:$0xff]
    %v171 = vld [vmem:[#allocation4 + $0x68] sm:$0xff]
    %v172 = vld [vmem:[#allocation4 + $0x70] sm:$0xff]
    %v173 = vld [vmem:[#allocation4 + $0x78] sm:$0xff]
    %v174 = vld [vmem:[%s2] sm:$0x3]
    %v176 = vlaneseq
    %v177 = vshrl.u32 %v176, 7
    %v178 = vsub.s32 0, %v177
    %v179 = vrot.slane %v174, %v178
    %v180 = vlaneseq
    %v181 = vshrl.u32 %v180, 7
    %v182 = vsub.s32 1, %v181
    %v183 = vrot.slane %v174, %v182
    %v187 = vsel %vm66, %v148, 0
    %v190 = vsel %vm66, %v149, 0
    %v193 = vsel %vm66, %v150, 0
    %v196 = vsel %vm66, %v151, 0
    %v199 = vsel %vm66, %v152, 0
    %v202 = vsel %vm66, %v153, 0
    %v205 = vsel %vm66, %v154, 0
    %v208 = vsel %vm66, %v155, 0
    %v211 = vsel %vm66, %v156, 0
    %v214 = vsel %vm66, %v157, 0
    %216 = vmatprep.subr.mxu0 %v159
    %217 = vmatpush1.msra.mxu0 %v158
    %218 = vmatprep.subr.mxu0 %v161
    %219 = vmatpush1.msra.mxu0 %v160
    %220 = vmatprep.subr.mxu0 %v163
    %221 = vmatpush1.msra.mxu0 %v162
    %222 = vmatprep.subr.mxu0 %v165
    %223 = vmatpush1.msra.mxu0 %v164
    %224 = vmatprep.subr.mxu0 %v167
    %225 = vmatpush1.msra.mxu0 %v166
    %226 = vmatprep.subr.mxu0 %v169
    %227 = vmatpush1.msra.mxu0 %v168
    %228 = vmatprep.subr.mxu0 %v171
    %229 = vmatpush1.msra.mxu0 %v170
    %230 = vmatprep.subr.mxu0 %v173
    %231 = vmatpush1.msra.mxu0 %v172
    %232 = vmatprep.subr.mxu0 0.0
    %233 = vmatpush1.msra.mxu0 0.0
    %234 = vmatprep.subr.mxu0 0.0
    %235 = vmatpush1.msra.mxu0 0.0
    %236 = vmatprep.subr.mxu0 0.0
    %237 = vmatpush1.msra.mxu0 0.0
    %238 = vmatprep.subr.mxu0 0.0
    %239 = vmatpush1.msra.mxu0 0.0
    %240 = vmatprep.subr.mxu0 0.0
    %241 = vmatpush1.msra.mxu0 0.0
    %242 = vmatprep.subr.mxu0 0.0
    %243 = vmatpush1.msra.mxu0 0.0
    %244 = vmatprep.subr.mxu0 0.0
    %245 = vmatpush1.msra.mxu0 0.0
    %246 = vmatprep.subr.mxu0 0.0
    %247 = vmatpush1.msra.mxu0 0.0
    %248 = vmatprep.subr.mxu0 0.0
    %249 = vmatpush1.msra.mxu0 0.0
    %250 = vmatprep.subr.mxu0 0.0
    %251 = vmatpush1.msra.mxu0 0.0
    %252 = vmatprep.subr.mxu0 0.0
    %253 = vmatpush1.msra.mxu0 0.0
    %254 = vmatprep.subr.mxu0 0.0
    %255 = vmatpush1.msra.mxu0 0.0
    %256 = vmatprep.subr.mxu0 0.0
    %257 = vmatpush1.msra.mxu0 0.0
    %258 = vmatprep.subr.mxu0 0.0
    %259 = vmatpush1.msra.mxu0 0.0
    %260 = vmatprep.subr.mxu0 0.0
    %261 = vmatpush1.msra.mxu0 0.0
    %262 = vmatprep.subr.mxu0 0.0
    %263 = vmatpush1.msra.mxu0 0.0
    %264 = vmatprep.subr.mxu0 0.0
    %265 = vmatpush1.msra.mxu0 0.0
    %266 = vmatprep.subr.mxu0 0.0
    %267 = vmatpush1.msra.mxu0 0.0
    %268 = vmatprep.subr.mxu0 0.0
    %269 = vmatpush1.msra.mxu0 0.0
    %270 = vmatprep.subr.mxu0 0.0
    %271 = vmatpush1.msra.mxu0 0.0
    %272 = vmatprep.subr.mxu0 0.0
    %273 = vmatpush1.msra.mxu0 0.0
    %274 = vmatprep.subr.mxu0 0.0
    %275 = vmatpush1.msra.mxu0 0.0
    %276 = vmatprep.subr.mxu0 0.0
    %277 = vmatpush1.msra.mxu0 0.0
    %278 = vmatprep.subr.mxu0 0.0
    %279 = vmatpush1.msra.mxu0 0.0
    %280 = vmatprep.mubr.f32.mxu0 0.0
    %281 = vmatmul.mubr.f32.gmra.mrb[0].mxu0 %v187
    %v282 = vpop.f32.mrb[0].mxu0
    %v283 = vadd.f32 %v179, %v282
    %v284 = vpop.f32.mrb[0].mxu0
    %v285 = vadd.f32 %v183, %v284
    %286 = vmatprep.mubr.f32.mxu0 0.0
    %287 = vmatmul.mubr.f32.gmra.mrb[0].mxu0 %v190
    %v288 = vpop.f32.mrb[0].mxu0
    %v289 = vadd.f32 %v179, %v288
    %v290 = vpop.f32.mrb[0].mxu0
    %v291 = vadd.f32 %v183, %v290
    %292 = vmatprep.mubr.f32.mxu0 0.0
    %293 = vmatmul.mubr.f32.gmra.mrb[0].mxu0 %v193
    %v294 = vpop.f32.mrb[0].mxu0
    %v295 = vadd.f32 %v179, %v294
    %v296 = vpop.f32.mrb[0].mxu0
    %v297 = vadd.f32 %v183, %v296
    %298 = vmatprep.mubr.f32.mxu0 0.0
    %299 = vmatmul.mubr.f32.gmra.mrb[0].mxu0 %v196
    %v300 = vpop.f32.mrb[0].mxu0
    %v301 = vadd.f32 %v179, %v300
    %v302 = vpop.f32.mrb[0].mxu0
    %v303 = vadd.f32 %v183, %v302
    %304 = vmatprep.mubr.f32.mxu0 0.0
    %305 = vmatmul.mubr.f32.gmra.mrb[0].mxu0 %v199
    %v306 = vpop.f32.mrb[0].mxu0
    %v307 = vadd.f32 %v179, %v306
    %v308 = vpop.f32.mrb[0].mxu0
    %v309 = vadd.f32 %v183, %v308
    %310 = vmatprep.mubr.f32.mxu0 0.0
    %311 = vmatmul.mubr.f32.gmra.mrb[0].mxu0 %v202
    %v312 = vpop.f32.mrb[0].mxu0
    %v313 = vadd.f32 %v179, %v312
    %v314 = vpop.f32.mrb[0].mxu0
    %v315 = vadd.f32 %v183, %v314
    %316 = vmatprep.mubr.f32.mxu0 0.0
    %317 = vmatmul.mubr.f32.gmra.mrb[0].mxu0 %v205
    %v318 = vpop.f32.mrb[0].mxu0
    %v319 = vadd.f32 %v179, %v318
    %v320 = vpop.f32.mrb[0].mxu0
    %v321 = vadd.f32 %v183, %v320
    %322 = vmatprep.mubr.f32.mxu0 0.0
    %323 = vmatmul.mubr.f32.gmra.mrb[0].mxu0 %v208
    %v324 = vpop.f32.mrb[0].mxu0
    %v325 = vadd.f32 %v179, %v324
    %v326 = vpop.f32.mrb[0].mxu0
    %v327 = vadd.f32 %v183, %v326
    %328 = vmatprep.mubr.f32.mxu0 0.0
    %329 = vmatmul.mubr.f32.gmra.mrb[0].mxu0 %v211
    %v330 = vpop.f32.mrb[0].mxu0
    %v331 = vadd.f32 %v179, %v330
    %v332 = vpop.f32.mrb[0].mxu0
    %v333 = vadd.f32 %v183, %v332
    %334 = vmatprep.mubr.f32.mxu0 0.0
    %335 = vmatmul.mubr.f32.gmra.mrb[0].mxu0 %v214
    %v336 = vpop.f32.mrb[0].mxu0
    %v337 = vadd.f32 %v179, %v336
    %v338 = vpop.f32.mrb[0].mxu0
    %v339 = vadd.f32 %v183, %v338
    %340 = vdwg.mxu0
    %341 = vst.msk [vmem:[%s3] sm:$0xff] %vm66, %v283
    %342 = vst.msk [vmem:[%s3 + $0x8] sm:$0xff] %vm66, %v289
    %343 = vst.msk [vmem:[%s3 + $0x10] sm:$0xff] %vm66, %v295
    %344 = vst.msk [vmem:[%s3 + $0x18] sm:$0xff] %vm66, %v301
    %345 = vst.msk [vmem:[%s3 + $0x20] sm:$0xff] %vm66, %v307
    %346 = vst.msk [vmem:[%s3 + $0x28] sm:$0xff] %vm66, %v313
    %347 = vst.msk [vmem:[%s3 + $0x30] sm:$0xff] %vm66, %v319
    %348 = vst.msk [vmem:[%s3 + $0x38] sm:$0xff] %vm66, %v325
    %349 = vst.msk [vmem:[%s3 + $0x40] sm:$0xff] %vm66, %v331
    %350 = vst.msk [vmem:[%s3 + $0x48] sm:$0xff] %vm66, %v337
    %361 = vrot.lane.b32.xlu0 %v283, 64
    %v362 = vpop.permute.xlu0 %361
    %363 = vrot.lane.b32.xlu0 %v289, 64
    %v364 = vpop.permute.xlu0 %363
    %365 = vrot.lane.b32.xlu0 %v295, 64
    %v366 = vpop.permute.xlu0 %365
    %367 = vrot.lane.b32.xlu0 %v301, 64
    %v368 = vpop.permute.xlu0 %367
    %369 = vrot.lane.b32.xlu0 %v307, 64
    %v370 = vpop.permute.xlu0 %369
    %371 = vrot.lane.b32.xlu0 %v313, 64
    %v372 = vpop.permute.xlu0 %371
    %373 = vrot.lane.b32.xlu0 %v319, 64
    %v374 = vpop.permute.xlu0 %373
    %375 = vrot.lane.b32.xlu0 %v325, 64
    %v376 = vpop.permute.xlu0 %375
    %377 = vrot.lane.b32.xlu0 %v331, 64
    %v378 = vpop.permute.xlu0 %377
    %379 = vrot.lane.b32.xlu0 %v337, 64
    %v380 = vpop.permute.xlu0 %379
    %391 = vst.msk [vmem:[%s4] sm:$0xff] %vm66, %v362
    %392 = vst.msk [vmem:[%s4 + $0x8] sm:$0xff] %vm66, %v364
    %393 = vst.msk [vmem:[%s4 + $0x10] sm:$0xff] %vm66, %v366
    %394 = vst.msk [vmem:[%s4 + $0x18] sm:$0xff] %vm66, %v368
    %395 = vst.msk [vmem:[%s4 + $0x20] sm:$0xff] %vm66, %v370
    %396 = vst.msk [vmem:[%s4 + $0x28] sm:$0xff] %vm66, %v372
    %397 = vst.msk [vmem:[%s4 + $0x30] sm:$0xff] %vm66, %v374
    %398 = vst.msk [vmem:[%s4 + $0x38] sm:$0xff] %vm66, %v376
    %399 = vst.msk [vmem:[%s4 + $0x40] sm:$0xff] %vm66, %v378
    %400 = vst.msk [vmem:[%s4 + $0x48] sm:$0xff] %vm66, %v380
    %401 = vst.msk [vmem:[%s5] sm:$0xff] %vm66, %v285
    %402 = vst.msk [vmem:[%s5 + $0x8] sm:$0xff] %vm66, %v291
    %403 = vst.msk [vmem:[%s5 + $0x10] sm:$0xff] %vm66, %v297
    %404 = vst.msk [vmem:[%s5 + $0x18] sm:$0xff] %vm66, %v303
    %405 = vst.msk [vmem:[%s5 + $0x20] sm:$0xff] %vm66, %v309
    %406 = vst.msk [vmem:[%s5 + $0x28] sm:$0xff] %vm66, %v315
    %407 = vst.msk [vmem:[%s5 + $0x30] sm:$0xff] %vm66, %v321
    %408 = vst.msk [vmem:[%s5 + $0x38] sm:$0xff] %vm66, %v327
    %409 = vst.msk [vmem:[%s5 + $0x40] sm:$0xff] %vm66, %v333
    %410 = vst.msk [vmem:[%s5 + $0x48] sm:$0xff] %vm66, %v339
    %vm411 = vcmask 130048
    %v412 = vsel %vm411, %v283, 0
    %v414 = vsel %vm411, %v289, 0
    %v416 = vsel %vm411, %v295, 0
    %v418 = vsel %vm411, %v301, 0
    %v420 = vsel %vm411, %v307, 0
    %v422 = vsel %vm411, %v362, 0
    %v424 = vsel %vm411, %v364, 0
    %v426 = vsel %vm411, %v366, 0
    %v428 = vsel %vm411, %v368, 0
    %v430 = vsel %vm411, %v370, 0
    %432 = vmatprep.subr.mxu0 0.0
    %433 = vmatpush1.xpose.msra.mxu0 %v422
    %434 = vmatprep.subr.mxu0 0.0
    %435 = vmatpush1.xpose.msra.mxu0 %v424
    %436 = vmatprep.subr.mxu0 0.0
    %437 = vmatpush1.xpose.msra.mxu0 %v426
    %438 = vmatprep.subr.mxu0 0.0
    %439 = vmatpush1.xpose.msra.mxu0 %v428
    %440 = vmatprep.subr.mxu0 0.0
    %441 = vmatpush1.xpose.msra.mxu0 %v430
    %442 = vmatprep.subr.mxu0 0.0
    %443 = vmatpush1.xpose.msra.mxu0 0.0
    %444 = vmatprep.subr.mxu0 0.0
    %445 = vmatpush1.xpose.msra.mxu0 0.0
    %446 = vmatprep.subr.mxu0 0.0
    %447 = vmatpush1.xpose.msra.mxu0 0.0
    %448 = vmatprep.subr.mxu0 0.0
    %449 = vmatpush1.xpose.msra.mxu0 0.0
    %450 = vmatprep.subr.mxu0 0.0
    %451 = vmatpush1.xpose.msra.mxu0 0.0
    %452 = vmatprep.subr.mxu0 0.0
    %453 = vmatpush1.xpose.msra.mxu0 0.0
    %454 = vmatprep.subr.mxu0 0.0
    %455 = vmatpush1.xpose.msra.mxu0 0.0
    %456 = vmatprep.subr.mxu0 0.0
    %457 = vmatpush1.xpose.msra.mxu0 0.0
    %458 = vmatprep.subr.mxu0 0.0
    %459 = vmatpush1.xpose.msra.mxu0 0.0
    %460 = vmatprep.subr.mxu0 0.0
    %461 = vmatpush1.xpose.msra.mxu0 0.0
    %462 = vmatprep.subr.mxu0 0.0
    %463 = vmatpush1.xpose.msra.mxu0 0.0
    %464 = vmatprep.subr.mxu0 0.0
    %465 = vmatpush1.xpose.msra.mxu0 0.0
    %466 = vmatprep.subr.mxu0 0.0
    %467 = vmatpush1.xpose.msra.mxu0 0.0
    %468 = vmatprep.subr.mxu0 0.0
    %469 = vmatpush1.xpose.msra.mxu0 0.0
    %470 = vmatprep.subr.mxu0 0.0
    %471 = vmatpush1.xpose.msra.mxu0 0.0
    %472 = vmatprep.subr.mxu0 0.0
    %473 = vmatpush1.xpose.msra.mxu0 0.0
    %474 = vmatprep.subr.mxu0 0.0
    %475 = vmatpush1.xpose.msra.mxu0 0.0
    %476 = vmatprep.subr.mxu0 0.0
    %477 = vmatpush1.xpose.msra.mxu0 0.0
    %478 = vmatprep.subr.mxu0 0.0
    %479 = vmatpush1.xpose.msra.mxu0 0.0
    %480 = vmatprep.subr.mxu0 0.0
    %481 = vmatpush1.xpose.msra.mxu0 0.0
    %482 = vmatprep.subr.mxu0 0.0
    %483 = vmatpush1.xpose.msra.mxu0 0.0
    %484 = vmatprep.subr.mxu0 0.0
    %485 = vmatpush1.xpose.msra.mxu0 0.0
    %486 = vmatprep.subr.mxu0 0.0
    %487 = vmatpush1.xpose.msra.mxu0 0.0
    %488 = vmatprep.subr.mxu0 0.0
    %489 = vmatpush1.xpose.msra.mxu0 0.0
    %490 = vmatprep.subr.mxu0 0.0
    %491 = vmatpush1.xpose.msra.mxu0 0.0
    %492 = vmatprep.subr.mxu0 0.0
    %493 = vmatpush1.xpose.msra.mxu0 0.0
    %494 = vmatprep.subr.mxu0 0.0
    %495 = vmatpush1.xpose.msra.mxu0 0.0
    %496 = vmatprep.mubr.f32.mxu0 0.0
    %497 = vmatmul.mubr.f32.gmra.mrb[0].mxu0 %v412
    %v498 = vpop.f32.mrb[0].mxu0
    %v499 = vadd.f32 0.0, %v498
    %v500 = vpop.f32.mrb[0].mxu0
    %501 = vmatprep.mubr.f32.mxu0 0.0
    %502 = vmatmul.mubr.f32.gmra.mrb[0].mxu0 %v414
    %v503 = vpop.f32.mrb[0].mxu0
    %v504 = vadd.f32 0.0, %v503
    %v505 = vpop.f32.mrb[0].mxu0
    %506 = vmatprep.mubr.f32.mxu0 0.0
    %507 = vmatmul.mubr.f32.gmra.mrb[0].mxu0 %v416
    %v508 = vpop.f32.mrb[0].mxu0
    %v509 = vadd.f32 0.0, %v508
    %v510 = vpop.f32.mrb[0].mxu0
    %511 = vmatprep.mubr.f32.mxu0 0.0
    %512 = vmatmul.mubr.f32.gmra.mrb[0].mxu0 %v418
    %v513 = vpop.f32.mrb[0].mxu0
    %v514 = vadd.f32 0.0, %v513
    %v515 = vpop.f32.mrb[0].mxu0
    %516 = vmatprep.mubr.f32.mxu0 0.0
    %517 = vmatmul.mubr.f32.gmra.mrb[0].mxu0 %v420
    %v518 = vpop.f32.mrb[0].mxu0
    %v519 = vadd.f32 0.0, %v518
    %v520 = vpop.f32.mrb[0].mxu0
    %521 = vdwg.mxu0
    %vm522 = vcmask 326656
    %v523 = vsel %vm522, %v499, -inf
    %524 = vmax.xlane.f32.xlu0 %v523
    %v525 = vpop.xlane.xlu0 %524
    %v526 = vsel %vm522, %v504, -inf
    %527 = vmax.xlane.f32.xlu0 %v526
    %v528 = vpop.xlane.xlu0 %527
    %v529 = vsel %vm522, %v509, -inf
    %530 = vmax.xlane.f32.xlu0 %v529
    %v531 = vpop.xlane.xlu0 %530
    %v532 = vsel %vm522, %v514, -inf
    %533 = vmax.xlane.f32.xlu0 %v532
    %v534 = vpop.xlane.xlu0 %533
    %v535 = vsel %vm522, %v519, -inf
    %536 = vmax.xlane.f32.xlu0 %v535
    %v537 = vpop.xlane.xlu0 %536
    %v538 = vsub.f32 %v499, %v525
    %v539 = vsub.f32 %v504, %v528
    %v540 = vsub.f32 %v509, %v531
    %v541 = vsub.f32 %v514, %v534
    %v542 = vsub.f32 %v519, %v537
    %v543 = vmul.f32 %v538, 1.442695
    %v544 = vpow.pop %v543
    %v545 = vmul.f32 %v539, 1.442695
    %v546 = vpow.pop %v545
    %v547 = vmul.f32 %v540, 1.442695
    %v548 = vpow.pop %v547
    %v549 = vmul.f32 %v541, 1.442695
    %v550 = vpow.pop %v549
    %v551 = vmul.f32 %v542, 1.442695
    %v552 = vpow.pop %v551
    %v553 = vsel %vm522, %v544, 0.0
    %554 = vadd.xlane.f32.xlu0 %v553
    %v555 = vpop.xlane.xlu0 %554
    %v556 = vsel %vm522, %v546, 0.0
    %557 = vadd.xlane.f32.xlu0 %v556
    %v558 = vpop.xlane.xlu0 %557
    %v559 = vsel %vm522, %v548, 0.0
    %560 = vadd.xlane.f32.xlu0 %v559
    %v561 = vpop.xlane.xlu0 %560
    %v562 = vsel %vm522, %v550, 0.0
    %563 = vadd.xlane.f32.xlu0 %v562
    %v564 = vpop.xlane.xlu0 %563
    %v565 = vsel %vm522, %v552, 0.0
    %566 = vadd.xlane.f32.xlu0 %v565
    %v567 = vpop.xlane.xlu0 %566
    %v568 = vrcp.pop %v555
    %v569 = vrcp.pop %v558
    %v570 = vrcp.pop %v561
    %v571 = vrcp.pop %v564
    %v572 = vrcp.pop %v567
    %v573 = vmul.f32 %v544, %v568
    %v574 = vmul.f32 %v546, %v569
    %v575 = vmul.f32 %v548, %v570
    %v576 = vmul.f32 %v550, %v571
    %v577 = vmul.f32 %v552, %v572
    %v578 = vsel %vm522, %v573, 0.0
    %v579 = vsel %vm522, %v574, 0.0
    %v580 = vadd.f32 %v578, %v579
    %v581 = vsel %vm522, %v575, 0.0
    %v582 = vadd.f32 %v580, %v581
    %v583 = vsel %vm522, %v576, 0.0
    %v584 = vadd.f32 %v582, %v583
    %v585 = vsel %vm522, %v577, 0.0
    %v586 = vadd.f32 %v584, %v585
    %v587 = vrot.slane %v586, 4
    %v588 = vadd.f32 %v586, %v587
    %v589 = vrot.slane %v588, 2
    %v590 = vadd.f32 %v588, %v589
    %v591 = vrot.slane %v590, 1
    %v592 = vadd.f32 %v590, %v591
    %v593 = vadd.f32 %v592, 0.0
    %594 = vrot.lane.b32.xlu0 %v283, 112
    %v595 = vpop.permute.xlu0 %594
    %596 = vrot.lane.b32.xlu0 %v289, 112
    %v597 = vpop.permute.xlu0 %596
    %598 = vrot.lane.b32.xlu0 %v295, 112
    %v599 = vpop.permute.xlu0 %598
    %600 = vrot.lane.b32.xlu0 %v301, 112
    %v601 = vpop.permute.xlu0 %600
    %602 = vrot.lane.b32.xlu0 %v307, 112
    %v603 = vpop.permute.xlu0 %602
    %604 = vrot.lane.b32.xlu0 %v283, 48
    %v605 = vpop.permute.xlu0 %604
    %606 = vrot.lane.b32.xlu0 %v289, 48
    %v607 = vpop.permute.xlu0 %606
    %608 = vrot.lane.b32.xlu0 %v295, 48
    %v609 = vpop.permute.xlu0 %608
    %610 = vrot.lane.b32.xlu0 %v301, 48
    %v611 = vpop.permute.xlu0 %610
    %612 = vrot.lane.b32.xlu0 %v307, 48
    %v613 = vpop.permute.xlu0 %612
    %v614 = vsel %vm411, %v595, 0
    %v616 = vsel %vm411, %v597, 0
    %v618 = vsel %vm411, %v599, 0
    %v620 = vsel %vm411, %v601, 0
    %v622 = vsel %vm411, %v603, 0
    %v624 = vsel %vm411, %v605, 0
    %v626 = vsel %vm411, %v607, 0
    %v628 = vsel %vm411, %v609, 0
    %v630 = vsel %vm411, %v611, 0
    %v632 = vsel %vm411, %v613, 0
    %634 = vmatprep.subr.mxu0 0.0
    %635 = vmatpush1.xpose.msra.mxu0 %v624
    %636 = vmatprep.subr.mxu0 0.0
    %637 = vmatpush1.xpose.msra.mxu0 %v626
    %638 = vmatprep.subr.mxu0 0.0
    %639 = vmatpush1.xpose.msra.mxu0 %v628
    %640 = vmatprep.subr.mxu0 0.0
    %641 = vmatpush1.xpose.msra.mxu0 %v630
    %642 = vmatprep.subr.mxu0 0.0
    %643 = vmatpush1.xpose.msra.mxu0 %v632
    %644 = vmatprep.subr.mxu0 0.0
    %645 = vmatpush1.xpose.msra.mxu0 0.0
    %646 = vmatprep.subr.mxu0 0.0
    %647 = vmatpush1.xpose.msra.mxu0 0.0
    %648 = vmatprep.subr.mxu0 0.0
    %649 = vmatpush1.xpose.msra.mxu0 0.0
    %650 = vmatprep.subr.mxu0 0.0
    %651 = vmatpush1.xpose.msra.mxu0 0.0
    %652 = vmatprep.subr.mxu0 0.0
    %653 = vmatpush1.xpose.msra.mxu0 0.0
    %654 = vmatprep.subr.mxu0 0.0
    %655 = vmatpush1.xpose.msra.mxu0 0.0
    %656 = vmatprep.subr.mxu0 0.0
    %657 = vmatpush1.xpose.msra.mxu0 0.0
    %658 = vmatprep.subr.mxu0 0.0
    %659 = vmatpush1.xpose.msra.mxu0 0.0
    %660 = vmatprep.subr.mxu0 0.0
    %661 = vmatpush1.xpose.msra.mxu0 0.0
    %662 = vmatprep.subr.mxu0 0.0
    %663 = vmatpush1.xpose.msra.mxu0 0.0
    %664 = vmatprep.subr.mxu0 0.0
    %665 = vmatpush1.xpose.msra.mxu0 0.0
    %666 = vmatprep.subr.mxu0 0.0
    %667 = vmatpush1.xpose.msra.mxu0 0.0
    %668 = vmatprep.subr.mxu0 0.0
    %669 = vmatpush1.xpose.msra.mxu0 0.0
    %670 = vmatprep.subr.mxu0 0.0
    %671 = vmatpush1.xpose.msra.mxu0 0.0
    %672 = vmatprep.subr.mxu0 0.0
    %673 = vmatpush1.xpose.msra.mxu0 0.0
    %674 = vmatprep.subr.mxu0 0.0
    %675 = vmatpush1.xpose.msra.mxu0 0.0
    %676 = vmatprep.subr.mxu0 0.0
    %677 = vmatpush1.xpose.msra.mxu0 0.0
    %678 = vmatprep.subr.mxu0 0.0
    %679 = vmatpush1.xpose.msra.mxu0 0.0
    %680 = vmatprep.subr.mxu0 0.0
    %681 = vmatpush1.xpose.msra.mxu0 0.0
    %682 = vmatprep.subr.mxu0 0.0
    %683 = vmatpush1.xpose.msra.mxu0 0.0
    %684 = vmatprep.subr.mxu0 0.0
    %685 = vmatpush1.xpose.msra.mxu0 0.0
    %686 = vmatprep.subr.mxu0 0.0
    %687 = vmatpush1.xpose.msra.mxu0 0.0
    %688 = vmatprep.subr.mxu0 0.0
    %689 = vmatpush1.xpose.msra.mxu0 0.0
    %690 = vmatprep.subr.mxu0 0.0
    %691 = vmatpush1.xpose.msra.mxu0 0.0
    %692 = vmatprep.subr.mxu0 0.0
    %693 = vmatpush1.xpose.msra.mxu0 0.0
    %694 = vmatprep.subr.mxu0 0.0
    %695 = vmatpush1.xpose.msra.mxu0 0.0
    %696 = vmatprep.subr.mxu0 0.0
    %697 = vmatpush1.xpose.msra.mxu0 0.0
    %698 = vmatprep.mubr.f32.mxu0 0.0
    %699 = vmatmul.mubr.f32.gmra.mrb[0].mxu0 %v614
    %v700 = vpop.f32.mrb[0].mxu0
    %v701 = vadd.f32 0.0, %v700
    %v702 = vpop.f32.mrb[0].mxu0
    %703 = vmatprep.mubr.f32.mxu0 0.0
    %704 = vmatmul.mubr.f32.gmra.mrb[0].mxu0 %v616
    %v705 = vpop.f32.mrb[0].mxu0
    %v706 = vadd.f32 0.0, %v705
    %v707 = vpop.f32.mrb[0].mxu0
    %708 = vmatprep.mubr.f32.mxu0 0.0
    %709 = vmatmul.mubr.f32.gmra.mrb[0].mxu0 %v618
    %v710 = vpop.f32.mrb[0].mxu0
    %v711 = vadd.f32 0.0, %v710
    %v712 = vpop.f32.mrb[0].mxu0
    %713 = vmatprep.mubr.f32.mxu0 0.0
    %714 = vmatmul.mubr.f32.gmra.mrb[0].mxu0 %v620
    %v715 = vpop.f32.mrb[0].mxu0
    %v716 = vadd.f32 0.0, %v715
    %v717 = vpop.f32.mrb[0].mxu0
    %718 = vmatprep.mubr.f32.mxu0 0.0
    %719 = vmatmul.mubr.f32.gmra.mrb[0].mxu0 %v622
    %v720 = vpop.f32.mrb[0].mxu0
    %v721 = vadd.f32 0.0, %v720
    %v722 = vpop.f32.mrb[0].mxu0
    %723 = vdwg.mxu0
    %v724 = vsel %vm522, %v701, -inf
    %725 = vmax.xlane.f32.xlu0 %v724
    %v726 = vpop.xlane.xlu0 %725
    %v727 = vsel %vm522, %v706, -inf
    %728 = vmax.xlane.f32.xlu0 %v727
    %v729 = vpop.xlane.xlu0 %728
    %v730 = vsel %vm522, %v711, -inf
    %731 = vmax.xlane.f32.xlu0 %v730
    %v732 = vpop.xlane.xlu0 %731
    %v733 = vsel %vm522, %v716, -inf
    %734 = vmax.xlane.f32.xlu0 %v733
    %v735 = vpop.xlane.xlu0 %734
    %v736 = vsel %vm522, %v721, -inf
    %737 = vmax.xlane.f32.xlu0 %v736
    %v738 = vpop.xlane.xlu0 %737
    %v739 = vsub.f32 %v701, %v726
    %v740 = vsub.f32 %v706, %v729
    %v741 = vsub.f32 %v711, %v732
    %v742 = vsub.f32 %v716, %v735
    %v743 = vsub.f32 %v721, %v738
    %v744 = vmul.f32 %v739, 1.442695
    %v745 = vpow.pop %v744
    %v746 = vmul.f32 %v740, 1.442695
    %v747 = vpow.pop %v746
    %v748 = vmul.f32 %v741, 1.442695
    %v749 = vpow.pop %v748
    %v750 = vmul.f32 %v742, 1.442695
    %v751 = vpow.pop %v750
    %v752 = vmul.f32 %v743, 1.442695
    %v753 = vpow.pop %v752
    %v754 = vsel %vm522, %v745, 0.0
    %755 = vadd.xlane.f32.xlu0 %v754
    %v756 = vpop.xlane.xlu0 %755
    %v757 = vsel %vm522, %v747, 0.0
    %758 = vadd.xlane.f32.xlu0 %v757
    %v759 = vpop.xlane.xlu0 %758
    %v760 = vsel %vm522, %v749, 0.0
    %761 = vadd.xlane.f32.xlu0 %v760
    %v762 = vpop.xlane.xlu0 %761
    %v763 = vsel %vm522, %v751, 0.0
    %764 = vadd.xlane.f32.xlu0 %v763
    %v765 = vpop.xlane.xlu0 %764
    %v766 = vsel %vm522, %v753, 0.0
    %767 = vadd.xlane.f32.xlu0 %v766
    %v768 = vpop.xlane.xlu0 %767
    %v769 = vrcp.pop %v756
    %v770 = vrcp.pop %v759
    %v771 = vrcp.pop %v762
    %v772 = vrcp.pop %v765
    %v773 = vrcp.pop %v768
    %v774 = vmul.f32 %v745, %v769
    %v775 = vmul.f32 %v747, %v770
    %v776 = vmul.f32 %v749, %v771
    %v777 = vmul.f32 %v751, %v772
    %v778 = vmul.f32 %v753, %v773
    %v779 = vsel %vm522, %v774, 0.0
    %v780 = vsel %vm522, %v775, 0.0
    %v781 = vadd.f32 %v779, %v780
    %v782 = vsel %vm522, %v776, 0.0
    %v783 = vadd.f32 %v781, %v782
    %v784 = vsel %vm522, %v777, 0.0
    %v785 = vadd.f32 %v783, %v784
    %v786 = vsel %vm522, %v778, 0.0
    %v787 = vadd.f32 %v785, %v786
    %v788 = vrot.slane %v787, 4
    %v789 = vadd.f32 %v787, %v788
    %v790 = vrot.slane %v789, 2
    %v791 = vadd.f32 %v789, %v790
    %v792 = vrot.slane %v791, 1
    %v793 = vadd.f32 %v791, %v792
    %v794 = vadd.f32 %v593, %v793
    %795 = vrot.lane.b32.xlu0 %v283, 96
    %v796 = vpop.permute.xlu0 %795
    %797 = vrot.lane.b32.xlu0 %v289, 96
    %v798 = vpop.permute.xlu0 %797
    %799 = vrot.lane.b32.xlu0 %v295, 96
    %v800 = vpop.permute.xlu0 %799
    %801 = vrot.lane.b32.xlu0 %v301, 96
    %v802 = vpop.permute.xlu0 %801
    %803 = vrot.lane.b32.xlu0 %v307, 96
    %v804 = vpop.permute.xlu0 %803
    %805 = vrot.lane.b32.xlu0 %v283, 32
    %v806 = vpop.permute.xlu0 %805
    %807 = vrot.lane.b32.xlu0 %v289, 32
    %v808 = vpop.permute.xlu0 %807
    %809 = vrot.lane.b32.xlu0 %v295, 32
    %v810 = vpop.permute.xlu0 %809
    %811 = vrot.lane.b32.xlu0 %v301, 32
    %v812 = vpop.permute.xlu0 %811
    %813 = vrot.lane.b32.xlu0 %v307, 32
    %v814 = vpop.permute.xlu0 %813
    %v815 = vsel %vm411, %v796, 0
    %v817 = vsel %vm411, %v798, 0
    %v819 = vsel %vm411, %v800, 0
    %v821 = vsel %vm411, %v802, 0
    %v823 = vsel %vm411, %v804, 0
    %v825 = vsel %vm411, %v806, 0
    %v827 = vsel %vm411, %v808, 0
    %v829 = vsel %vm411, %v810, 0
    %v831 = vsel %vm411, %v812, 0
    %v833 = vsel %vm411, %v814, 0
    %835 = vmatprep.subr.mxu0 0.0
    %836 = vmatpush1.xpose.msra.mxu0 %v825
    %837 = vmatprep.subr.mxu0 0.0
    %838 = vmatpush1.xpose.msra.mxu0 %v827
    %839 = vmatprep.subr.mxu0 0.0
    %840 = vmatpush1.xpose.msra.mxu0 %v829
    %841 = vmatprep.subr.mxu0 0.0
    %842 = vmatpush1.xpose.msra.mxu0 %v831
    %843 = vmatprep.subr.mxu0 0.0
    %844 = vmatpush1.xpose.msra.mxu0 %v833
    %845 = vmatprep.subr.mxu0 0.0
    %846 = vmatpush1.xpose.msra.mxu0 0.0
    %847 = vmatprep.subr.mxu0 0.0
    %848 = vmatpush1.xpose.msra.mxu0 0.0
    %849 = vmatprep.subr.mxu0 0.0
    %850 = vmatpush1.xpose.msra.mxu0 0.0
    %851 = vmatprep.subr.mxu0 0.0
    %852 = vmatpush1.xpose.msra.mxu0 0.0
    %853 = vmatprep.subr.mxu0 0.0
    %854 = vmatpush1.xpose.msra.mxu0 0.0
    %855 = vmatprep.subr.mxu0 0.0
    %856 = vmatpush1.xpose.msra.mxu0 0.0
    %857 = vmatprep.subr.mxu0 0.0
    %858 = vmatpush1.xpose.msra.mxu0 0.0
    %859 = vmatprep.subr.mxu0 0.0
    %860 = vmatpush1.xpose.msra.mxu0 0.0
    %861 = vmatprep.subr.mxu0 0.0
    %862 = vmatpush1.xpose.msra.mxu0 0.0
    %863 = vmatprep.subr.mxu0 0.0
    %864 = vmatpush1.xpose.msra.mxu0 0.0
    %865 = vmatprep.subr.mxu0 0.0
    %866 = vmatpush1.xpose.msra.mxu0 0.0
    %867 = vmatprep.subr.mxu0 0.0
    %868 = vmatpush1.xpose.msra.mxu0 0.0
    %869 = vmatprep.subr.mxu0 0.0
    %870 = vmatpush1.xpose.msra.mxu0 0.0
    %871 = vmatprep.subr.mxu0 0.0
    %872 = vmatpush1.xpose.msra.mxu0 0.0
    %873 = vmatprep.subr.mxu0 0.0
    %874 = vmatpush1.xpose.msra.mxu0 0.0
    %875 = vmatprep.subr.mxu0 0.0
    %876 = vmatpush1.xpose.msra.mxu0 0.0
    %877 = vmatprep.subr.mxu0 0.0
    %878 = vmatpush1.xpose.msra.mxu0 0.0
    %879 = vmatprep.subr.mxu0 0.0
    %880 = vmatpush1.xpose.msra.mxu0 0.0
    %881 = vmatprep.subr.mxu0 0.0
    %882 = vmatpush1.xpose.msra.mxu0 0.0
    %883 = vmatprep.subr.mxu0 0.0
    %884 = vmatpush1.xpose.msra.mxu0 0.0
    %885 = vmatprep.subr.mxu0 0.0
    %886 = vmatpush1.xpose.msra.mxu0 0.0
    %887 = vmatprep.subr.mxu0 0.0
    %888 = vmatpush1.xpose.msra.mxu0 0.0
    %889 = vmatprep.subr.mxu0 0.0
    %890 = vmatpush1.xpose.msra.mxu0 0.0
    %891 = vmatprep.subr.mxu0 0.0
    %892 = vmatpush1.xpose.msra.mxu0 0.0
    %893 = vmatprep.subr.mxu0 0.0
    %894 = vmatpush1.xpose.msra.mxu0 0.0
    %895 = vmatprep.subr.mxu0 0.0
    %896 = vmatpush1.xpose.msra.mxu0 0.0
    %897 = vmatprep.subr.mxu0 0.0
    %898 = vmatpush1.xpose.msra.mxu0 0.0
    %899 = vmatprep.mubr.f32.mxu0 0.0
    %900 = vmatmul.mubr.f32.gmra.mrb[0].mxu0 %v815
    %v901 = vpop.f32.mrb[0].mxu0
    %v902 = vadd.f32 0.0, %v901
    %v903 = vpop.f32.mrb[0].mxu0
    %904 = vmatprep.mubr.f32.mxu0 0.0
    %905 = vmatmul.mubr.f32.gmra.mrb[0].mxu0 %v817
    %v906 = vpop.f32.mrb[0].mxu0
    %v907 = vadd.f32 0.0, %v906
    %v908 = vpop.f32.mrb[0].mxu0
    %909 = vmatprep.mubr.f32.mxu0 0.0
    %910 = vmatmul.mubr.f32.gmra.mrb[0].mxu0 %v819
    %v911 = vpop.f32.mrb[0].mxu0
    %v912 = vadd.f32 0.0, %v911
    %v913 = vpop.f32.mrb[0].mxu0
    %914 = vmatprep.mubr.f32.mxu0 0.0
    %915 = vmatmul.mubr.f32.gmra.mrb[0].mxu0 %v821
    %v916 = vpop.f32.mrb[0].mxu0
    %v917 = vadd.f32 0.0, %v916
    %v918 = vpop.f32.mrb[0].mxu0
    %919 = vmatprep.mubr.f32.mxu0 0.0
    %920 = vmatmul.mubr.f32.gmra.mrb[0].mxu0 %v823
    %v921 = vpop.f32.mrb[0].mxu0
    %v922 = vadd.f32 0.0, %v921
    %v923 = vpop.f32.mrb[0].mxu0
    %924 = vdwg.mxu0
    %v925 = vsel %vm522, %v902, -inf
    %926 = vmax.xlane.f32.xlu0 %v925
    %v927 = vpop.xlane.xlu0 %926
    %v928 = vsel %vm522, %v907, -inf
    %929 = vmax.xlane.f32.xlu0 %v928
    %v930 = vpop.xlane.xlu0 %929
    %v931 = vsel %vm522, %v912, -inf
    %932 = vmax.xlane.f32.xlu0 %v931
    %v933 = vpop.xlane.xlu0 %932
    %v934 = vsel %vm522, %v917, -inf
    %935 = vmax.xlane.f32.xlu0 %v934
    %v936 = vpop.xlane.xlu0 %935
    %v937 = vsel %vm522, %v922, -inf
    %938 = vmax.xlane.f32.xlu0 %v937
    %v939 = vpop.xlane.xlu0 %938
    %v940 = vsub.f32 %v902, %v927
    %v941 = vsub.f32 %v907, %v930
    %v942 = vsub.f32 %v912, %v933
    %v943 = vsub.f32 %v917, %v936
    %v944 = vsub.f32 %v922, %v939
    %v945 = vmul.f32 %v940, 1.442695
    %v946 = vpow.pop %v945
    %v947 = vmul.f32 %v941, 1.442695
    %v948 = vpow.pop %v947
    %v949 = vmul.f32 %v942, 1.442695
    %v950 = vpow.pop %v949
    %v951 = vmul.f32 %v943, 1.442695
    %v952 = vpow.pop %v951
    %v953 = vmul.f32 %v944, 1.442695
    %v954 = vpow.pop %v953
    %v955 = vsel %vm522, %v946, 0.0
    %956 = vadd.xlane.f32.xlu0 %v955
    %v957 = vpop.xlane.xlu0 %956
    %v958 = vsel %vm522, %v948, 0.0
    %959 = vadd.xlane.f32.xlu0 %v958
    %v960 = vpop.xlane.xlu0 %959
    %v961 = vsel %vm522, %v950, 0.0
    %962 = vadd.xlane.f32.xlu0 %v961
    %v963 = vpop.xlane.xlu0 %962
    %v964 = vsel %vm522, %v952, 0.0
    %965 = vadd.xlane.f32.xlu0 %v964
    %v966 = vpop.xlane.xlu0 %965
    %v967 = vsel %vm522, %v954, 0.0
    %968 = vadd.xlane.f32.xlu0 %v967
    %v969 = vpop.xlane.xlu0 %968
    %v970 = vrcp.pop %v957
    %v971 = vrcp.pop %v960
    %v972 = vrcp.pop %v963
    %v973 = vrcp.pop %v966
    %v974 = vrcp.pop %v969
    %v975 = vmul.f32 %v946, %v970
    %v976 = vmul.f32 %v948, %v971
    %v977 = vmul.f32 %v950, %v972
    %v978 = vmul.f32 %v952, %v973
    %v979 = vmul.f32 %v954, %v974
    %v980 = vsel %vm522, %v975, 0.0
    %v981 = vsel %vm522, %v976, 0.0
    %v982 = vadd.f32 %v980, %v981
    %v983 = vsel %vm522, %v977, 0.0
    %v984 = vadd.f32 %v982, %v983
    %v985 = vsel %vm522, %v978, 0.0
    %v986 = vadd.f32 %v984, %v985
    %v987 = vsel %vm522, %v979, 0.0
    %v988 = vadd.f32 %v986, %v987
    %v989 = vrot.slane %v988, 4
    %v990 = vadd.f32 %v988, %v989
    %v991 = vrot.slane %v990, 2
    %v992 = vadd.f32 %v990, %v991
    %v993 = vrot.slane %v992, 1
    %v994 = vadd.f32 %v992, %v993
    %v995 = vadd.f32 %v794, %v994
    %996 = vrot.lane.b32.xlu0 %v283, 80
    %v997 = vpop.permute.xlu0 %996
    %998 = vrot.lane.b32.xlu0 %v289, 80
    %v999 = vpop.permute.xlu0 %998
    %1000 = vrot.lane.b32.xlu0 %v295, 80
    %v1001 = vpop.permute.xlu0 %1000
    %1002 = vrot.lane.b32.xlu0 %v301, 80
    %v1003 = vpop.permute.xlu0 %1002
    %1004 = vrot.lane.b32.xlu0 %v307, 80
    %v1005 = vpop.permute.xlu0 %1004
    %1006 = vrot.lane.b32.xlu0 %v283, 16
    %v1007 = vpop.permute.xlu0 %1006
    %1008 = vrot.lane.b32.xlu0 %v289, 16
    %v1009 = vpop.permute.xlu0 %1008
    %1010 = vrot.lane.b32.xlu0 %v295, 16
    %v1011 = vpop.permute.xlu0 %1010
    %1012 = vrot.lane.b32.xlu0 %v301, 16
    %v1013 = vpop.permute.xlu0 %1012
    %1014 = vrot.lane.b32.xlu0 %v307, 16
    %v1015 = vpop.permute.xlu0 %1014
    %v1016 = vsel %vm411, %v997, 0
    %v1018 = vsel %vm411, %v999, 0
    %v1020 = vsel %vm411, %v1001, 0
    %v1022 = vsel %vm411, %v1003, 0
    %v1024 = vsel %vm411, %v1005, 0
    %v1026 = vsel %vm411, %v1007, 0
    %v1028 = vsel %vm411, %v1009, 0
    %v1030 = vsel %vm411, %v1011, 0
    %v1032 = vsel %vm411, %v1013, 0
    %v1034 = vsel %vm411, %v1015, 0
    %1036 = vmatprep.subr.mxu0 0.0
    %1037 = vmatpush1.xpose.msra.mxu0 %v1026
    %1038 = vmatprep.subr.mxu0 0.0
    %1039 = vmatpush1.xpose.msra.mxu0 %v1028
    %1040 = vmatprep.subr.mxu0 0.0
    %1041 = vmatpush1.xpose.msra.mxu0 %v1030
    %1042 = vmatprep.subr.mxu0 0.0
    %1043 = vmatpush1.xpose.msra.mxu0 %v1032
    %1044 = vmatprep.subr.mxu0 0.0
    %1045 = vmatpush1.xpose.msra.mxu0 %v1034
    %1046 = vmatprep.subr.mxu0 0.0
    %1047 = vmatpush1.xpose.msra.mxu0 0.0
    %1048 = vmatprep.subr.mxu0 0.0
    %1049 = vmatpush1.xpose.msra.mxu0 0.0
    %1050 = vmatprep.subr.mxu0 0.0
    %1051 = vmatpush1.xpose.msra.mxu0 0.0
    %1052 = vmatprep.subr.mxu0 0.0
    %1053 = vmatpush1.xpose.msra.mxu0 0.0
    %1054 = vmatprep.subr.mxu0 0.0
    %1055 = vmatpush1.xpose.msra.mxu0 0.0
    %1056 = vmatprep.subr.mxu0 0.0
    %1057 = vmatpush1.xpose.msra.mxu0 0.0
    %1058 = vmatprep.subr.mxu0 0.0
    %1059 = vmatpush1.xpose.msra.mxu0 0.0
    %1060 = vmatprep.subr.mxu0 0.0
    %1061 = vmatpush1.xpose.msra.mxu0 0.0
    %1062 = vmatprep.subr.mxu0 0.0
    %1063 = vmatpush1.xpose.msra.mxu0 0.0
    %1064 = vmatprep.subr.mxu0 0.0
    %1065 = vmatpush1.xpose.msra.mxu0 0.0
    %1066 = vmatprep.subr.mxu0 0.0
    %1067 = vmatpush1.xpose.msra.mxu0 0.0
    %1068 = vmatprep.subr.mxu0 0.0
    %1069 = vmatpush1.xpose.msra.mxu0 0.0
    %1070 = vmatprep.subr.mxu0 0.0
    %1071 = vmatpush1.xpose.msra.mxu0 0.0
    %1072 = vmatprep.subr.mxu0 0.0
    %1073 = vmatpush1.xpose.msra.mxu0 0.0
    %1074 = vmatprep.subr.mxu0 0.0
    %1075 = vmatpush1.xpose.msra.mxu0 0.0
    %1076 = vmatprep.subr.mxu0 0.0
    %1077 = vmatpush1.xpose.msra.mxu0 0.0
    %1078 = vmatprep.subr.mxu0 0.0
    %1079 = vmatpush1.xpose.msra.mxu0 0.0
    %1080 = vmatprep.subr.mxu0 0.0
    %1081 = vmatpush1.xpose.msra.mxu0 0.0
    %1082 = vmatprep.subr.mxu0 0.0
    %1083 = vmatpush1.xpose.msra.mxu0 0.0
    %1084 = vmatprep.subr.mxu0 0.0
    %1085 = vmatpush1.xpose.msra.mxu0 0.0
    %1086 = vmatprep.subr.mxu0 0.0
    %1087 = vmatpush1.xpose.msra.mxu0 0.0
    %1088 = vmatprep.subr.mxu0 0.0
    %1089 = vmatpush1.xpose.msra.mxu0 0.0
    %1090 = vmatprep.subr.mxu0 0.0
    %1091 = vmatpush1.xpose.msra.mxu0 0.0
    %1092 = vmatprep.subr.mxu0 0.0
    %1093 = vmatpush1.xpose.msra.mxu0 0.0
    %1094 = vmatprep.subr.mxu0 0.0
    %1095 = vmatpush1.xpose.msra.mxu0 0.0
    %1096 = vmatprep.subr.mxu0 0.0
    %1097 = vmatpush1.xpose.msra.mxu0 0.0
    %1098 = vmatprep.subr.mxu0 0.0
    %1099 = vmatpush1.xpose.msra.mxu0 0.0
    %1100 = vmatprep.mubr.f32.mxu0 0.0
    %1101 = vmatmul.mubr.f32.gmra.mrb[0].mxu0 %v1016
    %v1102 = vpop.f32.mrb[0].mxu0
    %v1103 = vadd.f32 0.0, %v1102
    %v1104 = vpop.f32.mrb[0].mxu0
    %1105 = vmatprep.mubr.f32.mxu0 0.0
    %1106 = vmatmul.mubr.f32.gmra.mrb[0].mxu0 %v1018
    %v1107 = vpop.f32.mrb[0].mxu0
    %v1108 = vadd.f32 0.0, %v1107
    %v1109 = vpop.f32.mrb[0].mxu0
    %1110 = vmatprep.mubr.f32.mxu0 0.0
    %1111 = vmatmul.mubr.f32.gmra.mrb[0].mxu0 %v1020
    %v1112 = vpop.f32.mrb[0].mxu0
    %v1113 = vadd.f32 0.0, %v1112
    %v1114 = vpop.f32.mrb[0].mxu0
    %1115 = vmatprep.mubr.f32.mxu0 0.0
    %1116 = vmatmul.mubr.f32.gmra.mrb[0].mxu0 %v1022
    %v1117 = vpop.f32.mrb[0].mxu0
    %v1118 = vadd.f32 0.0, %v1117
    %v1119 = vpop.f32.mrb[0].mxu0
    %1120 = vmatprep.mubr.f32.mxu0 0.0
    %1121 = vmatmul.mubr.f32.gmra.mrb[0].mxu0 %v1024
    %v1122 = vpop.f32.mrb[0].mxu0
    %v1123 = vadd.f32 0.0, %v1122
    %v1124 = vpop.f32.mrb[0].mxu0
    %1125 = vdwg.mxu0
    %v1126 = vsel %vm522, %v1103, -inf
    %1127 = vmax.xlane.f32.xlu0 %v1126
    %v1128 = vpop.xlane.xlu0 %1127
    %v1129 = vsel %vm522, %v1108, -inf
    %1130 = vmax.xlane.f32.xlu0 %v1129
    %v1131 = vpop.xlane.xlu0 %1130
    %v1132 = vsel %vm522, %v1113, -inf
    %1133 = vmax.xlane.f32.xlu0 %v1132
    %v1134 = vpop.xlane.xlu0 %1133
    %v1135 = vsel %vm522, %v1118, -inf
    %1136 = vmax.xlane.f32.xlu0 %v1135
    %v1137 = vpop.xlane.xlu0 %1136
    %v1138 = vsel %vm522, %v1123, -inf
    %1139 = vmax.xlane.f32.xlu0 %v1138
    %v1140 = vpop.xlane.xlu0 %1139
    %v1141 = vsub.f32 %v1103, %v1128
    %v1142 = vsub.f32 %v1108, %v1131
    %v1143 = vsub.f32 %v1113, %v1134
    %v1144 = vsub.f32 %v1118, %v1137
    %v1145 = vsub.f32 %v1123, %v1140
    %v1146 = vmul.f32 %v1141, 1.442695
    %v1147 = vpow.pop %v1146
    %v1148 = vmul.f32 %v1142, 1.442695
    %v1149 = vpow.pop %v1148
    %v1150 = vmul.f32 %v1143, 1.442695
    %v1151 = vpow.pop %v1150
    %v1152 = vmul.f32 %v1144, 1.442695
    %v1153 = vpow.pop %v1152
    %v1154 = vmul.f32 %v1145, 1.442695
    %v1155 = vpow.pop %v1154
    %v1156 = vsel %vm522, %v1147, 0.0
    %1157 = vadd.xlane.f32.xlu0 %v1156
    %v1158 = vpop.xlane.xlu0 %1157
    %v1159 = vsel %vm522, %v1149, 0.0
    %1160 = vadd.xlane.f32.xlu0 %v1159
    %v1161 = vpop.xlane.xlu0 %1160
    %v1162 = vsel %vm522, %v1151, 0.0
    %1163 = vadd.xlane.f32.xlu0 %v1162
    %v1164 = vpop.xlane.xlu0 %1163
    %v1165 = vsel %vm522, %v1153, 0.0
    %1166 = vadd.xlane.f32.xlu0 %v1165
    %v1167 = vpop.xlane.xlu0 %1166
    %v1168 = vsel %vm522, %v1155, 0.0
    %1169 = vadd.xlane.f32.xlu0 %v1168
    %v1170 = vpop.xlane.xlu0 %1169
    %v1171 = vrcp.pop %v1158
    %v1172 = vrcp.pop %v1161
    %v1173 = vrcp.pop %v1164
    %v1174 = vrcp.pop %v1167
    %v1175 = vrcp.pop %v1170
    %v1176 = vmul.f32 %v1147, %v1171
    %v1177 = vmul.f32 %v1149, %v1172
    %v1178 = vmul.f32 %v1151, %v1173
    %v1179 = vmul.f32 %v1153, %v1174
    %v1180 = vmul.f32 %v1155, %v1175
    %v1181 = vsel %vm522, %v1176, 0.0
    %v1182 = vsel %vm522, %v1177, 0.0
    %v1183 = vadd.f32 %v1181, %v1182
    %v1184 = vsel %vm522, %v1178, 0.0
    %v1185 = vadd.f32 %v1183, %v1184
    %v1186 = vsel %vm522, %v1179, 0.0
    %v1187 = vadd.f32 %v1185, %v1186
    %v1188 = vsel %vm522, %v1180, 0.0
    %v1189 = vadd.f32 %v1187, %v1188
    %v1190 = vrot.slane %v1189, 4
    %v1191 = vadd.f32 %v1189, %v1190
    %v1192 = vrot.slane %v1191, 2
    %v1193 = vadd.f32 %v1191, %v1192
    %v1194 = vrot.slane %v1193, 1
    %v1195 = vadd.f32 %v1193, %v1194
    %v1196 = vadd.f32 %v995, %v1195
    %v1197 = vsel %vm411, %v313, 0
    %v1199 = vsel %vm411, %v319, 0
    %v1201 = vsel %vm411, %v325, 0
    %v1203 = vsel %vm411, %v331, 0
    %v1205 = vsel %vm411, %v337, 0
    %v1207 = vsel %vm411, %v372, 0
    %v1209 = vsel %vm411, %v374, 0
    %v1211 = vsel %vm411, %v376, 0
    %v1213 = vsel %vm411, %v378, 0
    %v1215 = vsel %vm411, %v380, 0
    %1217 = vmatprep.subr.mxu0 0.0
    %1218 = vmatpush1.xpose.msra.mxu0 %v1207
    %1219 = vmatprep.subr.mxu0 0.0
    %1220 = vmatpush1.xpose.msra.mxu0 %v1209
    %1221 = vmatprep.subr.mxu0 0.0
    %1222 = vmatpush1.xpose.msra.mxu0 %v1211
    %1223 = vmatprep.subr.mxu0 0.0
    %1224 = vmatpush1.xpose.msra.mxu0 %v1213
    %1225 = vmatprep.subr.mxu0 0.0
    %1226 = vmatpush1.xpose.msra.mxu0 %v1215
    %1227 = vmatprep.subr.mxu0 0.0
    %1228 = vmatpush1.xpose.msra.mxu0 0.0
    %1229 = vmatprep.subr.mxu0 0.0
    %1230 = vmatpush1.xpose.msra.mxu0 0.0
    %1231 = vmatprep.subr.mxu0 0.0
    %1232 = vmatpush1.xpose.msra.mxu0 0.0
    %1233 = vmatprep.subr.mxu0 0.0
    %1234 = vmatpush1.xpose.msra.mxu0 0.0
    %1235 = vmatprep.subr.mxu0 0.0
    %1236 = vmatpush1.xpose.msra.mxu0 0.0
    %1237 = vmatprep.subr.mxu0 0.0
    %1238 = vmatpush1.xpose.msra.mxu0 0.0
    %1239 = vmatprep.subr.mxu0 0.0
    %1240 = vmatpush1.xpose.msra.mxu0 0.0
    %1241 = vmatprep.subr.mxu0 0.0
    %1242 = vmatpush1.xpose.msra.mxu0 0.0
    %1243 = vmatprep.subr.mxu0 0.0
    %1244 = vmatpush1.xpose.msra.mxu0 0.0
    %1245 = vmatprep.subr.mxu0 0.0
    %1246 = vmatpush1.xpose.msra.mxu0 0.0
    %1247 = vmatprep.subr.mxu0 0.0
    %1248 = vmatpush1.xpose.msra.mxu0 0.0
    %1249 = vmatprep.subr.mxu0 0.0
    %1250 = vmatpush1.xpose.msra.mxu0 0.0
    %1251 = vmatprep.subr.mxu0 0.0
    %1252 = vmatpush1.xpose.msra.mxu0 0.0
    %1253 = vmatprep.subr.mxu0 0.0
    %1254 = vmatpush1.xpose.msra.mxu0 0.0
    %1255 = vmatprep.subr.mxu0 0.0
    %1256 = vmatpush1.xpose.msra.mxu0 0.0
    %1257 = vmatprep.subr.mxu0 0.0
    %1258 = vmatpush1.xpose.msra.mxu0 0.0
    %1259 = vmatprep.subr.mxu0 0.0
    %1260 = vmatpush1.xpose.msra.mxu0 0.0
    %1261 = vmatprep.subr.mxu0 0.0
    %1262 = vmatpush1.xpose.msra.mxu0 0.0
    %1263 = vmatprep.subr.mxu0 0.0
    %1264 = vmatpush1.xpose.msra.mxu0 0.0
    %1265 = vmatprep.subr.mxu0 0.0
    %1266 = vmatpush1.xpose.msra.mxu0 0.0
    %1267 = vmatprep.subr.mxu0 0.0
    %1268 = vmatpush1.xpose.msra.mxu0 0.0
    %1269 = vmatprep.subr.mxu0 0.0
    %1270 = vmatpush1.xpose.msra.mxu0 0.0
    %1271 = vmatprep.subr.mxu0 0.0
    %1272 = vmatpush1.xpose.msra.mxu0 0.0
    %1273 = vmatprep.subr.mxu0 0.0
    %1274 = vmatpush1.xpose.msra.mxu0 0.0
    %1275 = vmatprep.subr.mxu0 0.0
    %1276 = vmatpush1.xpose.msra.mxu0 0.0
    %1277 = vmatprep.subr.mxu0 0.0
    %1278 = vmatpush1.xpose.msra.mxu0 0.0
    %1279 = vmatprep.subr.mxu0 0.0
    %1280 = vmatpush1.xpose.msra.mxu0 0.0
    %1281 = vmatprep.mubr.f32.mxu0 0.0
    %1282 = vmatmul.mubr.f32.gmra.mrb[0].mxu0 %v1197
    %v1283 = vpop.f32.mrb[0].mxu0
    %v1284 = vadd.f32 0.0, %v1283
    %v1285 = vpop.f32.mrb[0].mxu0
    %1286 = vmatprep.mubr.f32.mxu0 0.0
    %1287 = vmatmul.mubr.f32.gmra.mrb[0].mxu0 %v1199
    %v1288 = vpop.f32.mrb[0].mxu0
    %v1289 = vadd.f32 0.0, %v1288
    %v1290 = vpop.f32.mrb[0].mxu0
    %1291 = vmatprep.mubr.f32.mxu0 0.0
    %1292 = vmatmul.mubr.f32.gmra.mrb[0].mxu0 %v1201
    %v1293 = vpop.f32.mrb[0].mxu0
    %v1294 = vadd.f32 0.0, %v1293
    %v1295 = vpop.f32.mrb[0].mxu0
    %1296 = vmatprep.mubr.f32.mxu0 0.0
    %1297 = vmatmul.mubr.f32.gmra.mrb[0].mxu0 %v1203
    %v1298 = vpop.f32.mrb[0].mxu0
    %v1299 = vadd.f32 0.0, %v1298
    %v1300 = vpop.f32.mrb[0].mxu0
    %1301 = vmatprep.mubr.f32.mxu0 0.0
    %1302 = vmatmul.mubr.f32.gmra.mrb[0].mxu0 %v1205
    %v1303 = vpop.f32.mrb[0].mxu0
    %v1304 = vadd.f32 0.0, %v1303
    %v1305 = vpop.f32.mrb[0].mxu0
    %1306 = vdwg.mxu0
    %v1307 = vsel %vm522, %v1284, -inf
    %1308 = vmax.xlane.f32.xlu0 %v1307
    %v1309 = vpop.xlane.xlu0 %1308
    %v1310 = vsel %vm522, %v1289, -inf
    %1311 = vmax.xlane.f32.xlu0 %v1310
    %v1312 = vpop.xlane.xlu0 %1311
    %v1313 = vsel %vm522, %v1294, -inf
    %1314 = vmax.xlane.f32.xlu0 %v1313
    %v1315 = vpop.xlane.xlu0 %1314
    %v1316 = vsel %vm522, %v1299, -inf
    %1317 = vmax.xlane.f32.xlu0 %v1316
    %v1318 = vpop.xlane.xlu0 %1317
    %v1319 = vsel %vm522, %v1304, -inf
    %1320 = vmax.xlane.f32.xlu0 %v1319
    %v1321 = vpop.xlane.xlu0 %1320
    %v1322 = vsub.f32 %v1284, %v1309
    %v1323 = vsub.f32 %v1289, %v1312
    %v1324 = vsub.f32 %v1294, %v1315
    %v1325 = vsub.f32 %v1299, %v1318
    %v1326 = vsub.f32 %v1304, %v1321
    %v1327 = vmul.f32 %v1322, 1.442695
    %v1328 = vpow.pop %v1327
    %v1329 = vmul.f32 %v1323, 1.442695
    %v1330 = vpow.pop %v1329
    %v1331 = vmul.f32 %v1324, 1.442695
    %v1332 = vpow.pop %v1331
    %v1333 = vmul.f32 %v1325, 1.442695
    %v1334 = vpow.pop %v1333
    %v1335 = vmul.f32 %v1326, 1.442695
    %v1336 = vpow.pop %v1335
    %v1337 = vsel %vm522, %v1328, 0.0
    %1338 = vadd.xlane.f32.xlu0 %v1337
    %v1339 = vpop.xlane.xlu0 %1338
    %v1340 = vsel %vm522, %v1330, 0.0
    %1341 = vadd.xlane.f32.xlu0 %v1340
    %v1342 = vpop.xlane.xlu0 %1341
    %v1343 = vsel %vm522, %v1332, 0.0
    %1344 = vadd.xlane.f32.xlu0 %v1343
    %v1345 = vpop.xlane.xlu0 %1344
    %v1346 = vsel %vm522, %v1334, 0.0
    %1347 = vadd.xlane.f32.xlu0 %v1346
    %v1348 = vpop.xlane.xlu0 %1347
    %v1349 = vsel %vm522, %v1336, 0.0
    %1350 = vadd.xlane.f32.xlu0 %v1349
    %v1351 = vpop.xlane.xlu0 %1350
    %v1352 = vrcp.pop %v1339
    %v1353 = vrcp.pop %v1342
    %v1354 = vrcp.pop %v1345
    %v1355 = vrcp.pop %v1348
    %v1356 = vrcp.pop %v1351
    %v1357 = vmul.f32 %v1328, %v1352
    %v1358 = vmul.f32 %v1330, %v1353
    %v1359 = vmul.f32 %v1332, %v1354
    %v1360 = vmul.f32 %v1334, %v1355
    %v1361 = vmul.f32 %v1336, %v1356
    %v1362 = vsel %vm522, %v1357, 0.0
    %v1363 = vsel %vm522, %v1358, 0.0
    %v1364 = vadd.f32 %v1362, %v1363
    %v1365 = vsel %vm522, %v1359, 0.0
    %v1366 = vadd.f32 %v1364, %v1365
    %v1367 = vsel %vm522, %v1360, 0.0
    %v1368 = vadd.f32 %v1366, %v1367
    %v1369 = vsel %vm522, %v1361, 0.0
    %v1370 = vadd.f32 %v1368, %v1369
    %v1371 = vrot.slane %v1370, 4
    %v1372 = vadd.f32 %v1370, %v1371
    %v1373 = vrot.slane %v1372, 2
    %v1374 = vadd.f32 %v1372, %v1373
    %v1375 = vrot.slane %v1374, 1
    %v1376 = vadd.f32 %v1374, %v1375
    %v1377 = vadd.f32 %v1196, %v1376
    %1378 = vrot.lane.b32.xlu0 %v313, 112
    %v1379 = vpop.permute.xlu0 %1378
    %1380 = vrot.lane.b32.xlu0 %v319, 112
    %v1381 = vpop.permute.xlu0 %1380
    %1382 = vrot.lane.b32.xlu0 %v325, 112
    %v1383 = vpop.permute.xlu0 %1382
    %1384 = vrot.lane.b32.xlu0 %v331, 112
    %v1385 = vpop.permute.xlu0 %1384
    %1386 = vrot.lane.b32.xlu0 %v337, 112
    %v1387 = vpop.permute.xlu0 %1386
    %1388 = vrot.lane.b32.xlu0 %v313, 48
    %v1389 = vpop.permute.xlu0 %1388
    %1390 = vrot.lane.b32.xlu0 %v319, 48
    %v1391 = vpop.permute.xlu0 %1390
    %1392 = vrot.lane.b32.xlu0 %v325, 48
    %v1393 = vpop.permute.xlu0 %1392
    %1394 = vrot.lane.b32.xlu0 %v331, 48
    %v1395 = vpop.permute.xlu0 %1394
    %1396 = vrot.lane.b32.xlu0 %v337, 48
    %v1397 = vpop.permute.xlu0 %1396
    %v1398 = vsel %vm411, %v1379, 0
    %v1400 = vsel %vm411, %v1381, 0
    %v1402 = vsel %vm411, %v1383, 0
    %v1404 = vsel %vm411, %v1385, 0
    %v1406 = vsel %vm411, %v1387, 0
    %v1408 = vsel %vm411, %v1389, 0
    %v1410 = vsel %vm411, %v1391, 0
    %v1412 = vsel %vm411, %v1393, 0
    %v1414 = vsel %vm411, %v1395, 0
    %v1416 = vsel %vm411, %v1397, 0
    %1418 = vmatprep.subr.mxu0 0.0
    %1419 = vmatpush1.xpose.msra.mxu0 %v1408
    %1420 = vmatprep.subr.mxu0 0.0
    %1421 = vmatpush1.xpose.msra.mxu0 %v1410
    %1422 = vmatprep.subr.mxu0 0.0
    %1423 = vmatpush1.xpose.msra.mxu0 %v1412
    %1424 = vmatprep.subr.mxu0 0.0
    %1425 = vmatpush1.xpose.msra.mxu0 %v1414
    %1426 = vmatprep.subr.mxu0 0.0
    %1427 = vmatpush1.xpose.msra.mxu0 %v1416
    %1428 = vmatprep.subr.mxu0 0.0
    %1429 = vmatpush1.xpose.msra.mxu0 0.0
    %1430 = vmatprep.subr.mxu0 0.0
    %1431 = vmatpush1.xpose.msra.mxu0 0.0
    %1432 = vmatprep.subr.mxu0 0.0
    %1433 = vmatpush1.xpose.msra.mxu0 0.0
    %1434 = vmatprep.subr.mxu0 0.0
    %1435 = vmatpush1.xpose.msra.mxu0 0.0
    %1436 = vmatprep.subr.mxu0 0.0
    %1437 = vmatpush1.xpose.msra.mxu0 0.0
    %1438 = vmatprep.subr.mxu0 0.0
    %1439 = vmatpush1.xpose.msra.mxu0 0.0
    %1440 = vmatprep.subr.mxu0 0.0
    %1441 = vmatpush1.xpose.msra.mxu0 0.0
    %1442 = vmatprep.subr.mxu0 0.0
    %1443 = vmatpush1.xpose.msra.mxu0 0.0
    %1444 = vmatprep.subr.mxu0 0.0
    %1445 = vmatpush1.xpose.msra.mxu0 0.0
    %1446 = vmatprep.subr.mxu0 0.0
    %1447 = vmatpush1.xpose.msra.mxu0 0.0
    %1448 = vmatprep.subr.mxu0 0.0
    %1449 = vmatpush1.xpose.msra.mxu0 0.0
    %1450 = vmatprep.subr.mxu0 0.0
    %1451 = vmatpush1.xpose.msra.mxu0 0.0
    %1452 = vmatprep.subr.mxu0 0.0
    %1453 = vmatpush1.xpose.msra.mxu0 0.0
    %1454 = vmatprep.subr.mxu0 0.0
    %1455 = vmatpush1.xpose.msra.mxu0 0.0
    %1456 = vmatprep.subr.mxu0 0.0
    %1457 = vmatpush1.xpose.msra.mxu0 0.0
    %1458 = vmatprep.subr.mxu0 0.0
    %1459 = vmatpush1.xpose.msra.mxu0 0.0
    %1460 = vmatprep.subr.mxu0 0.0
    %1461 = vmatpush1.xpose.msra.mxu0 0.0
    %1462 = vmatprep.subr.mxu0 0.0
    %1463 = vmatpush1.xpose.msra.mxu0 0.0
    %1464 = vmatprep.subr.mxu0 0.0
    %1465 = vmatpush1.xpose.msra.mxu0 0.0
    %1466 = vmatprep.subr.mxu0 0.0
    %1467 = vmatpush1.xpose.msra.mxu0 0.0
    %1468 = vmatprep.subr.mxu0 0.0
    %1469 = vmatpush1.xpose.msra.mxu0 0.0
    %1470 = vmatprep.subr.mxu0 0.0
    %1471 = vmatpush1.xpose.msra.mxu0 0.0
    %1472 = vmatprep.subr.mxu0 0.0
    %1473 = vmatpush1.xpose.msra.mxu0 0.0
    %1474 = vmatprep.subr.mxu0 0.0
    %1475 = vmatpush1.xpose.msra.mxu0 0.0
    %1476 = vmatprep.subr.mxu0 0.0
    %1477 = vmatpush1.xpose.msra.mxu0 0.0
    %1478 = vmatprep.subr.mxu0 0.0
    %1479 = vmatpush1.xpose.msra.mxu0 0.0
    %1480 = vmatprep.subr.mxu0 0.0
    %1481 = vmatpush1.xpose.msra.mxu0 0.0
    %1482 = vmatprep.mubr.f32.mxu0 0.0
    %1483 = vmatmul.mubr.f32.gmra.mrb[0].mxu0 %v1398
    %v1484 = vpop.f32.mrb[0].mxu0
    %v1485 = vadd.f32 0.0, %v1484
    %v1486 = vpop.f32.mrb[0].mxu0
    %1487 = vmatprep.mubr.f32.mxu0 0.0
    %1488 = vmatmul.mubr.f32.gmra.mrb[0].mxu0 %v1400
    %v1489 = vpop.f32.mrb[0].mxu0
    %v1490 = vadd.f32 0.0, %v1489
    %v1491 = vpop.f32.mrb[0].mxu0
    %1492 = vmatprep.mubr.f32.mxu0 0.0
    %1493 = vmatmul.mubr.f32.gmra.mrb[0].mxu0 %v1402
    %v1494 = vpop.f32.mrb[0].mxu0
    %v1495 = vadd.f32 0.0, %v1494
    %v1496 = vpop.f32.mrb[0].mxu0
    %1497 = vmatprep.mubr.f32.mxu0 0.0
    %1498 = vmatmul.mubr.f32.gmra.mrb[0].mxu0 %v1404
    %v1499 = vpop.f32.mrb[0].mxu0
    %v1500 = vadd.f32 0.0, %v1499
    %v1501 = vpop.f32.mrb[0].mxu0
    %1502 = vmatprep.mubr.f32.mxu0 0.0
    %1503 = vmatmul.mubr.f32.gmra.mrb[0].mxu0 %v1406
    %v1504 = vpop.f32.mrb[0].mxu0
    %v1505 = vadd.f32 0.0, %v1504
    %v1506 = vpop.f32.mrb[0].mxu0
    %1507 = vdwg.mxu0
    %v1508 = vsel %vm522, %v1485, -inf
    %1509 = vmax.xlane.f32.xlu0 %v1508
    %v1510 = vpop.xlane.xlu0 %1509
    %v1511 = vsel %vm522, %v1490, -inf
    %1512 = vmax.xlane.f32.xlu0 %v1511
    %v1513 = vpop.xlane.xlu0 %1512
    %v1514 = vsel %vm522, %v1495, -inf
    %1515 = vmax.xlane.f32.xlu0 %v1514
    %v1516 = vpop.xlane.xlu0 %1515
    %v1517 = vsel %vm522, %v1500, -inf
    %1518 = vmax.xlane.f32.xlu0 %v1517
    %v1519 = vpop.xlane.xlu0 %1518
    %v1520 = vsel %vm522, %v1505, -inf
    %1521 = vmax.xlane.f32.xlu0 %v1520
    %v1522 = vpop.xlane.xlu0 %1521
    %v1523 = vsub.f32 %v1485, %v1510
    %v1524 = vsub.f32 %v1490, %v1513
    %v1525 = vsub.f32 %v1495, %v1516
    %v1526 = vsub.f32 %v1500, %v1519
    %v1527 = vsub.f32 %v1505, %v1522
    %v1528 = vmul.f32 %v1523, 1.442695
    %v1529 = vpow.pop %v1528
    %v1530 = vmul.f32 %v1524, 1.442695
    %v1531 = vpow.pop %v1530
    %v1532 = vmul.f32 %v1525, 1.442695
    %v1533 = vpow.pop %v1532
    %v1534 = vmul.f32 %v1526, 1.442695
    %v1535 = vpow.pop %v1534
    %v1536 = vmul.f32 %v1527, 1.442695
    %v1537 = vpow.pop %v1536
    %v1538 = vsel %vm522, %v1529, 0.0
    %1539 = vadd.xlane.f32.xlu0 %v1538
    %v1540 = vpop.xlane.xlu0 %1539
    %v1541 = vsel %vm522, %v1531, 0.0
    %1542 = vadd.xlane.f32.xlu0 %v1541
    %v1543 = vpop.xlane.xlu0 %1542
    %v1544 = vsel %vm522, %v1533, 0.0
    %1545 = vadd.xlane.f32.xlu0 %v1544
    %v1546 = vpop.xlane.xlu0 %1545
    %v1547 = vsel %vm522, %v1535, 0.0
    %1548 = vadd.xlane.f32.xlu0 %v1547
    %v1549 = vpop.xlane.xlu0 %1548
    %v1550 = vsel %vm522, %v1537, 0.0
    %1551 = vadd.xlane.f32.xlu0 %v1550
    %v1552 = vpop.xlane.xlu0 %1551
    %v1553 = vrcp.pop %v1540
    %v1554 = vrcp.pop %v1543
    %v1555 = vrcp.pop %v1546
    %v1556 = vrcp.pop %v1549
    %v1557 = vrcp.pop %v1552
    %v1558 = vmul.f32 %v1529, %v1553
    %v1559 = vmul.f32 %v1531, %v1554
    %v1560 = vmul.f32 %v1533, %v1555
    %v1561 = vmul.f32 %v1535, %v1556
    %v1562 = vmul.f32 %v1537, %v1557
    %v1563 = vsel %vm522, %v1558, 0.0
    %v1564 = vsel %vm522, %v1559, 0.0
    %v1565 = vadd.f32 %v1563, %v1564
    %v1566 = vsel %vm522, %v1560, 0.0
    %v1567 = vadd.f32 %v1565, %v1566
    %v1568 = vsel %vm522, %v1561, 0.0
    %v1569 = vadd.f32 %v1567, %v1568
    %v1570 = vsel %vm522, %v1562, 0.0
    %v1571 = vadd.f32 %v1569, %v1570
    %v1572 = vrot.slane %v1571, 4
    %v1573 = vadd.f32 %v1571, %v1572
    %v1574 = vrot.slane %v1573, 2
    %v1575 = vadd.f32 %v1573, %v1574
    %v1576 = vrot.slane %v1575, 1
    %v1577 = vadd.f32 %v1575, %v1576
    %v1578 = vadd.f32 %v1377, %v1577
    %1579 = vrot.lane.b32.xlu0 %v313, 96
    %v1580 = vpop.permute.xlu0 %1579
    %1581 = vrot.lane.b32.xlu0 %v319, 96
    %v1582 = vpop.permute.xlu0 %1581
    %1583 = vrot.lane.b32.xlu0 %v325, 96
    %v1584 = vpop.permute.xlu0 %1583
    %1585 = vrot.lane.b32.xlu0 %v331, 96
    %v1586 = vpop.permute.xlu0 %1585
    %1587 = vrot.lane.b32.xlu0 %v337, 96
    %v1588 = vpop.permute.xlu0 %1587
    %1589 = vrot.lane.b32.xlu0 %v313, 32
    %v1590 = vpop.permute.xlu0 %1589
    %1591 = vrot.lane.b32.xlu0 %v319, 32
    %v1592 = vpop.permute.xlu0 %1591
    %1593 = vrot.lane.b32.xlu0 %v325, 32
    %v1594 = vpop.permute.xlu0 %1593
    %1595 = vrot.lane.b32.xlu0 %v331, 32
    %v1596 = vpop.permute.xlu0 %1595
    %1597 = vrot.lane.b32.xlu0 %v337, 32
    %v1598 = vpop.permute.xlu0 %1597
    %v1599 = vsel %vm411, %v1580, 0
    %v1601 = vsel %vm411, %v1582, 0
    %v1603 = vsel %vm411, %v1584, 0
    %v1605 = vsel %vm411, %v1586, 0
    %v1607 = vsel %vm411, %v1588, 0
    %v1609 = vsel %vm411, %v1590, 0
    %v1611 = vsel %vm411, %v1592, 0
    %v1613 = vsel %vm411, %v1594, 0
    %v1615 = vsel %vm411, %v1596, 0
    %v1617 = vsel %vm411, %v1598, 0
    %1619 = vmatprep.subr.mxu0 0.0
    %1620 = vmatpush1.xpose.msra.mxu0 %v1609
    %1621 = vmatprep.subr.mxu0 0.0
    %1622 = vmatpush1.xpose.msra.mxu0 %v1611
    %1623 = vmatprep.subr.mxu0 0.0
    %1624 = vmatpush1.xpose.msra.mxu0 %v1613
    %1625 = vmatprep.subr.mxu0 0.0
    %1626 = vmatpush1.xpose.msra.mxu0 %v1615
    %1627 = vmatprep.subr.mxu0 0.0
    %1628 = vmatpush1.xpose.msra.mxu0 %v1617
    %1629 = vmatprep.subr.mxu0 0.0
    %1630 = vmatpush1.xpose.msra.mxu0 0.0
    %1631 = vmatprep.subr.mxu0 0.0
    %1632 = vmatpush1.xpose.msra.mxu0 0.0
    %1633 = vmatprep.subr.mxu0 0.0
    %1634 = vmatpush1.xpose.msra.mxu0 0.0
    %1635 = vmatprep.subr.mxu0 0.0
    %1636 = vmatpush1.xpose.msra.mxu0 0.0
    %1637 = vmatprep.subr.mxu0 0.0
    %1638 = vmatpush1.xpose.msra.mxu0 0.0
    %1639 = vmatprep.subr.mxu0 0.0
    %1640 = vmatpush1.xpose.msra.mxu0 0.0
    %1641 = vmatprep.subr.mxu0 0.0
    %1642 = vmatpush1.xpose.msra.mxu0 0.0
    %1643 = vmatprep.subr.mxu0 0.0
    %1644 = vmatpush1.xpose.msra.mxu0 0.0
    %1645 = vmatprep.subr.mxu0 0.0
    %1646 = vmatpush1.xpose.msra.mxu0 0.0
    %1647 = vmatprep.subr.mxu0 0.0
    %1648 = vmatpush1.xpose.msra.mxu0 0.0
    %1649 = vmatprep.subr.mxu0 0.0
    %1650 = vmatpush1.xpose.msra.mxu0 0.0
    %1651 = vmatprep.subr.mxu0 0.0
    %1652 = vmatpush1.xpose.msra.mxu0 0.0
    %1653 = vmatprep.subr.mxu0 0.0
    %1654 = vmatpush1.xpose.msra.mxu0 0.0
    %1655 = vmatprep.subr.mxu0 0.0
    %1656 = vmatpush1.xpose.msra.mxu0 0.0
    %1657 = vmatprep.subr.mxu0 0.0
    %1658 = vmatpush1.xpose.msra.mxu0 0.0
    %1659 = vmatprep.subr.mxu0 0.0
    %1660 = vmatpush1.xpose.msra.mxu0 0.0
    %1661 = vmatprep.subr.mxu0 0.0
    %1662 = vmatpush1.xpose.msra.mxu0 0.0
    %1663 = vmatprep.subr.mxu0 0.0
    %1664 = vmatpush1.xpose.msra.mxu0 0.0
    %1665 = vmatprep.subr.mxu0 0.0
    %1666 = vmatpush1.xpose.msra.mxu0 0.0
    %1667 = vmatprep.subr.mxu0 0.0
    %1668 = vmatpush1.xpose.msra.mxu0 0.0
    %1669 = vmatprep.subr.mxu0 0.0
    %1670 = vmatpush1.xpose.msra.mxu0 0.0
    %1671 = vmatprep.subr.mxu0 0.0
    %1672 = vmatpush1.xpose.msra.mxu0 0.0
    %1673 = vmatprep.subr.mxu0 0.0
    %1674 = vmatpush1.xpose.msra.mxu0 0.0
    %1675 = vmatprep.subr.mxu0 0.0
    %1676 = vmatpush1.xpose.msra.mxu0 0.0
    %1677 = vmatprep.subr.mxu0 0.0
    %1678 = vmatpush1.xpose.msra.mxu0 0.0
    %1679 = vmatprep.subr.mxu0 0.0
    %1680 = vmatpush1.xpose.msra.mxu0 0.0
    %1681 = vmatprep.subr.mxu0 0.0
    %1682 = vmatpush1.xpose.msra.mxu0 0.0
    %1683 = vmatprep.mubr.f32.mxu0 0.0
    %1684 = vmatmul.mubr.f32.gmra.mrb[0].mxu0 %v1599
    %v1685 = vpop.f32.mrb[0].mxu0
    %v1686 = vadd.f32 0.0, %v1685
    %v1687 = vpop.f32.mrb[0].mxu0
    %1688 = vmatprep.mubr.f32.mxu0 0.0
    %1689 = vmatmul.mubr.f32.gmra.mrb[0].mxu0 %v1601
    %v1690 = vpop.f32.mrb[0].mxu0
    %v1691 = vadd.f32 0.0, %v1690
    %v1692 = vpop.f32.mrb[0].mxu0
    %1693 = vmatprep.mubr.f32.mxu0 0.0
    %1694 = vmatmul.mubr.f32.gmra.mrb[0].mxu0 %v1603
    %v1695 = vpop.f32.mrb[0].mxu0
    %v1696 = vadd.f32 0.0, %v1695
    %v1697 = vpop.f32.mrb[0].mxu0
    %1698 = vmatprep.mubr.f32.mxu0 0.0
    %1699 = vmatmul.mubr.f32.gmra.mrb[0].mxu0 %v1605
    %v1700 = vpop.f32.mrb[0].mxu0
    %v1701 = vadd.f32 0.0, %v1700
    %v1702 = vpop.f32.mrb[0].mxu0
    %1703 = vmatprep.mubr.f32.mxu0 0.0
    %1704 = vmatmul.mubr.f32.gmra.mrb[0].mxu0 %v1607
    %v1705 = vpop.f32.mrb[0].mxu0
    %v1706 = vadd.f32 0.0, %v1705
    %v1707 = vpop.f32.mrb[0].mxu0
    %1708 = vdwg.mxu0
    %v1709 = vsel %vm522, %v1686, -inf
    %1710 = vmax.xlane.f32.xlu0 %v1709
    %v1711 = vpop.xlane.xlu0 %1710
    %v1712 = vsel %vm522, %v1691, -inf
    %1713 = vmax.xlane.f32.xlu0 %v1712
    %v1714 = vpop.xlane.xlu0 %1713
    %v1715 = vsel %vm522, %v1696, -inf
    %1716 = vmax.xlane.f32.xlu0 %v1715
    %v1717 = vpop.xlane.xlu0 %1716
    %v1718 = vsel %vm522, %v1701, -inf
    %1719 = vmax.xlane.f32.xlu0 %v1718
    %v1720 = vpop.xlane.xlu0 %1719
    %v1721 = vsel %vm522, %v1706, -inf
    %1722 = vmax.xlane.f32.xlu0 %v1721
    %v1723 = vpop.xlane.xlu0 %1722
    %v1724 = vsub.f32 %v1686, %v1711
    %v1725 = vsub.f32 %v1691, %v1714
    %v1726 = vsub.f32 %v1696, %v1717
    %v1727 = vsub.f32 %v1701, %v1720
    %v1728 = vsub.f32 %v1706, %v1723
    %v1729 = vmul.f32 %v1724, 1.442695
    %v1730 = vpow.pop %v1729
    %v1731 = vmul.f32 %v1725, 1.442695
    %v1732 = vpow.pop %v1731
    %v1733 = vmul.f32 %v1726, 1.442695
    %v1734 = vpow.pop %v1733
    %v1735 = vmul.f32 %v1727, 1.442695
    %v1736 = vpow.pop %v1735
    %v1737 = vmul.f32 %v1728, 1.442695
    %v1738 = vpow.pop %v1737
    %v1739 = vsel %vm522, %v1730, 0.0
    %1740 = vadd.xlane.f32.xlu0 %v1739
    %v1741 = vpop.xlane.xlu0 %1740
    %v1742 = vsel %vm522, %v1732, 0.0
    %1743 = vadd.xlane.f32.xlu0 %v1742
    %v1744 = vpop.xlane.xlu0 %1743
    %v1745 = vsel %vm522, %v1734, 0.0
    %1746 = vadd.xlane.f32.xlu0 %v1745
    %v1747 = vpop.xlane.xlu0 %1746
    %v1748 = vsel %vm522, %v1736, 0.0
    %1749 = vadd.xlane.f32.xlu0 %v1748
    %v1750 = vpop.xlane.xlu0 %1749
    %v1751 = vsel %vm522, %v1738, 0.0
    %1752 = vadd.xlane.f32.xlu0 %v1751
    %v1753 = vpop.xlane.xlu0 %1752
    %v1754 = vrcp.pop %v1741
    %v1755 = vrcp.pop %v1744
    %v1756 = vrcp.pop %v1747
    %v1757 = vrcp.pop %v1750
    %v1758 = vrcp.pop %v1753
    %v1759 = vmul.f32 %v1730, %v1754
    %v1760 = vmul.f32 %v1732, %v1755
    %v1761 = vmul.f32 %v1734, %v1756
    %v1762 = vmul.f32 %v1736, %v1757
    %v1763 = vmul.f32 %v1738, %v1758
    %v1764 = vsel %vm522, %v1759, 0.0
    %v1765 = vsel %vm522, %v1760, 0.0
    %v1766 = vadd.f32 %v1764, %v1765
    %v1767 = vsel %vm522, %v1761, 0.0
    %v1768 = vadd.f32 %v1766, %v1767
    %v1769 = vsel %vm522, %v1762, 0.0
    %v1770 = vadd.f32 %v1768, %v1769
    %v1771 = vsel %vm522, %v1763, 0.0
    %v1772 = vadd.f32 %v1770, %v1771
    %v1773 = vrot.slane %v1772, 4
    %v1774 = vadd.f32 %v1772, %v1773
    %v1775 = vrot.slane %v1774, 2
    %v1776 = vadd.f32 %v1774, %v1775
    %v1777 = vrot.slane %v1776, 1
    %v1778 = vadd.f32 %v1776, %v1777
    %v1779 = vadd.f32 %v1578, %v1778
    %1780 = vrot.lane.b32.xlu0 %v313, 80
    %v1781 = vpop.permute.xlu0 %1780
    %1782 = vrot.lane.b32.xlu0 %v319, 80
    %v1783 = vpop.permute.xlu0 %1782
    %1784 = vrot.lane.b32.xlu0 %v325, 80
    %v1785 = vpop.permute.xlu0 %1784
    %1786 = vrot.lane.b32.xlu0 %v331, 80
    %v1787 = vpop.permute.xlu0 %1786
    %1788 = vrot.lane.b32.xlu0 %v337, 80
    %v1789 = vpop.permute.xlu0 %1788
    %1790 = vrot.lane.b32.xlu0 %v313, 16
    %v1791 = vpop.permute.xlu0 %1790
    %1792 = vrot.lane.b32.xlu0 %v319, 16
    %v1793 = vpop.permute.xlu0 %1792
    %1794 = vrot.lane.b32.xlu0 %v325, 16
    %v1795 = vpop.permute.xlu0 %1794
    %1796 = vrot.lane.b32.xlu0 %v331, 16
    %v1797 = vpop.permute.xlu0 %1796
    %1798 = vrot.lane.b32.xlu0 %v337, 16
    %v1799 = vpop.permute.xlu0 %1798
    %v1800 = vsel %vm411, %v1781, 0
    %v1802 = vsel %vm411, %v1783, 0
    %v1804 = vsel %vm411, %v1785, 0
    %v1806 = vsel %vm411, %v1787, 0
    %v1808 = vsel %vm411, %v1789, 0
    %v1810 = vsel %vm411, %v1791, 0
    %v1812 = vsel %vm411, %v1793, 0
    %v1814 = vsel %vm411, %v1795, 0
    %v1816 = vsel %vm411, %v1797, 0
    %v1818 = vsel %vm411, %v1799, 0
    %1820 = vmatprep.subr.mxu0 0.0
    %1821 = vmatpush1.xpose.msra.mxu0 %v1810
    %1822 = vmatprep.subr.mxu0 0.0
    %1823 = vmatpush1.xpose.msra.mxu0 %v1812
    %1824 = vmatprep.subr.mxu0 0.0
    %1825 = vmatpush1.xpose.msra.mxu0 %v1814
    %1826 = vmatprep.subr.mxu0 0.0
    %1827 = vmatpush1.xpose.msra.mxu0 %v1816
    %1828 = vmatprep.subr.mxu0 0.0
    %1829 = vmatpush1.xpose.msra.mxu0 %v1818
    %1830 = vmatprep.subr.mxu0 0.0
    %1831 = vmatpush1.xpose.msra.mxu0 0.0
    %1832 = vmatprep.subr.mxu0 0.0
    %1833 = vmatpush1.xpose.msra.mxu0 0.0
    %1834 = vmatprep.subr.mxu0 0.0
    %1835 = vmatpush1.xpose.msra.mxu0 0.0
    %1836 = vmatprep.subr.mxu0 0.0
    %1837 = vmatpush1.xpose.msra.mxu0 0.0
    %1838 = vmatprep.subr.mxu0 0.0
    %1839 = vmatpush1.xpose.msra.mxu0 0.0
    %1840 = vmatprep.subr.mxu0 0.0
    %1841 = vmatpush1.xpose.msra.mxu0 0.0
    %1842 = vmatprep.subr.mxu0 0.0
    %1843 = vmatpush1.xpose.msra.mxu0 0.0
    %1844 = vmatprep.subr.mxu0 0.0
    %1845 = vmatpush1.xpose.msra.mxu0 0.0
    %1846 = vmatprep.subr.mxu0 0.0
    %1847 = vmatpush1.xpose.msra.mxu0 0.0
    %1848 = vmatprep.subr.mxu0 0.0
    %1849 = vmatpush1.xpose.msra.mxu0 0.0
    %1850 = vmatprep.subr.mxu0 0.0
    %1851 = vmatpush1.xpose.msra.mxu0 0.0
    %1852 = vmatprep.subr.mxu0 0.0
    %1853 = vmatpush1.xpose.msra.mxu0 0.0
    %1854 = vmatprep.subr.mxu0 0.0
    %1855 = vmatpush1.xpose.msra.mxu0 0.0
    %1856 = vmatprep.subr.mxu0 0.0
    %1857 = vmatpush1.xpose.msra.mxu0 0.0
    %1858 = vmatprep.subr.mxu0 0.0
    %1859 = vmatpush1.xpose.msra.mxu0 0.0
    %1860 = vmatprep.subr.mxu0 0.0
    %1861 = vmatpush1.xpose.msra.mxu0 0.0
    %1862 = vmatprep.subr.mxu0 0.0
    %1863 = vmatpush1.xpose.msra.mxu0 0.0
    %1864 = vmatprep.subr.mxu0 0.0
    %1865 = vmatpush1.xpose.msra.mxu0 0.0
    %1866 = vmatprep.subr.mxu0 0.0
    %1867 = vmatpush1.xpose.msra.mxu0 0.0
    %1868 = vmatprep.subr.mxu0 0.0
    %1869 = vmatpush1.xpose.msra.mxu0 0.0
    %1870 = vmatprep.subr.mxu0 0.0
    %1871 = vmatpush1.xpose.msra.mxu0 0.0
    %1872 = vmatprep.subr.mxu0 0.0
    %1873 = vmatpush1.xpose.msra.mxu0 0.0
    %1874 = vmatprep.subr.mxu0 0.0
    %1875 = vmatpush1.xpose.msra.mxu0 0.0
    %1876 = vmatprep.subr.mxu0 0.0
    %1877 = vmatpush1.xpose.msra.mxu0 0.0
    %1878 = vmatprep.subr.mxu0 0.0
    %1879 = vmatpush1.xpose.msra.mxu0 0.0
    %1880 = vmatprep.subr.mxu0 0.0
    %1881 = vmatpush1.xpose.msra.mxu0 0.0
    %1882 = vmatprep.subr.mxu0 0.0
    %1883 = vmatpush1.xpose.msra.mxu0 0.0
    %1884 = vmatprep.mubr.f32.mxu0 0.0
    %1885 = vmatmul.mubr.f32.gmra.mrb[0].mxu0 %v1800
    %v1886 = vpop.f32.mrb[0].mxu0
    %v1887 = vadd.f32 0.0, %v1886
    %v1888 = vpop.f32.mrb[0].mxu0
    %1889 = vmatprep.mubr.f32.mxu0 0.0
    %1890 = vmatmul.mubr.f32.gmra.mrb[0].mxu0 %v1802
    %v1891 = vpop.f32.mrb[0].mxu0
    %v1892 = vadd.f32 0.0, %v1891
    %v1893 = vpop.f32.mrb[0].mxu0
    %1894 = vmatprep.mubr.f32.mxu0 0.0
    %1895 = vmatmul.mubr.f32.gmra.mrb[0].mxu0 %v1804
    %v1896 = vpop.f32.mrb[0].mxu0
    %v1897 = vadd.f32 0.0, %v1896
    %v1898 = vpop.f32.mrb[0].mxu0
    %1899 = vmatprep.mubr.f32.mxu0 0.0
    %1900 = vmatmul.mubr.f32.gmra.mrb[0].mxu0 %v1806
    %v1901 = vpop.f32.mrb[0].mxu0
    %v1902 = vadd.f32 0.0, %v1901
    %v1903 = vpop.f32.mrb[0].mxu0
    %1904 = vmatprep.mubr.f32.mxu0 0.0
    %1905 = vmatmul.mubr.f32.gmra.mrb[0].mxu0 %v1808
    %v1906 = vpop.f32.mrb[0].mxu0
    %v1907 = vadd.f32 0.0, %v1906
    %v1908 = vpop.f32.mrb[0].mxu0
    %1909 = vdwg.mxu0
    %v1910 = vsel %vm522, %v1887, -inf
    %1911 = vmax.xlane.f32.xlu0 %v1910
    %v1912 = vpop.xlane.xlu0 %1911
    %v1913 = vsel %vm522, %v1892, -inf
    %1914 = vmax.xlane.f32.xlu0 %v1913
    %v1915 = vpop.xlane.xlu0 %1914
    %v1916 = vsel %vm522, %v1897, -inf
    %1917 = vmax.xlane.f32.xlu0 %v1916
    %v1918 = vpop.xlane.xlu0 %1917
    %v1919 = vsel %vm522, %v1902, -inf
    %1920 = vmax.xlane.f32.xlu0 %v1919
    %v1921 = vpop.xlane.xlu0 %1920
    %v1922 = vsel %vm522, %v1907, -inf
    %1923 = vmax.xlane.f32.xlu0 %v1922
    %v1924 = vpop.xlane.xlu0 %1923
    %v1925 = vsub.f32 %v1887, %v1912
    %v1926 = vsub.f32 %v1892, %v1915
    %v1927 = vsub.f32 %v1897, %v1918
    %v1928 = vsub.f32 %v1902, %v1921
    %v1929 = vsub.f32 %v1907, %v1924
    %v1930 = vmul.f32 %v1925, 1.442695
    %v1931 = vpow.pop %v1930
    %v1932 = vmul.f32 %v1926, 1.442695
    %v1933 = vpow.pop %v1932
    %v1934 = vmul.f32 %v1927, 1.442695
    %v1935 = vpow.pop %v1934
    %v1936 = vmul.f32 %v1928, 1.442695
    %v1937 = vpow.pop %v1936
    %v1938 = vmul.f32 %v1929, 1.442695
    %v1939 = vpow.pop %v1938
    %v1940 = vsel %vm522, %v1931, 0.0
    %1941 = vadd.xlane.f32.xlu0 %v1940
    %v1942 = vpop.xlane.xlu0 %1941
    %v1943 = vsel %vm522, %v1933, 0.0
    %1944 = vadd.xlane.f32.xlu0 %v1943
    %v1945 = vpop.xlane.xlu0 %1944
    %v1946 = vsel %vm522, %v1935, 0.0
    %1947 = vadd.xlane.f32.xlu0 %v1946
    %v1948 = vpop.xlane.xlu0 %1947
    %v1949 = vsel %vm522, %v1937, 0.0
    %1950 = vadd.xlane.f32.xlu0 %v1949
    %v1951 = vpop.xlane.xlu0 %1950
    %v1952 = vsel %vm522, %v1939, 0.0
    %1953 = vadd.xlane.f32.xlu0 %v1952
    %v1954 = vpop.xlane.xlu0 %1953
    %v1955 = vrcp.pop %v1942
    %v1956 = vrcp.pop %v1945
    %v1957 = vrcp.pop %v1948
    %v1958 = vrcp.pop %v1951
    %v1959 = vrcp.pop %v1954
    %v1960 = vmul.f32 %v1931, %v1955
    %v1961 = vmul.f32 %v1933, %v1956
    %v1962 = vmul.f32 %v1935, %v1957
    %v1963 = vmul.f32 %v1937, %v1958
    %v1964 = vmul.f32 %v1939, %v1959
    %v1965 = vsel %vm522, %v1960, 0.0
    %v1966 = vsel %vm522, %v1961, 0.0
    %v1967 = vadd.f32 %v1965, %v1966
    %v1968 = vsel %vm522, %v1962, 0.0
    %v1969 = vadd.f32 %v1967, %v1968
    %v1970 = vsel %vm522, %v1963, 0.0
    %v1971 = vadd.f32 %v1969, %v1970
    %v1972 = vsel %vm522, %v1964, 0.0
    %v1973 = vadd.f32 %v1971, %v1972
    %v1974 = vrot.slane %v1973, 4
    %v1975 = vadd.f32 %v1973, %v1974
    %v1976 = vrot.slane %v1975, 2
    %v1977 = vadd.f32 %v1975, %v1976
    %v1978 = vrot.slane %v1977, 1
    %v1979 = vadd.f32 %v1977, %v1978
    %v1980 = vadd.f32 %v1779, %v1979
    %v1981 = vlaneseq
    %v1982 = vand.u32 %v1981, 127
    %v1983 = vsub.s32 40, %v1982
    %v1984 = vcvt.s32.f32 %v1983
    %v1985 = vrcp.pop %v1984
    %v1986 = vmul.f32 %v1980, %v1985
    %v1987 = vrcp.pop 8.0
    %v1988 = vmul.f32 %v1986, %v1987
    %vm1989 = vcmask 319488
    %1990 = vst.msk [vmem:[%s6] sm:$0x1] %vm1989, %v1988
    // Predicated region
    $region22: #{cal_scale_opt_attention.2} parent=1 // pred_check
      _
    $region23: #{cal_scale_opt_attention.2} parent=1 // pred_check_branch
      %1992 = sbr.rel (0) target = $region25
    $region24: #{cal_scale_opt_attention.2} parent=1 // pred_region
      _
    $region25: #{cal_scale_opt_attention.2} parent=1 // pred_fallthru
      _
    // Predicated region
    $region26: #{cal_scale_opt_attention.2} parent=1 // pred_check
      _
    $region27: #{cal_scale_opt_attention.2} parent=1 // pred_check_branch
      %1994 = sbr.rel (0) target = $region29
    $region28: #{cal_scale_opt_attention.2} parent=1 // pred_region
      _
    $region29: #{cal_scale_opt_attention.2} parent=1 // pred_fallthru
      _
    // Predicated region
    $region30: #{cal_scale_opt_attention.2} parent=1 // pred_check
      _
    $region31: #{cal_scale_opt_attention.2} parent=1 // pred_check_branch
      %1996 = sbr.rel (0) target = $region33
    $region32: #{cal_scale_opt_attention.2} parent=1 // pred_region
      _
    $region33: #{cal_scale_opt_attention.2} parent=1 // pred_fallthru
      _
    // Predicated region
    $region34: #{cal_scale_opt_attention.2} parent=1 // pred_check
      _
    $region35: #{cal_scale_opt_attention.2} parent=1 // pred_check_branch
      %1998 = sbr.rel (0) target = $region37
    $region36: #{cal_scale_opt_attention.2} parent=1 // pred_region
      _
    $region37: #{cal_scale_opt_attention.2} parent=1 // pred_fallthru
      _
    // Predicated region
    $region38: #{cal_scale_opt_attention.2} parent=1 // pred_check
      _
    $region39: #{cal_scale_opt_attention.2} parent=1 // pred_check_branch
      %2000 = sbr.rel (0) target = $region41
    $region40: #{cal_scale_opt_attention.2} parent=1 // pred_region
      _
    $region41: #{cal_scale_opt_attention.2} parent=1 // pred_fallthru
      _
    // Predicated region
    $region42: #{cal_scale_opt_attention.2} parent=1 // pred_check
      _
    $region43: #{cal_scale_opt_attention.2} parent=1 // pred_check_branch
      %2002 = sbr.rel (0) target = $region45
    $region44: #{cal_scale_opt_attention.2} parent=1 // pred_region
      _
    $region45: #{cal_scale_opt_attention.2} parent=1 // pred_fallthru
      _
    // Predicated region
    $region46: #{cal_scale_opt_attention.2} parent=1 // pred_check
      _
    $region47: #{cal_scale_opt_attention.2} parent=1 // pred_check_branch
      %2004 = sbr.rel (0) target = $region49
    $region48: #{cal_scale_opt_attention.2} parent=1 // pred_region
      _
    $region49: #{cal_scale_opt_attention.2} parent=1 // pred_fallthru
      _
    // Predicated region
    $region50: #{cal_scale_opt_attention.2} parent=1 // pred_check
      _
    $region51: #{cal_scale_opt_attention.2} parent=1 // pred_check_branch
      %2006 = sbr.rel (0) target = $region53
    $region52: #{cal_scale_opt_attention.2} parent=1 // pred_region
      _
    $region53: #{cal_scale_opt_attention.2} parent=1 // pred_fallthru
      _
    %2007 = vsyncpa [#allocation3], 1
    %2008 = vsyncpa [#allocation5], 1

// kernel: cal_scale_opt_attention.3
$region0: #{cal_scale_opt_attention.3}
  #allocation0 [shape = 'u32[]', space=smem, size = 0x4, offset = 0x4, fixed_abs, tag = 'smem constant byte address 0x4 - core index']
  #allocation1 [shape = 'u32[144,128]{1,0:T(1,128)}', space=vmem, size = 0x12000, scoped, tag = 'internal scratch']
  #allocation2 [shape = 'f32[80,64]{1,0:T(8,128)}', space=vmem, size = 0xa000, scoped, tag = 'scratch operand']
  #allocation3 [shape = 's32[1]{0}', space=sflag, size = 0x4, scoped, tag = 'scoped memory for cal_scale_opt_attention.3']
  #allocation4 [shape = 'u8[512]{0}', space=smem, size = 0x200, scoped, tag = 'prefetched SMEM operand 0']
  %s0 = inlined_call_operand.vmem [shape: s32[4], index: 0, kind: input, shape index: {}]
  %s1 = inlined_call_operand.vmem [shape: f32[80,64], index: 1, kind: input, shape index: {}]
  %s2 = inlined_call_operand.vmem [shape: f32[80,64], index: 2, kind: input, shape index: {}]
  %s3 = inlined_call_operand.vmem [shape: f32[80,64], index: 3, kind: input, shape index: {}]
  %s4 = inlined_call_operand.vmem [shape: f32[64,64], index: 4, kind: input, shape index: {}]
  %s5 = inlined_call_operand.vmem [shape: f32[1,64], index: 5, kind: input, shape index: {}]
  %s6 = inlined_call_operand.hbm [shape: f32[80,64], index: 6, kind: output, shape index: {0}]
  %s7 = inlined_call_operand.vmem [shape: f32[80,64], index: 7, kind: output, shape index: {1}]
  %s8 = inlined_call_operand.vmem [shape: f32[80,64], index: 8, kind: output, shape index: {2}]
  %9 = xla_tuple %s6, %s7, %s8
  %s10 = sld [smem:[#allocation0]]
  $region46: #{cal_scale_opt_attention.3} parent=0
    _
  %s12 = ssub.s32 1, %s10
  %s13 = scalar_select 0, %s12, %s10
  %s14 = sshll.u32 %s0, 4
  %s15 = int_to_ptr.vmem [resolvable:$true] %s14
  %17 = dma.vmem_to_smem %s15, 16, [#allocation4], [#allocation3]
  %18 = dma.done [#allocation3], 16
  %19 = sfence
  $region1: #{cal_scale_opt_attention.3} parent=0
    #allocation5 [shape = 'u8[40960]{0}', space=vmem, size = 0xa000, scoped, tag = 'output window, operand 0, single buffered']
    #allocation6 [shape = 's32[1]{0}', space=sflag, size = 0x4, scoped, tag = 'scoped memory for cal_scale_opt_attention.3']
    %20 = vsyncpa [#allocation6], 0
    // Predicated region
    $region2: #{cal_scale_opt_attention.3} parent=1 // pred_check
      _
    $region3: #{cal_scale_opt_attention.3} parent=1 // pred_check_branch
      %22 = sbr.rel (0) target = $region5
    $region4: #{cal_scale_opt_attention.3} parent=1 // pred_region
      _
    $region5: #{cal_scale_opt_attention.3} parent=1 // pred_fallthru
      _
    // Predicated region
    $region6: #{cal_scale_opt_attention.3} parent=1 // pred_check
      _
    $region7: #{cal_scale_opt_attention.3} parent=1 // pred_check_branch
      %24 = sbr.rel (0) target = $region9
    $region8: #{cal_scale_opt_attention.3} parent=1 // pred_region
      _
    $region9: #{cal_scale_opt_attention.3} parent=1 // pred_fallthru
      _
    // Predicated region
    $region10: #{cal_scale_opt_attention.3} parent=1 // pred_check
      _
    $region11: #{cal_scale_opt_attention.3} parent=1 // pred_check_branch
      %26 = sbr.rel (0) target = $region13
    $region12: #{cal_scale_opt_attention.3} parent=1 // pred_region
      _
    $region13: #{cal_scale_opt_attention.3} parent=1 // pred_fallthru
      _
    // Predicated region
    $region14: #{cal_scale_opt_attention.3} parent=1 // pred_check
      _
    $region15: #{cal_scale_opt_attention.3} parent=1 // pred_check_branch
      %28 = sbr.rel (0) target = $region17
    $region16: #{cal_scale_opt_attention.3} parent=1 // pred_region
      _
    $region17: #{cal_scale_opt_attention.3} parent=1 // pred_fallthru
      _
    // Predicated region
    $region18: #{cal_scale_opt_attention.3} parent=1 // pred_check
      _
    $region19: #{cal_scale_opt_attention.3} parent=1 // pred_check_branch
      %30 = sbr.rel (0) target = $region21
    $region20: #{cal_scale_opt_attention.3} parent=1 // pred_region
      _
    $region21: #{cal_scale_opt_attention.3} parent=1 // pred_fallthru
      _
    %v31 = vld [vmem:[%s1] sm:$0xff]
    %v32 = vld [vmem:[%s1 + $0x8] sm:$0xff]
    %v33 = vld [vmem:[%s1 + $0x10] sm:$0xff]
    %v34 = vld [vmem:[%s1 + $0x18] sm:$0xff]
    %v35 = vld [vmem:[%s1 + $0x20] sm:$0xff]
    %v36 = vld [vmem:[%s1 + $0x28] sm:$0xff]
    %v37 = vld [vmem:[%s1 + $0x30] sm:$0xff]
    %v38 = vld [vmem:[%s1 + $0x38] sm:$0xff]
    %v39 = vld [vmem:[%s1 + $0x40] sm:$0xff]
    %v40 = vld [vmem:[%s1 + $0x48] sm:$0xff]
    %v41 = vld [vmem:[%s2] sm:$0xff]
    %v42 = vld [vmem:[%s2 + $0x8] sm:$0xff]
    %v43 = vld [vmem:[%s2 + $0x10] sm:$0xff]
    %v44 = vld [vmem:[%s2 + $0x18] sm:$0xff]
    %v45 = vld [vmem:[%s2 + $0x20] sm:$0xff]
    %v46 = vld [vmem:[%s2 + $0x28] sm:$0xff]
    %v47 = vld [vmem:[%s2 + $0x30] sm:$0xff]
    %v48 = vld [vmem:[%s2 + $0x38] sm:$0xff]
    %v49 = vld [vmem:[%s2 + $0x40] sm:$0xff]
    %v50 = vld [vmem:[%s2 + $0x48] sm:$0xff]
    %v51 = vld [vmem:[%s3] sm:$0xff]
    %v52 = vld [vmem:[%s3 + $0x8] sm:$0xff]
    %v53 = vld [vmem:[%s3 + $0x10] sm:$0xff]
    %v54 = vld [vmem:[%s3 + $0x18] sm:$0xff]
    %v55 = vld [vmem:[%s3 + $0x20] sm:$0xff]
    %v56 = vld [vmem:[%s3 + $0x28] sm:$0xff]
    %v57 = vld [vmem:[%s3 + $0x30] sm:$0xff]
    %v58 = vld [vmem:[%s3 + $0x38] sm:$0xff]
    %v59 = vld [vmem:[%s3 + $0x40] sm:$0xff]
    %v60 = vld [vmem:[%s3 + $0x48] sm:$0xff]
    %v61 = vand.u32 2147483647, %v41
    %v62 = vand.u32 2147483647, %v42
    %v63 = vand.u32 2147483647, %v43
    %v64 = vand.u32 2147483647, %v44
    %v65 = vand.u32 2147483647, %v45
    %vm66 = vcmask 523264
    %v67 = vsel %vm66, %v61, -inf
    %68 = vmax.xlane.f32.xlu0 %v67
    %v69 = vpop.xlane.xlu0 %68
    %v70 = vsel %vm66, %v62, -inf
    %71 = vmax.xlane.f32.xlu0 %v70
    %v72 = vpop.xlane.xlu0 %71
    %v73 = vsel %vm66, %v63, -inf
    %74 = vmax.xlane.f32.xlu0 %v73
    %v75 = vpop.xlane.xlu0 %74
    %v76 = vsel %vm66, %v64, -inf
    %77 = vmax.xlane.f32.xlu0 %v76
    %v78 = vpop.xlane.xlu0 %77
    %v79 = vsel %vm66, %v65, -inf
    %80 = vmax.xlane.f32.xlu0 %v79
    %v81 = vpop.xlane.xlu0 %80
    %v82 = vrcp.pop 127.0
    %v83 = vmul.f32 %v69, %v82
    %v84 = vmul.f32 %v72, %v82
    %v85 = vmul.f32 %v75, %v82
    %v86 = vmul.f32 %v78, %v82
    %v87 = vmul.f32 %v81, %v82
    %v88 = vmax.f32 %v83, 1e-05
    %v89 = vmax.f32 %v84, 1e-05
    %v90 = vmax.f32 %v85, 1e-05
    %v91 = vmax.f32 %v86, 1e-05
    %v92 = vmax.f32 %v87, 1e-05
    %94 = vset.pattern.permute.xlu0 0
    %95 = vperm.xlu0 %94, %v88
    %v96 = vpop.permute.xlu0 %95
    %99 = vset.pattern.permute.xlu0 0
    %100 = vperm.xlu0 %99, %v89
    %v101 = vpop.permute.xlu0 %100
    %104 = vset.pattern.permute.xlu0 0
    %105 = vperm.xlu0 %104, %v90
    %v106 = vpop.permute.xlu0 %105
    %109 = vset.pattern.permute.xlu0 0
    %110 = vperm.xlu0 %109, %v91
    %v111 = vpop.permute.xlu0 %110
    %114 = vset.pattern.permute.xlu0 0
    %115 = vperm.xlu0 %114, %v92
    %v116 = vpop.permute.xlu0 %115
    %v118 = vrcp.pop %v96
    %v119 = vmul.f32 %v41, %v118
    %v120 = vrcp.pop %v101
    %v121 = vmul.f32 %v42, %v120
    %v122 = vrcp.pop %v106
    %v123 = vmul.f32 %v43, %v122
    %v124 = vrcp.pop %v111
    %v125 = vmul.f32 %v44, %v124
    %v126 = vrcp.pop %v116
    %v127 = vmul.f32 %v45, %v126
    %v128 = vmul.f32 %v46, %v118
    %v129 = vmul.f32 %v47, %v120
    %v130 = vmul.f32 %v48, %v122
    %v131 = vmul.f32 %v49, %v124
    %v132 = vmul.f32 %v50, %v126
    %v133 = vround.ne.pseudo %v119
    %v134 = vround.ne.pseudo %v121
    %v135 = vround.ne.pseudo %v123
    %v136 = vround.ne.pseudo %v125
    %v137 = vround.ne.pseudo %v127
    %v138 = vround.ne.pseudo %v128
    %v139 = vround.ne.pseudo %v129
    %v140 = vround.ne.pseudo %v130
    %v141 = vround.ne.pseudo %v131
    %v142 = vround.ne.pseudo %v132
    %v143 = vmul.f32 %v133, %v96
    %v144 = vmul.f32 %v134, %v101
    %v145 = vmul.f32 %v135, %v106
    %v146 = vmul.f32 %v136, %v111
    %v147 = vmul.f32 %v137, %v116
    %v148 = vmul.f32 %v138, %v96
    %v149 = vmul.f32 %v139, %v101
    %v150 = vmul.f32 %v140, %v106
    %v151 = vmul.f32 %v141, %v111
    %v152 = vmul.f32 %v142, %v116
    %v153 = vand.u32 2147483647, %v46
    %v154 = vand.u32 2147483647, %v47
    %v155 = vand.u32 2147483647, %v48
    %v156 = vand.u32 2147483647, %v49
    %v157 = vand.u32 2147483647, %v50
    %v158 = vsel %vm66, %v153, -inf
    %159 = vmax.xlane.f32.xlu0 %v158
    %v160 = vpop.xlane.xlu0 %159
    %v161 = vsel %vm66, %v154, -inf
    %162 = vmax.xlane.f32.xlu0 %v161
    %v163 = vpop.xlane.xlu0 %162
    %v164 = vsel %vm66, %v155, -inf
    %165 = vmax.xlane.f32.xlu0 %v164
    %v166 = vpop.xlane.xlu0 %165
    %v167 = vsel %vm66, %v156, -inf
    %168 = vmax.xlane.f32.xlu0 %v167
    %v169 = vpop.xlane.xlu0 %168
    %v170 = vsel %vm66, %v157, -inf
    %171 = vmax.xlane.f32.xlu0 %v170
    %v172 = vpop.xlane.xlu0 %171
    %v173 = vmax.f32 %v69, 1e-05
    %v174 = vmax.f32 %v72, 1e-05
    %v175 = vmax.f32 %v75, 1e-05
    %v176 = vmax.f32 %v78, 1e-05
    %v177 = vmax.f32 %v81, 1e-05
    %v178 = vmax.f32 %v160, 1e-05
    %v179 = vmax.f32 %v163, 1e-05
    %v180 = vmax.f32 %v166, 1e-05
    %v181 = vmax.f32 %v169, 1e-05
    %v182 = vmax.f32 %v172, 1e-05
    %v183 = vrcp.pop 7.0
    %v184 = vmul.f32 %v173, %v183
    %v185 = vmul.f32 %v174, %v183
    %v186 = vmul.f32 %v175, %v183
    %v187 = vmul.f32 %v176, %v183
    %v188 = vmul.f32 %v177, %v183
    %v189 = vmul.f32 %v178, %v183
    %v190 = vmul.f32 %v179, %v183
    %v191 = vmul.f32 %v180, %v183
    %v192 = vmul.f32 %v181, %v183
    %v193 = vmul.f32 %v182, %v183
    %v194 = vrcp.pop %v184
    %v195 = vmul.f32 %v41, %v194
    %v196 = vrcp.pop %v185
    %v197 = vmul.f32 %v42, %v196
    %v198 = vrcp.pop %v186
    %v199 = vmul.f32 %v43, %v198
    %v200 = vrcp.pop %v187
    %v201 = vmul.f32 %v44, %v200
    %v202 = vrcp.pop %v188
    %v203 = vmul.f32 %v45, %v202
    %v204 = vrcp.pop %v189
    %v205 = vmul.f32 %v46, %v204
    %v206 = vrcp.pop %v190
    %v207 = vmul.f32 %v47, %v206
    %v208 = vrcp.pop %v191
    %v209 = vmul.f32 %v48, %v208
    %v210 = vrcp.pop %v192
    %v211 = vmul.f32 %v49, %v210
    %v212 = vrcp.pop %v193
    %v213 = vmul.f32 %v50, %v212
    %v214 = vround.ne.pseudo %v195
    %v215 = vround.ne.pseudo %v197
    %v216 = vround.ne.pseudo %v199
    %v217 = vround.ne.pseudo %v201
    %v218 = vround.ne.pseudo %v203
    %v219 = vround.ne.pseudo %v205
    %v220 = vround.ne.pseudo %v207
    %v221 = vround.ne.pseudo %v209
    %v222 = vround.ne.pseudo %v211
    %v223 = vround.ne.pseudo %v213
    %v224 = vmul.f32 %v214, %v184
    %v225 = vmul.f32 %v215, %v185
    %v226 = vmul.f32 %v216, %v186
    %v227 = vmul.f32 %v217, %v187
    %v228 = vmul.f32 %v218, %v188
    %v229 = vmul.f32 %v219, %v189
    %v230 = vmul.f32 %v220, %v190
    %v231 = vmul.f32 %v221, %v191
    %v232 = vmul.f32 %v222, %v192
    %v233 = vmul.f32 %v223, %v193
    %v234 = vlaneseq
    %v235 = vshrl.u32 %v234, 7
    %v236 = vadd.s32 %v235, 8
    %v237 = vadd.s32 %v235, 16
    %v238 = vadd.s32 %v235, 24
    %v239 = vadd.s32 %v235, 32
    %s240 = sld [smem:[#allocation4]]
    %v241 = vstv %s240
    %vm242 = vcmp.eq.s32.totalorder %v235, %v241
    %vm243 = vcmp.eq.s32.totalorder %v236, %v241
    %vm244 = vcmp.eq.s32.totalorder %v237, %v241
    %vm245 = vcmp.eq.s32.totalorder %v238, %v241
    %vm246 = vcmp.eq.s32.totalorder %v239, %v241
    %s247 = sld [smem:[#allocation4 + $0x1]]
    %v248 = vstv %s247
    %vm249 = vcmp.eq.s32.totalorder %v235, %v248
    %vm250 = vcmp.eq.s32.totalorder %v236, %v248
    %vm251 = vcmp.eq.s32.totalorder %v237, %v248
    %vm252 = vcmp.eq.s32.totalorder %v238, %v248
    %vm253 = vcmp.eq.s32.totalorder %v239, %v248
    %vm254 = vmor %vm242, %vm249
    %vm255 = vmor %vm243, %vm250
    %vm256 = vmor %vm244, %vm251
    %vm257 = vmor %vm245, %vm252
    %vm258 = vmor %vm246, %vm253
    %s259 = sld [smem:[#allocation4 + $0x2]]
    %v260 = vstv %s259
    %vm261 = vcmp.eq.s32.totalorder %v235, %v260
    %vm262 = vcmp.eq.s32.totalorder %v236, %v260
    %vm263 = vcmp.eq.s32.totalorder %v237, %v260
    %vm264 = vcmp.eq.s32.totalorder %v238, %v260
    %vm265 = vcmp.eq.s32.totalorder %v239, %v260
    %vm266 = vmor %vm254, %vm261
    %vm267 = vmor %vm255, %vm262
    %vm268 = vmor %vm256, %vm263
    %vm269 = vmor %vm257, %vm264
    %vm270 = vmor %vm258, %vm265
    %s271 = sld [smem:[#allocation4 + $0x3]]
    %v272 = vstv %s271
    %vm273 = vcmp.eq.s32.totalorder %v235, %v272
    %vm274 = vcmp.eq.s32.totalorder %v236, %v272
    %vm275 = vcmp.eq.s32.totalorder %v237, %v272
    %vm276 = vcmp.eq.s32.totalorder %v238, %v272
    %vm277 = vcmp.eq.s32.totalorder %v239, %v272
    %vm278 = vmor %vm266, %vm273
    %vm279 = vmor %vm267, %vm274
    %vm280 = vmor %vm268, %vm275
    %vm281 = vmor %vm269, %vm276
    %vm282 = vmor %vm270, %vm277
    %v283 = vsel %vm278, 1, 0
    %v284 = vsel %vm279, 1, 0
    %v285 = vsel %vm280, 1, 0
    %v286 = vsel %vm281, 1, 0
    %v287 = vsel %vm282, 1, 0
    %288 = vset.pattern.permute.xlu0 0
    %289 = vperm.xlu0 %288, %v283
    %v290 = vpop.permute.xlu0 %289
    %291 = vset.pattern.permute.xlu0 0
    %292 = vperm.xlu0 %291, %v284
    %v293 = vpop.permute.xlu0 %292
    %294 = vset.pattern.permute.xlu0 0
    %295 = vperm.xlu0 %294, %v285
    %v296 = vpop.permute.xlu0 %295
    %297 = vset.pattern.permute.xlu0 0
    %298 = vperm.xlu0 %297, %v286
    %v299 = vpop.permute.xlu0 %298
    %300 = vset.pattern.permute.xlu0 0
    %301 = vperm.xlu0 %300, %v287
    %v302 = vpop.permute.xlu0 %301
    %vm303 = vcmp.eq.s32.totalorder %v290, 1
    %vm304 = vcmp.eq.s32.totalorder %v293, 1
    %vm305 = vcmp.eq.s32.totalorder %v296, 1
    %vm306 = vcmp.eq.s32.totalorder %v299, 1
    %vm307 = vcmp.eq.s32.totalorder %v302, 1
    %v308 = vsel %vm303, %v143, %v224
    %v309 = vsel %vm304, %v144, %v225
    %v310 = vsel %vm305, %v145, %v226
    %v311 = vsel %vm306, %v146, %v227
    %v312 = vsel %vm307, %v147, %v228
    %v313 = vsel %vm303, %v148, %v229
    %v314 = vsel %vm304, %v149, %v230
    %v315 = vsel %vm305, %v150, %v231
    %v316 = vsel %vm306, %v151, %v232
    %v317 = vsel %vm307, %v152, %v233
    %v318 = vand.u32 2147483647, %v51
    %v319 = vand.u32 2147483647, %v52
    %v320 = vand.u32 2147483647, %v53
    %v321 = vand.u32 2147483647, %v54
    %v322 = vand.u32 2147483647, %v55
    %v323 = vsel %vm66, %v318, -inf
    %v324 = vsel %vm66, %v319, -inf
    %v325 = vsel %vm66, %v320, -inf
    %v326 = vsel %vm66, %v321, -inf
    %v327 = vsel %vm66, %v322, -inf
    %v328 = vmax.f32 %v323, %v327
    %v329 = vmax.f32 %v328, %v324
    %v330 = vmax.f32 %v325, %v326
    %v331 = vmax.f32 %v329, %v330
    %v332 = vrot.slane %v331, 4
    %v333 = vmax.f32 %v331, %v332
    %v334 = vrot.slane %v333, 2
    %v335 = vmax.f32 %v333, %v334
    %v336 = vrot.slane %v335, 1
    %v337 = vmax.f32 %v335, %v336
    %v338 = vmax.f32 %v337, 1e-05
    %v339 = vmul.f32 %v338, %v82
    %v340 = vrcp.pop %v339
    %v341 = vmul.f32 %v51, %v340
    %v342 = vmul.f32 %v52, %v340
    %v343 = vmul.f32 %v53, %v340
    %v344 = vmul.f32 %v54, %v340
    %v345 = vmul.f32 %v55, %v340
    %v346 = vround.ne.pseudo %v341
    %v347 = vround.ne.pseudo %v342
    %v348 = vround.ne.pseudo %v343
    %v349 = vround.ne.pseudo %v344
    %v350 = vround.ne.pseudo %v345
    %v351 = vmul.f32 %v346, %v339
    %v352 = vmul.f32 %v347, %v339
    %v353 = vmul.f32 %v348, %v339
    %v354 = vmul.f32 %v349, %v339
    %v355 = vmul.f32 %v350, %v339
    %v356 = vand.u32 2147483647, %v56
    %v357 = vand.u32 2147483647, %v57
    %v358 = vand.u32 2147483647, %v58
    %v359 = vand.u32 2147483647, %v59
    %v360 = vand.u32 2147483647, %v60
    %v361 = vsel %vm66, %v356, -inf
    %v362 = vsel %vm66, %v357, -inf
    %v363 = vsel %vm66, %v358, -inf
    %v364 = vsel %vm66, %v359, -inf
    %v365 = vsel %vm66, %v360, -inf
    %v366 = vmax.f32 %v361, %v365
    %v367 = vmax.f32 %v366, %v362
    %v368 = vmax.f32 %v363, %v364
    %v369 = vmax.f32 %v367, %v368
    %v370 = vrot.slane %v369, 4
    %v371 = vmax.f32 %v369, %v370
    %v372 = vrot.slane %v371, 2
    %v373 = vmax.f32 %v371, %v372
    %v374 = vrot.slane %v373, 1
    %v375 = vmax.f32 %v373, %v374
    %v376 = vmax.f32 %v375, 1e-05
    %v377 = vmul.f32 %v376, %v82
    %v378 = vrcp.pop %v377
    %v379 = vmul.f32 %v56, %v378
    %v380 = vmul.f32 %v57, %v378
    %v381 = vmul.f32 %v58, %v378
    %v382 = vmul.f32 %v59, %v378
    %v383 = vmul.f32 %v60, %v378
    %v384 = vround.ne.pseudo %v379
    %v385 = vround.ne.pseudo %v380
    %v386 = vround.ne.pseudo %v381
    %v387 = vround.ne.pseudo %v382
    %v388 = vround.ne.pseudo %v383
    %v389 = vmul.f32 %v384, %v377
    %v390 = vmul.f32 %v385, %v377
    %v391 = vmul.f32 %v386, %v377
    %v392 = vmul.f32 %v387, %v377
    %v393 = vmul.f32 %v388, %v377
    %394 = vst.msk [vmem:[%s7] sm:$0xff] %vm66, %v308
    %395 = vst.msk [vmem:[%s7 + $0x8] sm:$0xff] %vm66, %v309
    %396 = vst.msk [vmem:[%s7 + $0x10] sm:$0xff] %vm66, %v310
    %397 = vst.msk [vmem:[%s7 + $0x18] sm:$0xff] %vm66, %v311
    %398 = vst.msk [vmem:[%s7 + $0x20] sm:$0xff] %vm66, %v312
    %399 = vst.msk [vmem:[%s7 + $0x28] sm:$0xff] %vm66, %v313
    %400 = vst.msk [vmem:[%s7 + $0x30] sm:$0xff] %vm66, %v314
    %401 = vst.msk [vmem:[%s7 + $0x38] sm:$0xff] %vm66, %v315
    %402 = vst.msk [vmem:[%s7 + $0x40] sm:$0xff] %vm66, %v316
    %403 = vst.msk [vmem:[%s7 + $0x48] sm:$0xff] %vm66, %v317
    %404 = vst.msk [vmem:[%s8] sm:$0xff] %vm66, %v351
    %405 = vst.msk [vmem:[%s8 + $0x8] sm:$0xff] %vm66, %v352
    %406 = vst.msk [vmem:[%s8 + $0x10] sm:$0xff] %vm66, %v353
    %407 = vst.msk [vmem:[%s8 + $0x18] sm:$0xff] %vm66, %v354
    %408 = vst.msk [vmem:[%s8 + $0x20] sm:$0xff] %vm66, %v355
    %409 = vst.msk [vmem:[%s8 + $0x28] sm:$0xff] %vm66, %v389
    %410 = vst.msk [vmem:[%s8 + $0x30] sm:$0xff] %vm66, %v390
    %411 = vst.msk [vmem:[%s8 + $0x38] sm:$0xff] %vm66, %v391
    %412 = vst.msk [vmem:[%s8 + $0x40] sm:$0xff] %vm66, %v392
    %413 = vst.msk [vmem:[%s8 + $0x48] sm:$0xff] %vm66, %v393
    %vm414 = vcmask 130048
    %v416 = vsel %vm414, %v31, 0
    %v419 = vsel %vm414, %v32, 0
    %v422 = vsel %vm414, %v33, 0
    %v425 = vsel %vm414, %v34, 0
    %v428 = vsel %vm414, %v35, 0
    %v431 = vsel %vm414, %v308, 0
    %v434 = vsel %vm414, %v309, 0
    %v437 = vsel %vm414, %v310, 0
    %v440 = vsel %vm414, %v311, 0
    %v443 = vsel %vm414, %v312, 0
    %445 = vmatprep.subr.mxu0 0.0
    %446 = vmatpush1.xpose.msra.mxu0 %v431
    %447 = vmatprep.subr.mxu0 0.0
    %448 = vmatpush1.xpose.msra.mxu0 %v434
    %449 = vmatprep.subr.mxu0 0.0
    %450 = vmatpush1.xpose.msra.mxu0 %v437
    %451 = vmatprep.subr.mxu0 0.0
    %452 = vmatpush1.xpose.msra.mxu0 %v440
    %453 = vmatprep.subr.mxu0 0.0
    %454 = vmatpush1.xpose.msra.mxu0 %v443
    %455 = vmatprep.subr.mxu0 0.0
    %456 = vmatpush1.xpose.msra.mxu0 0.0
    %457 = vmatprep.subr.mxu0 0.0
    %458 = vmatpush1.xpose.msra.mxu0 0.0
    %459 = vmatprep.subr.mxu0 0.0
    %460 = vmatpush1.xpose.msra.mxu0 0.0
    %461 = vmatprep.subr.mxu0 0.0
    %462 = vmatpush1.xpose.msra.mxu0 0.0
    %463 = vmatprep.subr.mxu0 0.0
    %464 = vmatpush1.xpose.msra.mxu0 0.0
    %465 = vmatprep.subr.mxu0 0.0
    %466 = vmatpush1.xpose.msra.mxu0 0.0
    %467 = vmatprep.subr.mxu0 0.0
    %468 = vmatpush1.xpose.msra.mxu0 0.0
    %469 = vmatprep.subr.mxu0 0.0
    %470 = vmatpush1.xpose.msra.mxu0 0.0
    %471 = vmatprep.subr.mxu0 0.0
    %472 = vmatpush1.xpose.msra.mxu0 0.0
    %473 = vmatprep.subr.mxu0 0.0
    %474 = vmatpush1.xpose.msra.mxu0 0.0
    %475 = vmatprep.subr.mxu0 0.0
    %476 = vmatpush1.xpose.msra.mxu0 0.0
    %477 = vmatprep.subr.mxu0 0.0
    %478 = vmatpush1.xpose.msra.mxu0 0.0
    %479 = vmatprep.subr.mxu0 0.0
    %480 = vmatpush1.xpose.msra.mxu0 0.0
    %481 = vmatprep.subr.mxu0 0.0
    %482 = vmatpush1.xpose.msra.mxu0 0.0
    %483 = vmatprep.subr.mxu0 0.0
    %484 = vmatpush1.xpose.msra.mxu0 0.0
    %485 = vmatprep.subr.mxu0 0.0
    %486 = vmatpush1.xpose.msra.mxu0 0.0
    %487 = vmatprep.subr.mxu0 0.0
    %488 = vmatpush1.xpose.msra.mxu0 0.0
    %489 = vmatprep.subr.mxu0 0.0
    %490 = vmatpush1.xpose.msra.mxu0 0.0
    %491 = vmatprep.subr.mxu0 0.0
    %492 = vmatpush1.xpose.msra.mxu0 0.0
    %493 = vmatprep.subr.mxu0 0.0
    %494 = vmatpush1.xpose.msra.mxu0 0.0
    %495 = vmatprep.subr.mxu0 0.0
    %496 = vmatpush1.xpose.msra.mxu0 0.0
    %497 = vmatprep.subr.mxu0 0.0
    %498 = vmatpush1.xpose.msra.mxu0 0.0
    %499 = vmatprep.subr.mxu0 0.0
    %500 = vmatpush1.xpose.msra.mxu0 0.0
    %501 = vmatprep.subr.mxu0 0.0
    %502 = vmatpush1.xpose.msra.mxu0 0.0
    %503 = vmatprep.subr.mxu0 0.0
    %504 = vmatpush1.xpose.msra.mxu0 0.0
    %505 = vmatprep.subr.mxu0 0.0
    %506 = vmatpush1.xpose.msra.mxu0 0.0
    %507 = vmatprep.subr.mxu0 0.0
    %508 = vmatpush1.xpose.msra.mxu0 0.0
    %509 = vmatprep.mubr.f32.mxu0 0.0
    %510 = vmatmul.mubr.f32.gmra.mrb[0].mxu0 %v416
    %v511 = vpop.f32.mrb[0].mxu0
    %v512 = vadd.f32 0.0, %v511
    %v513 = vpop.f32.mrb[0].mxu0
    %514 = vmatprep.mubr.f32.mxu0 0.0
    %515 = vmatmul.mubr.f32.gmra.mrb[0].mxu0 %v419
    %v516 = vpop.f32.mrb[0].mxu0
    %v517 = vadd.f32 0.0, %v516
    %v518 = vpop.f32.mrb[0].mxu0
    %519 = vmatprep.mubr.f32.mxu0 0.0
    %520 = vmatmul.mubr.f32.gmra.mrb[0].mxu0 %v422
    %v521 = vpop.f32.mrb[0].mxu0
    %v522 = vadd.f32 0.0, %v521
    %v523 = vpop.f32.mrb[0].mxu0
    %524 = vmatprep.mubr.f32.mxu0 0.0
    %525 = vmatmul.mubr.f32.gmra.mrb[0].mxu0 %v425
    %v526 = vpop.f32.mrb[0].mxu0
    %v527 = vadd.f32 0.0, %v526
    %v528 = vpop.f32.mrb[0].mxu0
    %529 = vmatprep.mubr.f32.mxu0 0.0
    %530 = vmatmul.mubr.f32.gmra.mrb[0].mxu0 %v428
    %v531 = vpop.f32.mrb[0].mxu0
    %v532 = vadd.f32 0.0, %v531
    %v533 = vpop.f32.mrb[0].mxu0
    %534 = vdwg.mxu0
    %vm535 = vcmask 326656
    %v536 = vsel %vm535, %v512, -inf
    %537 = vmax.xlane.f32.xlu0 %v536
    %v538 = vpop.xlane.xlu0 %537
    %v539 = vsel %vm535, %v517, -inf
    %540 = vmax.xlane.f32.xlu0 %v539
    %v541 = vpop.xlane.xlu0 %540
    %v542 = vsel %vm535, %v522, -inf
    %543 = vmax.xlane.f32.xlu0 %v542
    %v544 = vpop.xlane.xlu0 %543
    %v545 = vsel %vm535, %v527, -inf
    %546 = vmax.xlane.f32.xlu0 %v545
    %v547 = vpop.xlane.xlu0 %546
    %v548 = vsel %vm535, %v532, -inf
    %549 = vmax.xlane.f32.xlu0 %v548
    %v550 = vpop.xlane.xlu0 %549
    %v551 = vsub.f32 %v512, %v538
    %v552 = vsub.f32 %v517, %v541
    %v553 = vsub.f32 %v522, %v544
    %v554 = vsub.f32 %v527, %v547
    %v555 = vsub.f32 %v532, %v550
    %v556 = vmul.f32 %v551, 1.442695
    %v557 = vpow.pop %v556
    %v558 = vmul.f32 %v552, 1.442695
    %v559 = vpow.pop %v558
    %v560 = vmul.f32 %v553, 1.442695
    %v561 = vpow.pop %v560
    %v562 = vmul.f32 %v554, 1.442695
    %v563 = vpow.pop %v562
    %v564 = vmul.f32 %v555, 1.442695
    %v565 = vpow.pop %v564
    %v566 = vsel %vm535, %v557, 0.0
    %567 = vadd.xlane.f32.xlu0 %v566
    %v568 = vpop.xlane.xlu0 %567
    %v569 = vsel %vm535, %v559, 0.0
    %570 = vadd.xlane.f32.xlu0 %v569
    %v571 = vpop.xlane.xlu0 %570
    %v572 = vsel %vm535, %v561, 0.0
    %573 = vadd.xlane.f32.xlu0 %v572
    %v574 = vpop.xlane.xlu0 %573
    %v575 = vsel %vm535, %v563, 0.0
    %576 = vadd.xlane.f32.xlu0 %v575
    %v577 = vpop.xlane.xlu0 %576
    %v578 = vsel %vm535, %v565, 0.0
    %579 = vadd.xlane.f32.xlu0 %v578
    %v580 = vpop.xlane.xlu0 %579
    %v581 = vrcp.pop %v568
    %v582 = vmul.f32 %v557, %v581
    %v583 = vrcp.pop %v571
    %v584 = vmul.f32 %v559, %v583
    %v585 = vrcp.pop %v574
    %v586 = vmul.f32 %v561, %v585
    %v587 = vrcp.pop %v577
    %v588 = vmul.f32 %v563, %v587
    %v589 = vrcp.pop %v580
    %v590 = vmul.f32 %v565, %v589
    %v592 = vsel %vm535, %v582, 0
    %v595 = vsel %vm535, %v584, 0
    %v598 = vsel %vm535, %v586, 0
    %v601 = vsel %vm535, %v588, 0
    %v604 = vsel %vm535, %v590, 0
    %606 = vmatprep.subr.mxu0 0.0
    %607 = vmatpush1.msra.mxu0 %v351
    %608 = vmatprep.subr.mxu0 0.0
    %609 = vmatpush1.msra.mxu0 %v352
    %610 = vmatprep.subr.mxu0 0.0
    %611 = vmatpush1.msra.mxu0 %v353
    %612 = vmatprep.subr.mxu0 0.0
    %613 = vmatpush1.msra.mxu0 %v354
    %614 = vmatprep.subr.mxu0 0.0
    %615 = vmatpush1.msra.mxu0 %v355
    %616 = vmatprep.subr.mxu0 0.0
    %617 = vmatpush1.msra.mxu0 0.0
    %618 = vmatprep.subr.mxu0 0.0
    %619 = vmatpush1.msra.mxu0 0.0
    %620 = vmatprep.subr.mxu0 0.0
    %621 = vmatpush1.msra.mxu0 0.0
    %622 = vmatprep.subr.mxu0 0.0
    %623 = vmatpush1.msra.mxu0 0.0
    %624 = vmatprep.subr.mxu0 0.0
    %625 = vmatpush1.msra.mxu0 0.0
    %626 = vmatprep.subr.mxu0 0.0
    %627 = vmatpush1.msra.mxu0 0.0
    %628 = vmatprep.subr.mxu0 0.0
    %629 = vmatpush1.msra.mxu0 0.0
    %630 = vmatprep.subr.mxu0 0.0
    %631 = vmatpush1.msra.mxu0 0.0
    %632 = vmatprep.subr.mxu0 0.0
    %633 = vmatpush1.msra.mxu0 0.0
    %634 = vmatprep.subr.mxu0 0.0
    %635 = vmatpush1.msra.mxu0 0.0
    %636 = vmatprep.subr.mxu0 0.0
    %637 = vmatpush1.msra.mxu0 0.0
    %638 = vmatprep.subr.mxu0 0.0
    %639 = vmatpush1.msra.mxu0 0.0
    %640 = vmatprep.subr.mxu0 0.0
    %641 = vmatpush1.msra.mxu0 0.0
    %642 = vmatprep.subr.mxu0 0.0
    %643 = vmatpush1.msra.mxu0 0.0
    %644 = vmatprep.subr.mxu0 0.0
    %645 = vmatpush1.msra.mxu0 0.0
    %646 = vmatprep.subr.mxu0 0.0
    %647 = vmatpush1.msra.mxu0 0.0
    %648 = vmatprep.subr.mxu0 0.0
    %649 = vmatpush1.msra.mxu0 0.0
    %650 = vmatprep.subr.mxu0 0.0
    %651 = vmatpush1.msra.mxu0 0.0
    %652 = vmatprep.subr.mxu0 0.0
    %653 = vmatpush1.msra.mxu0 0.0
    %654 = vmatprep.subr.mxu0 0.0
    %655 = vmatpush1.msra.mxu0 0.0
    %656 = vmatprep.subr.mxu0 0.0
    %657 = vmatpush1.msra.mxu0 0.0
    %658 = vmatprep.subr.mxu0 0.0
    %659 = vmatpush1.msra.mxu0 0.0
    %660 = vmatprep.subr.mxu0 0.0
    %661 = vmatpush1.msra.mxu0 0.0
    %662 = vmatprep.subr.mxu0 0.0
    %663 = vmatpush1.msra.mxu0 0.0
    %664 = vmatprep.subr.mxu0 0.0
    %665 = vmatpush1.msra.mxu0 0.0
    %666 = vmatprep.subr.mxu0 0.0
    %667 = vmatpush1.msra.mxu0 0.0
    %668 = vmatprep.subr.mxu0 0.0
    %669 = vmatpush1.msra.mxu0 0.0
    %670 = vmatprep.mubr.f32.mxu0 0.0
    %671 = vmatmul.mubr.f32.gmra.mrb[0].mxu0 %v592
    %v672 = vpop.f32.mrb[0].mxu0
    %v673 = vadd.f32 0.0, %v672
    %v674 = vpop.f32.mrb[0].mxu0
    %675 = vmatprep.mubr.f32.mxu0 0.0
    %676 = vmatmul.mubr.f32.gmra.mrb[0].mxu0 %v595
    %v677 = vpop.f32.mrb[0].mxu0
    %v678 = vadd.f32 0.0, %v677
    %v679 = vpop.f32.mrb[0].mxu0
    %680 = vmatprep.mubr.f32.mxu0 0.0
    %681 = vmatmul.mubr.f32.gmra.mrb[0].mxu0 %v598
    %v682 = vpop.f32.mrb[0].mxu0
    %v683 = vadd.f32 0.0, %v682
    %v684 = vpop.f32.mrb[0].mxu0
    %685 = vmatprep.mubr.f32.mxu0 0.0
    %686 = vmatmul.mubr.f32.gmra.mrb[0].mxu0 %v601
    %v687 = vpop.f32.mrb[0].mxu0
    %v688 = vadd.f32 0.0, %v687
    %v689 = vpop.f32.mrb[0].mxu0
    %690 = vmatprep.mubr.f32.mxu0 0.0
    %691 = vmatmul.mubr.f32.gmra.mrb[0].mxu0 %v604
    %v692 = vpop.f32.mrb[0].mxu0
    %v693 = vadd.f32 0.0, %v692
    %v694 = vpop.f32.mrb[0].mxu0
    %695 = vdwg.mxu0
    %696 = vst.msk [vmem:[#allocation2] sm:$0xff] %vm414, %v673
    %697 = vst.msk [vmem:[#allocation2 + $0x8] sm:$0xff] %vm414, %v678
    %698 = vst.msk [vmem:[#allocation2 + $0x10] sm:$0xff] %vm414, %v683
    %699 = vst.msk [vmem:[#allocation2 + $0x18] sm:$0xff] %vm414, %v688
    %700 = vst.msk [vmem:[#allocation2 + $0x20] sm:$0xff] %vm414, %v693
    %701 = vrot.lane.b32.xlu0 %v31, 112
    %v702 = vpop.permute.xlu0 %701
    %703 = vrot.lane.b32.xlu0 %v32, 112
    %v704 = vpop.permute.xlu0 %703
    %705 = vrot.lane.b32.xlu0 %v33, 112
    %v706 = vpop.permute.xlu0 %705
    %707 = vrot.lane.b32.xlu0 %v34, 112
    %v708 = vpop.permute.xlu0 %707
    %709 = vrot.lane.b32.xlu0 %v35, 112
    %v710 = vpop.permute.xlu0 %709
    %711 = vrot.lane.b32.xlu0 %v308, 112
    %v712 = vpop.permute.xlu0 %711
    %713 = vrot.lane.b32.xlu0 %v309, 112
    %v714 = vpop.permute.xlu0 %713
    %715 = vrot.lane.b32.xlu0 %v310, 112
    %v716 = vpop.permute.xlu0 %715
    %717 = vrot.lane.b32.xlu0 %v311, 112
    %v718 = vpop.permute.xlu0 %717
    %719 = vrot.lane.b32.xlu0 %v312, 112
    %v720 = vpop.permute.xlu0 %719
    %v721 = vsel %vm414, %v702, 0
    %v723 = vsel %vm414, %v704, 0
    %v725 = vsel %vm414, %v706, 0
    %v727 = vsel %vm414, %v708, 0
    %v729 = vsel %vm414, %v710, 0
    %v731 = vsel %vm414, %v712, 0
    %v733 = vsel %vm414, %v714, 0
    %v735 = vsel %vm414, %v716, 0
    %v737 = vsel %vm414, %v718, 0
    %v739 = vsel %vm414, %v720, 0
    %741 = vmatprep.subr.mxu0 0.0
    %742 = vmatpush1.xpose.msra.mxu0 %v731
    %743 = vmatprep.subr.mxu0 0.0
    %744 = vmatpush1.xpose.msra.mxu0 %v733
    %745 = vmatprep.subr.mxu0 0.0
    %746 = vmatpush1.xpose.msra.mxu0 %v735
    %747 = vmatprep.subr.mxu0 0.0
    %748 = vmatpush1.xpose.msra.mxu0 %v737
    %749 = vmatprep.subr.mxu0 0.0
    %750 = vmatpush1.xpose.msra.mxu0 %v739
    %751 = vmatprep.subr.mxu0 0.0
    %752 = vmatpush1.xpose.msra.mxu0 0.0
    %753 = vmatprep.subr.mxu0 0.0
    %754 = vmatpush1.xpose.msra.mxu0 0.0
    %755 = vmatprep.subr.mxu0 0.0
    %756 = vmatpush1.xpose.msra.mxu0 0.0
    %757 = vmatprep.subr.mxu0 0.0
    %758 = vmatpush1.xpose.msra.mxu0 0.0
    %759 = vmatprep.subr.mxu0 0.0
    %760 = vmatpush1.xpose.msra.mxu0 0.0
    %761 = vmatprep.subr.mxu0 0.0
    %762 = vmatpush1.xpose.msra.mxu0 0.0
    %763 = vmatprep.subr.mxu0 0.0
    %764 = vmatpush1.xpose.msra.mxu0 0.0
    %765 = vmatprep.subr.mxu0 0.0
    %766 = vmatpush1.xpose.msra.mxu0 0.0
    %767 = vmatprep.subr.mxu0 0.0
    %768 = vmatpush1.xpose.msra.mxu0 0.0
    %769 = vmatprep.subr.mxu0 0.0
    %770 = vmatpush1.xpose.msra.mxu0 0.0
    %771 = vmatprep.subr.mxu0 0.0
    %772 = vmatpush1.xpose.msra.mxu0 0.0
    %773 = vmatprep.subr.mxu0 0.0
    %774 = vmatpush1.xpose.msra.mxu0 0.0
    %775 = vmatprep.subr.mxu0 0.0
    %776 = vmatpush1.xpose.msra.mxu0 0.0
    %777 = vmatprep.subr.mxu0 0.0
    %778 = vmatpush1.xpose.msra.mxu0 0.0
    %779 = vmatprep.subr.mxu0 0.0
    %780 = vmatpush1.xpose.msra.mxu0 0.0
    %781 = vmatprep.subr.mxu0 0.0
    %782 = vmatpush1.xpose.msra.mxu0 0.0
    %783 = vmatprep.subr.mxu0 0.0
    %784 = vmatpush1.xpose.msra.mxu0 0.0
    %785 = vmatprep.subr.mxu0 0.0
    %786 = vmatpush1.xpose.msra.mxu0 0.0
    %787 = vmatprep.subr.mxu0 0.0
    %788 = vmatpush1.xpose.msra.mxu0 0.0
    %789 = vmatprep.subr.mxu0 0.0
    %790 = vmatpush1.xpose.msra.mxu0 0.0
    %791 = vmatprep.subr.mxu0 0.0
    %792 = vmatpush1.xpose.msra.mxu0 0.0
    %793 = vmatprep.subr.mxu0 0.0
    %794 = vmatpush1.xpose.msra.mxu0 0.0
    %795 = vmatprep.subr.mxu0 0.0
    %796 = vmatpush1.xpose.msra.mxu0 0.0
    %797 = vmatprep.subr.mxu0 0.0
    %798 = vmatpush1.xpose.msra.mxu0 0.0
    %799 = vmatprep.subr.mxu0 0.0
    %800 = vmatpush1.xpose.msra.mxu0 0.0
    %801 = vmatprep.subr.mxu0 0.0
    %802 = vmatpush1.xpose.msra.mxu0 0.0
    %803 = vmatprep.subr.mxu0 0.0
    %804 = vmatpush1.xpose.msra.mxu0 0.0
    %805 = vmatprep.mubr.f32.mxu0 0.0
    %806 = vmatmul.mubr.f32.gmra.mrb[0].mxu0 %v721
    %v807 = vpop.f32.mrb[0].mxu0
    %v808 = vadd.f32 0.0, %v807
    %v809 = vpop.f32.mrb[0].mxu0
    %810 = vmatprep.mubr.f32.mxu0 0.0
    %811 = vmatmul.mubr.f32.gmra.mrb[0].mxu0 %v723
    %v812 = vpop.f32.mrb[0].mxu0
    %v813 = vadd.f32 0.0, %v812
    %v814 = vpop.f32.mrb[0].mxu0
    %815 = vmatprep.mubr.f32.mxu0 0.0
    %816 = vmatmul.mubr.f32.gmra.mrb[0].mxu0 %v725
    %v817 = vpop.f32.mrb[0].mxu0
    %v818 = vadd.f32 0.0, %v817
    %v819 = vpop.f32.mrb[0].mxu0
    %820 = vmatprep.mubr.f32.mxu0 0.0
    %821 = vmatmul.mubr.f32.gmra.mrb[0].mxu0 %v727
    %v822 = vpop.f32.mrb[0].mxu0
    %v823 = vadd.f32 0.0, %v822
    %v824 = vpop.f32.mrb[0].mxu0
    %825 = vmatprep.mubr.f32.mxu0 0.0
    %826 = vmatmul.mubr.f32.gmra.mrb[0].mxu0 %v729
    %v827 = vpop.f32.mrb[0].mxu0
    %v828 = vadd.f32 0.0, %v827
    %v829 = vpop.f32.mrb[0].mxu0
    %830 = vdwg.mxu0
    %v831 = vsel %vm535, %v808, -inf
    %832 = vmax.xlane.f32.xlu0 %v831
    %v833 = vpop.xlane.xlu0 %832
    %v834 = vsel %vm535, %v813, -inf
    %835 = vmax.xlane.f32.xlu0 %v834
    %v836 = vpop.xlane.xlu0 %835
    %v837 = vsel %vm535, %v818, -inf
    %838 = vmax.xlane.f32.xlu0 %v837
    %v839 = vpop.xlane.xlu0 %838
    %v840 = vsel %vm535, %v823, -inf
    %841 = vmax.xlane.f32.xlu0 %v840
    %v842 = vpop.xlane.xlu0 %841
    %v843 = vsel %vm535, %v828, -inf
    %844 = vmax.xlane.f32.xlu0 %v843
    %v845 = vpop.xlane.xlu0 %844
    %v846 = vsub.f32 %v808, %v833
    %v847 = vsub.f32 %v813, %v836
    %v848 = vsub.f32 %v818, %v839
    %v849 = vsub.f32 %v823, %v842
    %v850 = vsub.f32 %v828, %v845
    %v851 = vmul.f32 %v846, 1.442695
    %v852 = vpow.pop %v851
    %v853 = vmul.f32 %v847, 1.442695
    %v854 = vpow.pop %v853
    %v855 = vmul.f32 %v848, 1.442695
    %v856 = vpow.pop %v855
    %v857 = vmul.f32 %v849, 1.442695
    %v858 = vpow.pop %v857
    %v859 = vmul.f32 %v850, 1.442695
    %v860 = vpow.pop %v859
    %v861 = vsel %vm535, %v852, 0.0
    %862 = vadd.xlane.f32.xlu0 %v861
    %v863 = vpop.xlane.xlu0 %862
    %v864 = vsel %vm535, %v854, 0.0
    %865 = vadd.xlane.f32.xlu0 %v864
    %v866 = vpop.xlane.xlu0 %865
    %v867 = vsel %vm535, %v856, 0.0
    %868 = vadd.xlane.f32.xlu0 %v867
    %v869 = vpop.xlane.xlu0 %868
    %v870 = vsel %vm535, %v858, 0.0
    %871 = vadd.xlane.f32.xlu0 %v870
    %v872 = vpop.xlane.xlu0 %871
    %v873 = vsel %vm535, %v860, 0.0
    %874 = vadd.xlane.f32.xlu0 %v873
    %v875 = vpop.xlane.xlu0 %874
    %v876 = vrcp.pop %v863
    %v877 = vmul.f32 %v852, %v876
    %v878 = vrcp.pop %v866
    %v879 = vmul.f32 %v854, %v878
    %v880 = vrcp.pop %v869
    %v881 = vmul.f32 %v856, %v880
    %v882 = vrcp.pop %v872
    %v883 = vmul.f32 %v858, %v882
    %v884 = vrcp.pop %v875
    %v885 = vmul.f32 %v860, %v884
    %891 = vrot.lane.b32.xlu0 %v351, 112
    %v892 = vpop.permute.xlu0 %891
    %893 = vrot.lane.b32.xlu0 %v352, 112
    %v894 = vpop.permute.xlu0 %893
    %895 = vrot.lane.b32.xlu0 %v353, 112
    %v896 = vpop.permute.xlu0 %895
    %897 = vrot.lane.b32.xlu0 %v354, 112
    %v898 = vpop.permute.xlu0 %897
    %899 = vrot.lane.b32.xlu0 %v355, 112
    %v900 = vpop.permute.xlu0 %899
    %v907 = vsel %vm535, %v877, 0
    %v910 = vsel %vm535, %v879, 0
    %v913 = vsel %vm535, %v881, 0
    %v916 = vsel %vm535, %v883, 0
    %v919 = vsel %vm535, %v885, 0
    %921 = vmatprep.subr.mxu0 0.0
    %922 = vmatpush1.msra.mxu0 %v892
    %923 = vmatprep.subr.mxu0 0.0
    %924 = vmatpush1.msra.mxu0 %v894
    %925 = vmatprep.subr.mxu0 0.0
    %926 = vmatpush1.msra.mxu0 %v896
    %927 = vmatprep.subr.mxu0 0.0
    %928 = vmatpush1.msra.mxu0 %v898
    %929 = vmatprep.subr.mxu0 0.0
    %930 = vmatpush1.msra.mxu0 %v900
    %931 = vmatprep.subr.mxu0 0.0
    %932 = vmatpush1.msra.mxu0 0.0
    %933 = vmatprep.subr.mxu0 0.0
    %934 = vmatpush1.msra.mxu0 0.0
    %935 = vmatprep.subr.mxu0 0.0
    %936 = vmatpush1.msra.mxu0 0.0
    %937 = vmatprep.subr.mxu0 0.0
    %938 = vmatpush1.msra.mxu0 0.0
    %939 = vmatprep.subr.mxu0 0.0
    %940 = vmatpush1.msra.mxu0 0.0
    %941 = vmatprep.subr.mxu0 0.0
    %942 = vmatpush1.msra.mxu0 0.0
    %943 = vmatprep.subr.mxu0 0.0
    %944 = vmatpush1.msra.mxu0 0.0
    %945 = vmatprep.subr.mxu0 0.0
    %946 = vmatpush1.msra.mxu0 0.0
    %947 = vmatprep.subr.mxu0 0.0
    %948 = vmatpush1.msra.mxu0 0.0
    %949 = vmatprep.subr.mxu0 0.0
    %950 = vmatpush1.msra.mxu0 0.0
    %951 = vmatprep.subr.mxu0 0.0
    %952 = vmatpush1.msra.mxu0 0.0
    %953 = vmatprep.subr.mxu0 0.0
    %954 = vmatpush1.msra.mxu0 0.0
    %955 = vmatprep.subr.mxu0 0.0
    %956 = vmatpush1.msra.mxu0 0.0
    %957 = vmatprep.subr.mxu0 0.0
    %958 = vmatpush1.msra.mxu0 0.0
    %959 = vmatprep.subr.mxu0 0.0
    %960 = vmatpush1.msra.mxu0 0.0
    %961 = vmatprep.subr.mxu0 0.0
    %962 = vmatpush1.msra.mxu0 0.0
    %963 = vmatprep.subr.mxu0 0.0
    %964 = vmatpush1.msra.mxu0 0.0
    %965 = vmatprep.subr.mxu0 0.0
    %966 = vmatpush1.msra.mxu0 0.0
    %967 = vmatprep.subr.mxu0 0.0
    %968 = vmatpush1.msra.mxu0 0.0
    %969 = vmatprep.subr.mxu0 0.0
    %970 = vmatpush1.msra.mxu0 0.0
    %971 = vmatprep.subr.mxu0 0.0
    %972 = vmatpush1.msra.mxu0 0.0
    %973 = vmatprep.subr.mxu0 0.0
    %974 = vmatpush1.msra.mxu0 0.0
    %975 = vmatprep.subr.mxu0 0.0
    %976 = vmatpush1.msra.mxu0 0.0
    %977 = vmatprep.subr.mxu0 0.0
    %978 = vmatpush1.msra.mxu0 0.0
    %979 = vmatprep.subr.mxu0 0.0
    %980 = vmatpush1.msra.mxu0 0.0
    %981 = vmatprep.subr.mxu0 0.0
    %982 = vmatpush1.msra.mxu0 0.0
    %983 = vmatprep.subr.mxu0 0.0
    %984 = vmatpush1.msra.mxu0 0.0
    %985 = vmatprep.mubr.f32.mxu0 0.0
    %986 = vmatmul.mubr.f32.gmra.mrb[0].mxu0 %v907
    %v987 = vpop.f32.mrb[0].mxu0
    %v988 = vadd.f32 0.0, %v987
    %v989 = vpop.f32.mrb[0].mxu0
    %990 = vmatprep.mubr.f32.mxu0 0.0
    %991 = vmatmul.mubr.f32.gmra.mrb[0].mxu0 %v910
    %v992 = vpop.f32.mrb[0].mxu0
    %v993 = vadd.f32 0.0, %v992
    %v994 = vpop.f32.mrb[0].mxu0
    %995 = vmatprep.mubr.f32.mxu0 0.0
    %996 = vmatmul.mubr.f32.gmra.mrb[0].mxu0 %v913
    %v997 = vpop.f32.mrb[0].mxu0
    %v998 = vadd.f32 0.0, %v997
    %v999 = vpop.f32.mrb[0].mxu0
    %1000 = vmatprep.mubr.f32.mxu0 0.0
    %1001 = vmatmul.mubr.f32.gmra.mrb[0].mxu0 %v916
    %v1002 = vpop.f32.mrb[0].mxu0
    %v1003 = vadd.f32 0.0, %v1002
    %v1004 = vpop.f32.mrb[0].mxu0
    %1005 = vmatprep.mubr.f32.mxu0 0.0
    %1006 = vmatmul.mubr.f32.gmra.mrb[0].mxu0 %v919
    %v1007 = vpop.f32.mrb[0].mxu0
    %v1008 = vadd.f32 0.0, %v1007
    %v1009 = vpop.f32.mrb[0].mxu0
    %1010 = vdwg.mxu0
    %1016 = vrot.lane.b32.xlu0 %v988, 16
    %v1017 = vpop.permute.xlu0 %1016
    %1018 = vrot.lane.b32.xlu0 %v993, 16
    %v1019 = vpop.permute.xlu0 %1018
    %1020 = vrot.lane.b32.xlu0 %v998, 16
    %v1021 = vpop.permute.xlu0 %1020
    %1022 = vrot.lane.b32.xlu0 %v1003, 16
    %v1023 = vpop.permute.xlu0 %1022
    %1024 = vrot.lane.b32.xlu0 %v1008, 16
    %v1025 = vpop.permute.xlu0 %1024
    %vm1031 = vcmask 261248
    %1032 = vst.msk [vmem:[#allocation2] sm:$0xff] %vm1031, %v1017
    %1033 = vst.msk [vmem:[#allocation2 + $0x8] sm:$0xff] %vm1031, %v1019
    %1034 = vst.msk [vmem:[#allocation2 + $0x10] sm:$0xff] %vm1031, %v1021
    %1035 = vst.msk [vmem:[#allocation2 + $0x18] sm:$0xff] %vm1031, %v1023
    %1036 = vst.msk [vmem:[#allocation2 + $0x20] sm:$0xff] %vm1031, %v1025
    %1037 = vrot.lane.b32.xlu0 %v31, 96
    %v1038 = vpop.permute.xlu0 %1037
    %1039 = vrot.lane.b32.xlu0 %v32, 96
    %v1040 = vpop.permute.xlu0 %1039
    %1041 = vrot.lane.b32.xlu0 %v33, 96
    %v1042 = vpop.permute.xlu0 %1041
    %1043 = vrot.lane.b32.xlu0 %v34, 96
    %v1044 = vpop.permute.xlu0 %1043
    %1045 = vrot.lane.b32.xlu0 %v35, 96
    %v1046 = vpop.permute.xlu0 %1045
    %1047 = vrot.lane.b32.xlu0 %v308, 96
    %v1048 = vpop.permute.xlu0 %1047
    %1049 = vrot.lane.b32.xlu0 %v309, 96
    %v1050 = vpop.permute.xlu0 %1049
    %1051 = vrot.lane.b32.xlu0 %v310, 96
    %v1052 = vpop.permute.xlu0 %1051
    %1053 = vrot.lane.b32.xlu0 %v311, 96
    %v1054 = vpop.permute.xlu0 %1053
    %1055 = vrot.lane.b32.xlu0 %v312, 96
    %v1056 = vpop.permute.xlu0 %1055
    %v1057 = vsel %vm414, %v1038, 0
    %v1059 = vsel %vm414, %v1040, 0
    %v1061 = vsel %vm414, %v1042, 0
    %v1063 = vsel %vm414, %v1044, 0
    %v1065 = vsel %vm414, %v1046, 0
    %v1067 = vsel %vm414, %v1048, 0
    %v1069 = vsel %vm414, %v1050, 0
    %v1071 = vsel %vm414, %v1052, 0
    %v1073 = vsel %vm414, %v1054, 0
    %v1075 = vsel %vm414, %v1056, 0
    %1077 = vmatprep.subr.mxu0 0.0
    %1078 = vmatpush1.xpose.msra.mxu0 %v1067
    %1079 = vmatprep.subr.mxu0 0.0
    %1080 = vmatpush1.xpose.msra.mxu0 %v1069
    %1081 = vmatprep.subr.mxu0 0.0
    %1082 = vmatpush1.xpose.msra.mxu0 %v1071
    %1083 = vmatprep.subr.mxu0 0.0
    %1084 = vmatpush1.xpose.msra.mxu0 %v1073
    %1085 = vmatprep.subr.mxu0 0.0
    %1086 = vmatpush1.xpose.msra.mxu0 %v1075
    %1087 = vmatprep.subr.mxu0 0.0
    %1088 = vmatpush1.xpose.msra.mxu0 0.0
    %1089 = vmatprep.subr.mxu0 0.0
    %1090 = vmatpush1.xpose.msra.mxu0 0.0
    %1091 = vmatprep.subr.mxu0 0.0
    %1092 = vmatpush1.xpose.msra.mxu0 0.0
    %1093 = vmatprep.subr.mxu0 0.0
    %1094 = vmatpush1.xpose.msra.mxu0 0.0
    %1095 = vmatprep.subr.mxu0 0.0
    %1096 = vmatpush1.xpose.msra.mxu0 0.0
    %1097 = vmatprep.subr.mxu0 0.0
    %1098 = vmatpush1.xpose.msra.mxu0 0.0
    %1099 = vmatprep.subr.mxu0 0.0
    %1100 = vmatpush1.xpose.msra.mxu0 0.0
    %1101 = vmatprep.subr.mxu0 0.0
    %1102 = vmatpush1.xpose.msra.mxu0 0.0
    %1103 = vmatprep.subr.mxu0 0.0
    %1104 = vmatpush1.xpose.msra.mxu0 0.0
    %1105 = vmatprep.subr.mxu0 0.0
    %1106 = vmatpush1.xpose.msra.mxu0 0.0
    %1107 = vmatprep.subr.mxu0 0.0
    %1108 = vmatpush1.xpose.msra.mxu0 0.0
    %1109 = vmatprep.subr.mxu0 0.0
    %1110 = vmatpush1.xpose.msra.mxu0 0.0
    %1111 = vmatprep.subr.mxu0 0.0
    %1112 = vmatpush1.xpose.msra.mxu0 0.0
    %1113 = vmatprep.subr.mxu0 0.0
    %1114 = vmatpush1.xpose.msra.mxu0 0.0
    %1115 = vmatprep.subr.mxu0 0.0
    %1116 = vmatpush1.xpose.msra.mxu0 0.0
    %1117 = vmatprep.subr.mxu0 0.0
    %1118 = vmatpush1.xpose.msra.mxu0 0.0
    %1119 = vmatprep.subr.mxu0 0.0
    %1120 = vmatpush1.xpose.msra.mxu0 0.0
    %1121 = vmatprep.subr.mxu0 0.0
    %1122 = vmatpush1.xpose.msra.mxu0 0.0
    %1123 = vmatprep.subr.mxu0 0.0
    %1124 = vmatpush1.xpose.msra.mxu0 0.0
    %1125 = vmatprep.subr.mxu0 0.0
    %1126 = vmatpush1.xpose.msra.mxu0 0.0
    %1127 = vmatprep.subr.mxu0 0.0
    %1128 = vmatpush1.xpose.msra.mxu0 0.0
    %1129 = vmatprep.subr.mxu0 0.0
    %1130 = vmatpush1.xpose.msra.mxu0 0.0
    %1131 = vmatprep.subr.mxu0 0.0
    %1132 = vmatpush1.xpose.msra.mxu0 0.0
    %1133 = vmatprep.subr.mxu0 0.0
    %1134 = vmatpush1.xpose.msra.mxu0 0.0
    %1135 = vmatprep.subr.mxu0 0.0
    %1136 = vmatpush1.xpose.msra.mxu0 0.0
    %1137 = vmatprep.subr.mxu0 0.0
    %1138 = vmatpush1.xpose.msra.mxu0 0.0
    %1139 = vmatprep.subr.mxu0 0.0
    %1140 = vmatpush1.xpose.msra.mxu0 0.0
    %1141 = vmatprep.mubr.f32.mxu0 0.0
    %1142 = vmatmul.mubr.f32.gmra.mrb[0].mxu0 %v1057
    %v1143 = vpop.f32.mrb[0].mxu0
    %v1144 = vadd.f32 0.0, %v1143
    %v1145 = vpop.f32.mrb[0].mxu0
    %1146 = vmatprep.mubr.f32.mxu0 0.0
    %1147 = vmatmul.mubr.f32.gmra.mrb[0].mxu0 %v1059
    %v1148 = vpop.f32.mrb[0].mxu0
    %v1149 = vadd.f32 0.0, %v1148
    %v1150 = vpop.f32.mrb[0].mxu0
    %1151 = vmatprep.mubr.f32.mxu0 0.0
    %1152 = vmatmul.mubr.f32.gmra.mrb[0].mxu0 %v1061
    %v1153 = vpop.f32.mrb[0].mxu0
    %v1154 = vadd.f32 0.0, %v1153
    %v1155 = vpop.f32.mrb[0].mxu0
    %1156 = vmatprep.mubr.f32.mxu0 0.0
    %1157 = vmatmul.mubr.f32.gmra.mrb[0].mxu0 %v1063
    %v1158 = vpop.f32.mrb[0].mxu0
    %v1159 = vadd.f32 0.0, %v1158
    %v1160 = vpop.f32.mrb[0].mxu0
    %1161 = vmatprep.mubr.f32.mxu0 0.0
    %1162 = vmatmul.mubr.f32.gmra.mrb[0].mxu0 %v1065
    %v1163 = vpop.f32.mrb[0].mxu0
    %v1164 = vadd.f32 0.0, %v1163
    %v1165 = vpop.f32.mrb[0].mxu0
    %1166 = vdwg.mxu0
    %v1167 = vsel %vm535, %v1144, -inf
    %1168 = vmax.xlane.f32.xlu0 %v1167
    %v1169 = vpop.xlane.xlu0 %1168
    %v1170 = vsel %vm535, %v1149, -inf
    %1171 = vmax.xlane.f32.xlu0 %v1170
    %v1172 = vpop.xlane.xlu0 %1171
    %v1173 = vsel %vm535, %v1154, -inf
    %1174 = vmax.xlane.f32.xlu0 %v1173
    %v1175 = vpop.xlane.xlu0 %1174
    %v1176 = vsel %vm535, %v1159, -inf
    %1177 = vmax.xlane.f32.xlu0 %v1176
    %v1178 = vpop.xlane.xlu0 %1177
    %v1179 = vsel %vm535, %v1164, -inf
    %1180 = vmax.xlane.f32.xlu0 %v1179
    %v1181 = vpop.xlane.xlu0 %1180
    %v1182 = vsub.f32 %v1144, %v1169
    %v1183 = vsub.f32 %v1149, %v1172
    %v1184 = vsub.f32 %v1154, %v1175
    %v1185 = vsub.f32 %v1159, %v1178
    %v1186 = vsub.f32 %v1164, %v1181
    %v1187 = vmul.f32 %v1182, 1.442695
    %v1188 = vpow.pop %v1187
    %v1189 = vmul.f32 %v1183, 1.442695
    %v1190 = vpow.pop %v1189
    %v1191 = vmul.f32 %v1184, 1.442695
    %v1192 = vpow.pop %v1191
    %v1193 = vmul.f32 %v1185, 1.442695
    %v1194 = vpow.pop %v1193
    %v1195 = vmul.f32 %v1186, 1.442695
    %v1196 = vpow.pop %v1195
    %v1197 = vsel %vm535, %v1188, 0.0
    %1198 = vadd.xlane.f32.xlu0 %v1197
    %v1199 = vpop.xlane.xlu0 %1198
    %v1200 = vsel %vm535, %v1190, 0.0
    %1201 = vadd.xlane.f32.xlu0 %v1200
    %v1202 = vpop.xlane.xlu0 %1201
    %v1203 = vsel %vm535, %v1192, 0.0
    %1204 = vadd.xlane.f32.xlu0 %v1203
    %v1205 = vpop.xlane.xlu0 %1204
    %v1206 = vsel %vm535, %v1194, 0.0
    %1207 = vadd.xlane.f32.xlu0 %v1206
    %v1208 = vpop.xlane.xlu0 %1207
    %v1209 = vsel %vm535, %v1196, 0.0
    %1210 = vadd.xlane.f32.xlu0 %v1209
    %v1211 = vpop.xlane.xlu0 %1210
    %v1212 = vrcp.pop %v1199
    %v1213 = vmul.f32 %v1188, %v1212
    %v1214 = vrcp.pop %v1202
    %v1215 = vmul.f32 %v1190, %v1214
    %v1216 = vrcp.pop %v1205
    %v1217 = vmul.f32 %v1192, %v1216
    %v1218 = vrcp.pop %v1208
    %v1219 = vmul.f32 %v1194, %v1218
    %v1220 = vrcp.pop %v1211
    %v1221 = vmul.f32 %v1196, %v1220
    %1222 = vrot.lane.b32.xlu0 %v351, 96
    %v1223 = vpop.permute.xlu0 %1222
    %1224 = vrot.lane.b32.xlu0 %v352, 96
    %v1225 = vpop.permute.xlu0 %1224
    %1226 = vrot.lane.b32.xlu0 %v353, 96
    %v1227 = vpop.permute.xlu0 %1226
    %1228 = vrot.lane.b32.xlu0 %v354, 96
    %v1229 = vpop.permute.xlu0 %1228
    %1230 = vrot.lane.b32.xlu0 %v355, 96
    %v1231 = vpop.permute.xlu0 %1230
    %v1238 = vsel %vm535, %v1213, 0
    %v1241 = vsel %vm535, %v1215, 0
    %v1244 = vsel %vm535, %v1217, 0
    %v1247 = vsel %vm535, %v1219, 0
    %v1250 = vsel %vm535, %v1221, 0
    %1252 = vmatprep.subr.mxu0 0.0
    %1253 = vmatpush1.msra.mxu0 %v1223
    %1254 = vmatprep.subr.mxu0 0.0
    %1255 = vmatpush1.msra.mxu0 %v1225
    %1256 = vmatprep.subr.mxu0 0.0
    %1257 = vmatpush1.msra.mxu0 %v1227
    %1258 = vmatprep.subr.mxu0 0.0
    %1259 = vmatpush1.msra.mxu0 %v1229
    %1260 = vmatprep.subr.mxu0 0.0
    %1261 = vmatpush1.msra.mxu0 %v1231
    %1262 = vmatprep.subr.mxu0 0.0
    %1263 = vmatpush1.msra.mxu0 0.0
    %1264 = vmatprep.subr.mxu0 0.0
    %1265 = vmatpush1.msra.mxu0 0.0
    %1266 = vmatprep.subr.mxu0 0.0
    %1267 = vmatpush1.msra.mxu0 0.0
    %1268 = vmatprep.subr.mxu0 0.0
    %1269 = vmatpush1.msra.mxu0 0.0
    %1270 = vmatprep.subr.mxu0 0.0
    %1271 = vmatpush1.msra.mxu0 0.0
    %1272 = vmatprep.subr.mxu0 0.0
    %1273 = vmatpush1.msra.mxu0 0.0
    %1274 = vmatprep.subr.mxu0 0.0
    %1275 = vmatpush1.msra.mxu0 0.0
    %1276 = vmatprep.subr.mxu0 0.0
    %1277 = vmatpush1.msra.mxu0 0.0
    %1278 = vmatprep.subr.mxu0 0.0
    %1279 = vmatpush1.msra.mxu0 0.0
    %1280 = vmatprep.subr.mxu0 0.0
    %1281 = vmatpush1.msra.mxu0 0.0
    %1282 = vmatprep.subr.mxu0 0.0
    %1283 = vmatpush1.msra.mxu0 0.0
    %1284 = vmatprep.subr.mxu0 0.0
    %1285 = vmatpush1.msra.mxu0 0.0
    %1286 = vmatprep.subr.mxu0 0.0
    %1287 = vmatpush1.msra.mxu0 0.0
    %1288 = vmatprep.subr.mxu0 0.0
    %1289 = vmatpush1.msra.mxu0 0.0
    %1290 = vmatprep.subr.mxu0 0.0
    %1291 = vmatpush1.msra.mxu0 0.0
    %1292 = vmatprep.subr.mxu0 0.0
    %1293 = vmatpush1.msra.mxu0 0.0
    %1294 = vmatprep.subr.mxu0 0.0
    %1295 = vmatpush1.msra.mxu0 0.0
    %1296 = vmatprep.subr.mxu0 0.0
    %1297 = vmatpush1.msra.mxu0 0.0
    %1298 = vmatprep.subr.mxu0 0.0
    %1299 = vmatpush1.msra.mxu0 0.0
    %1300 = vmatprep.subr.mxu0 0.0
    %1301 = vmatpush1.msra.mxu0 0.0
    %1302 = vmatprep.subr.mxu0 0.0
    %1303 = vmatpush1.msra.mxu0 0.0
    %1304 = vmatprep.subr.mxu0 0.0
    %1305 = vmatpush1.msra.mxu0 0.0
    %1306 = vmatprep.subr.mxu0 0.0
    %1307 = vmatpush1.msra.mxu0 0.0
    %1308 = vmatprep.subr.mxu0 0.0
    %1309 = vmatpush1.msra.mxu0 0.0
    %1310 = vmatprep.subr.mxu0 0.0
    %1311 = vmatpush1.msra.mxu0 0.0
    %1312 = vmatprep.subr.mxu0 0.0
    %1313 = vmatpush1.msra.mxu0 0.0
    %1314 = vmatprep.subr.mxu0 0.0
    %1315 = vmatpush1.msra.mxu0 0.0
    %1316 = vmatprep.mubr.f32.mxu0 0.0
    %1317 = vmatmul.mubr.f32.gmra.mrb[0].mxu0 %v1238
    %v1318 = vpop.f32.mrb[0].mxu0
    %v1319 = vadd.f32 0.0, %v1318
    %v1320 = vpop.f32.mrb[0].mxu0
    %1321 = vmatprep.mubr.f32.mxu0 0.0
    %1322 = vmatmul.mubr.f32.gmra.mrb[0].mxu0 %v1241
    %v1323 = vpop.f32.mrb[0].mxu0
    %v1324 = vadd.f32 0.0, %v1323
    %v1325 = vpop.f32.mrb[0].mxu0
    %1326 = vmatprep.mubr.f32.mxu0 0.0
    %1327 = vmatmul.mubr.f32.gmra.mrb[0].mxu0 %v1244
    %v1328 = vpop.f32.mrb[0].mxu0
    %v1329 = vadd.f32 0.0, %v1328
    %v1330 = vpop.f32.mrb[0].mxu0
    %1331 = vmatprep.mubr.f32.mxu0 0.0
    %1332 = vmatmul.mubr.f32.gmra.mrb[0].mxu0 %v1247
    %v1333 = vpop.f32.mrb[0].mxu0
    %v1334 = vadd.f32 0.0, %v1333
    %v1335 = vpop.f32.mrb[0].mxu0
    %1336 = vmatprep.mubr.f32.mxu0 0.0
    %1337 = vmatmul.mubr.f32.gmra.mrb[0].mxu0 %v1250
    %v1338 = vpop.f32.mrb[0].mxu0
    %v1339 = vadd.f32 0.0, %v1338
    %v1340 = vpop.f32.mrb[0].mxu0
    %1341 = vdwg.mxu0
    %1347 = vrot.lane.b32.xlu0 %v1319, 32
    %v1348 = vpop.permute.xlu0 %1347
    %1349 = vrot.lane.b32.xlu0 %v1324, 32
    %v1350 = vpop.permute.xlu0 %1349
    %1351 = vrot.lane.b32.xlu0 %v1329, 32
    %v1352 = vpop.permute.xlu0 %1351
    %1353 = vrot.lane.b32.xlu0 %v1334, 32
    %v1354 = vpop.permute.xlu0 %1353
    %1355 = vrot.lane.b32.xlu0 %v1339, 32
    %v1356 = vpop.permute.xlu0 %1355
    %vm1362 = vcmask 392448
    %1363 = vst.msk [vmem:[#allocation2] sm:$0xff] %vm1362, %v1348
    %1364 = vst.msk [vmem:[#allocation2 + $0x8] sm:$0xff] %vm1362, %v1350
    %1365 = vst.msk [vmem:[#allocation2 + $0x10] sm:$0xff] %vm1362, %v1352
    %1366 = vst.msk [vmem:[#allocation2 + $0x18] sm:$0xff] %vm1362, %v1354
    %1367 = vst.msk [vmem:[#allocation2 + $0x20] sm:$0xff] %vm1362, %v1356
    %1368 = vrot.lane.b32.xlu0 %v31, 80
    %v1369 = vpop.permute.xlu0 %1368
    %1370 = vrot.lane.b32.xlu0 %v32, 80
    %v1371 = vpop.permute.xlu0 %1370
    %1372 = vrot.lane.b32.xlu0 %v33, 80
    %v1373 = vpop.permute.xlu0 %1372
    %1374 = vrot.lane.b32.xlu0 %v34, 80
    %v1375 = vpop.permute.xlu0 %1374
    %1376 = vrot.lane.b32.xlu0 %v35, 80
    %v1377 = vpop.permute.xlu0 %1376
    %1378 = vrot.lane.b32.xlu0 %v308, 80
    %v1379 = vpop.permute.xlu0 %1378
    %1380 = vrot.lane.b32.xlu0 %v309, 80
    %v1381 = vpop.permute.xlu0 %1380
    %1382 = vrot.lane.b32.xlu0 %v310, 80
    %v1383 = vpop.permute.xlu0 %1382
    %1384 = vrot.lane.b32.xlu0 %v311, 80
    %v1385 = vpop.permute.xlu0 %1384
    %1386 = vrot.lane.b32.xlu0 %v312, 80
    %v1387 = vpop.permute.xlu0 %1386
    %v1388 = vsel %vm414, %v1369, 0
    %v1390 = vsel %vm414, %v1371, 0
    %v1392 = vsel %vm414, %v1373, 0
    %v1394 = vsel %vm414, %v1375, 0
    %v1396 = vsel %vm414, %v1377, 0
    %v1398 = vsel %vm414, %v1379, 0
    %v1400 = vsel %vm414, %v1381, 0
    %v1402 = vsel %vm414, %v1383, 0
    %v1404 = vsel %vm414, %v1385, 0
    %v1406 = vsel %vm414, %v1387, 0
    %1408 = vmatprep.subr.mxu0 0.0
    %1409 = vmatpush1.xpose.msra.mxu0 %v1398
    %1410 = vmatprep.subr.mxu0 0.0
    %1411 = vmatpush1.xpose.msra.mxu0 %v1400
    %1412 = vmatprep.subr.mxu0 0.0
    %1413 = vmatpush1.xpose.msra.mxu0 %v1402
    %1414 = vmatprep.subr.mxu0 0.0
    %1415 = vmatpush1.xpose.msra.mxu0 %v1404
    %1416 = vmatprep.subr.mxu0 0.0
    %1417 = vmatpush1.xpose.msra.mxu0 %v1406
    %1418 = vmatprep.subr.mxu0 0.0
    %1419 = vmatpush1.xpose.msra.mxu0 0.0
    %1420 = vmatprep.subr.mxu0 0.0
    %1421 = vmatpush1.xpose.msra.mxu0 0.0
    %1422 = vmatprep.subr.mxu0 0.0
    %1423 = vmatpush1.xpose.msra.mxu0 0.0
    %1424 = vmatprep.subr.mxu0 0.0
    %1425 = vmatpush1.xpose.msra.mxu0 0.0
    %1426 = vmatprep.subr.mxu0 0.0
    %1427 = vmatpush1.xpose.msra.mxu0 0.0
    %1428 = vmatprep.subr.mxu0 0.0
    %1429 = vmatpush1.xpose.msra.mxu0 0.0
    %1430 = vmatprep.subr.mxu0 0.0
    %1431 = vmatpush1.xpose.msra.mxu0 0.0
    %1432 = vmatprep.subr.mxu0 0.0
    %1433 = vmatpush1.xpose.msra.mxu0 0.0
    %1434 = vmatprep.subr.mxu0 0.0
    %1435 = vmatpush1.xpose.msra.mxu0 0.0
    %1436 = vmatprep.subr.mxu0 0.0
    %1437 = vmatpush1.xpose.msra.mxu0 0.0
    %1438 = vmatprep.subr.mxu0 0.0
    %1439 = vmatpush1.xpose.msra.mxu0 0.0
    %1440 = vmatprep.subr.mxu0 0.0
    %1441 = vmatpush1.xpose.msra.mxu0 0.0
    %1442 = vmatprep.subr.mxu0 0.0
    %1443 = vmatpush1.xpose.msra.mxu0 0.0
    %1444 = vmatprep.subr.mxu0 0.0
    %1445 = vmatpush1.xpose.msra.mxu0 0.0
    %1446 = vmatprep.subr.mxu0 0.0
    %1447 = vmatpush1.xpose.msra.mxu0 0.0
    %1448 = vmatprep.subr.mxu0 0.0
    %1449 = vmatpush1.xpose.msra.mxu0 0.0
    %1450 = vmatprep.subr.mxu0 0.0
    %1451 = vmatpush1.xpose.msra.mxu0 0.0
    %1452 = vmatprep.subr.mxu0 0.0
    %1453 = vmatpush1.xpose.msra.mxu0 0.0
    %1454 = vmatprep.subr.mxu0 0.0
    %1455 = vmatpush1.xpose.msra.mxu0 0.0
    %1456 = vmatprep.subr.mxu0 0.0
    %1457 = vmatpush1.xpose.msra.mxu0 0.0
    %1458 = vmatprep.subr.mxu0 0.0
    %1459 = vmatpush1.xpose.msra.mxu0 0.0
    %1460 = vmatprep.subr.mxu0 0.0
    %1461 = vmatpush1.xpose.msra.mxu0 0.0
    %1462 = vmatprep.subr.mxu0 0.0
    %1463 = vmatpush1.xpose.msra.mxu0 0.0
    %1464 = vmatprep.subr.mxu0 0.0
    %1465 = vmatpush1.xpose.msra.mxu0 0.0
    %1466 = vmatprep.subr.mxu0 0.0
    %1467 = vmatpush1.xpose.msra.mxu0 0.0
    %1468 = vmatprep.subr.mxu0 0.0
    %1469 = vmatpush1.xpose.msra.mxu0 0.0
    %1470 = vmatprep.subr.mxu0 0.0
    %1471 = vmatpush1.xpose.msra.mxu0 0.0
    %1472 = vmatprep.mubr.f32.mxu0 0.0
    %1473 = vmatmul.mubr.f32.gmra.mrb[0].mxu0 %v1388
    %v1474 = vpop.f32.mrb[0].mxu0
    %v1475 = vadd.f32 0.0, %v1474
    %v1476 = vpop.f32.mrb[0].mxu0
    %1477 = vmatprep.mubr.f32.mxu0 0.0
    %1478 = vmatmul.mubr.f32.gmra.mrb[0].mxu0 %v1390
    %v1479 = vpop.f32.mrb[0].mxu0
    %v1480 = vadd.f32 0.0, %v1479
    %v1481 = vpop.f32.mrb[0].mxu0
    %1482 = vmatprep.mubr.f32.mxu0 0.0
    %1483 = vmatmul.mubr.f32.gmra.mrb[0].mxu0 %v1392
    %v1484 = vpop.f32.mrb[0].mxu0
    %v1485 = vadd.f32 0.0, %v1484
    %v1486 = vpop.f32.mrb[0].mxu0
    %1487 = vmatprep.mubr.f32.mxu0 0.0
    %1488 = vmatmul.mubr.f32.gmra.mrb[0].mxu0 %v1394
    %v1489 = vpop.f32.mrb[0].mxu0
    %v1490 = vadd.f32 0.0, %v1489
    %v1491 = vpop.f32.mrb[0].mxu0
    %1492 = vmatprep.mubr.f32.mxu0 0.0
    %1493 = vmatmul.mubr.f32.gmra.mrb[0].mxu0 %v1396
    %v1494 = vpop.f32.mrb[0].mxu0
    %v1495 = vadd.f32 0.0, %v1494
    %v1496 = vpop.f32.mrb[0].mxu0
    %1497 = vdwg.mxu0
    %v1498 = vsel %vm535, %v1475, -inf
    %1499 = vmax.xlane.f32.xlu0 %v1498
    %v1500 = vpop.xlane.xlu0 %1499
    %v1501 = vsel %vm535, %v1480, -inf
    %1502 = vmax.xlane.f32.xlu0 %v1501
    %v1503 = vpop.xlane.xlu0 %1502
    %v1504 = vsel %vm535, %v1485, -inf
    %1505 = vmax.xlane.f32.xlu0 %v1504
    %v1506 = vpop.xlane.xlu0 %1505
    %v1507 = vsel %vm535, %v1490, -inf
    %1508 = vmax.xlane.f32.xlu0 %v1507
    %v1509 = vpop.xlane.xlu0 %1508
    %v1510 = vsel %vm535, %v1495, -inf
    %1511 = vmax.xlane.f32.xlu0 %v1510
    %v1512 = vpop.xlane.xlu0 %1511
    %v1513 = vsub.f32 %v1475, %v1500
    %v1514 = vsub.f32 %v1480, %v1503
    %v1515 = vsub.f32 %v1485, %v1506
    %v1516 = vsub.f32 %v1490, %v1509
    %v1517 = vsub.f32 %v1495, %v1512
    %v1518 = vmul.f32 %v1513, 1.442695
    %v1519 = vpow.pop %v1518
    %v1520 = vmul.f32 %v1514, 1.442695
    %v1521 = vpow.pop %v1520
    %v1522 = vmul.f32 %v1515, 1.442695
    %v1523 = vpow.pop %v1522
    %v1524 = vmul.f32 %v1516, 1.442695
    %v1525 = vpow.pop %v1524
    %v1526 = vmul.f32 %v1517, 1.442695
    %v1527 = vpow.pop %v1526
    %v1528 = vsel %vm535, %v1519, 0.0
    %1529 = vadd.xlane.f32.xlu0 %v1528
    %v1530 = vpop.xlane.xlu0 %1529
    %v1531 = vsel %vm535, %v1521, 0.0
    %1532 = vadd.xlane.f32.xlu0 %v1531
    %v1533 = vpop.xlane.xlu0 %1532
    %v1534 = vsel %vm535, %v1523, 0.0
    %1535 = vadd.xlane.f32.xlu0 %v1534
    %v1536 = vpop.xlane.xlu0 %1535
    %v1537 = vsel %vm535, %v1525, 0.0
    %1538 = vadd.xlane.f32.xlu0 %v1537
    %v1539 = vpop.xlane.xlu0 %1538
    %v1540 = vsel %vm535, %v1527, 0.0
    %1541 = vadd.xlane.f32.xlu0 %v1540
    %v1542 = vpop.xlane.xlu0 %1541
    %v1543 = vrcp.pop %v1530
    %v1544 = vmul.f32 %v1519, %v1543
    %v1545 = vrcp.pop %v1533
    %v1546 = vmul.f32 %v1521, %v1545
    %v1547 = vrcp.pop %v1536
    %v1548 = vmul.f32 %v1523, %v1547
    %v1549 = vrcp.pop %v1539
    %v1550 = vmul.f32 %v1525, %v1549
    %v1551 = vrcp.pop %v1542
    %v1552 = vmul.f32 %v1527, %v1551
    %1553 = vrot.lane.b32.xlu0 %v351, 80
    %v1554 = vpop.permute.xlu0 %1553
    %1555 = vrot.lane.b32.xlu0 %v352, 80
    %v1556 = vpop.permute.xlu0 %1555
    %1557 = vrot.lane.b32.xlu0 %v353, 80
    %v1558 = vpop.permute.xlu0 %1557
    %1559 = vrot.lane.b32.xlu0 %v354, 80
    %v1560 = vpop.permute.xlu0 %1559
    %1561 = vrot.lane.b32.xlu0 %v355, 80
    %v1562 = vpop.permute.xlu0 %1561
    %v1569 = vsel %vm535, %v1544, 0
    %v1572 = vsel %vm535, %v1546, 0
    %v1575 = vsel %vm535, %v1548, 0
    %v1578 = vsel %vm535, %v1550, 0
    %v1581 = vsel %vm535, %v1552, 0
    %1583 = vmatprep.subr.mxu0 0.0
    %1584 = vmatpush1.msra.mxu0 %v1554
    %1585 = vmatprep.subr.mxu0 0.0
    %1586 = vmatpush1.msra.mxu0 %v1556
    %1587 = vmatprep.subr.mxu0 0.0
    %1588 = vmatpush1.msra.mxu0 %v1558
    %1589 = vmatprep.subr.mxu0 0.0
    %1590 = vmatpush1.msra.mxu0 %v1560
    %1591 = vmatprep.subr.mxu0 0.0
    %1592 = vmatpush1.msra.mxu0 %v1562
    %1593 = vmatprep.subr.mxu0 0.0
    %1594 = vmatpush1.msra.mxu0 0.0
    %1595 = vmatprep.subr.mxu0 0.0
    %1596 = vmatpush1.msra.mxu0 0.0
    %1597 = vmatprep.subr.mxu0 0.0
    %1598 = vmatpush1.msra.mxu0 0.0
    %1599 = vmatprep.subr.mxu0 0.0
    %1600 = vmatpush1.msra.mxu0 0.0
    %1601 = vmatprep.subr.mxu0 0.0
    %1602 = vmatpush1.msra.mxu0 0.0
    %1603 = vmatprep.subr.mxu0 0.0
    %1604 = vmatpush1.msra.mxu0 0.0
    %1605 = vmatprep.subr.mxu0 0.0
    %1606 = vmatpush1.msra.mxu0 0.0
    %1607 = vmatprep.subr.mxu0 0.0
    %1608 = vmatpush1.msra.mxu0 0.0
    %1609 = vmatprep.subr.mxu0 0.0
    %1610 = vmatpush1.msra.mxu0 0.0
    %1611 = vmatprep.subr.mxu0 0.0
    %1612 = vmatpush1.msra.mxu0 0.0
    %1613 = vmatprep.subr.mxu0 0.0
    %1614 = vmatpush1.msra.mxu0 0.0
    %1615 = vmatprep.subr.mxu0 0.0
    %1616 = vmatpush1.msra.mxu0 0.0
    %1617 = vmatprep.subr.mxu0 0.0
    %1618 = vmatpush1.msra.mxu0 0.0
    %1619 = vmatprep.subr.mxu0 0.0
    %1620 = vmatpush1.msra.mxu0 0.0
    %1621 = vmatprep.subr.mxu0 0.0
    %1622 = vmatpush1.msra.mxu0 0.0
    %1623 = vmatprep.subr.mxu0 0.0
    %1624 = vmatpush1.msra.mxu0 0.0
    %1625 = vmatprep.subr.mxu0 0.0
    %1626 = vmatpush1.msra.mxu0 0.0
    %1627 = vmatprep.subr.mxu0 0.0
    %1628 = vmatpush1.msra.mxu0 0.0
    %1629 = vmatprep.subr.mxu0 0.0
    %1630 = vmatpush1.msra.mxu0 0.0
    %1631 = vmatprep.subr.mxu0 0.0
    %1632 = vmatpush1.msra.mxu0 0.0
    %1633 = vmatprep.subr.mxu0 0.0
    %1634 = vmatpush1.msra.mxu0 0.0
    %1635 = vmatprep.subr.mxu0 0.0
    %1636 = vmatpush1.msra.mxu0 0.0
    %1637 = vmatprep.subr.mxu0 0.0
    %1638 = vmatpush1.msra.mxu0 0.0
    %1639 = vmatprep.subr.mxu0 0.0
    %1640 = vmatpush1.msra.mxu0 0.0
    %1641 = vmatprep.subr.mxu0 0.0
    %1642 = vmatpush1.msra.mxu0 0.0
    %1643 = vmatprep.subr.mxu0 0.0
    %1644 = vmatpush1.msra.mxu0 0.0
    %1645 = vmatprep.subr.mxu0 0.0
    %1646 = vmatpush1.msra.mxu0 0.0
    %1647 = vmatprep.mubr.f32.mxu0 0.0
    %1648 = vmatmul.mubr.f32.gmra.mrb[0].mxu0 %v1569
    %v1649 = vpop.f32.mrb[0].mxu0
    %v1650 = vadd.f32 0.0, %v1649
    %v1651 = vpop.f32.mrb[0].mxu0
    %1652 = vmatprep.mubr.f32.mxu0 0.0
    %1653 = vmatmul.mubr.f32.gmra.mrb[0].mxu0 %v1572
    %v1654 = vpop.f32.mrb[0].mxu0
    %v1655 = vadd.f32 0.0, %v1654
    %v1656 = vpop.f32.mrb[0].mxu0
    %1657 = vmatprep.mubr.f32.mxu0 0.0
    %1658 = vmatmul.mubr.f32.gmra.mrb[0].mxu0 %v1575
    %v1659 = vpop.f32.mrb[0].mxu0
    %v1660 = vadd.f32 0.0, %v1659
    %v1661 = vpop.f32.mrb[0].mxu0
    %1662 = vmatprep.mubr.f32.mxu0 0.0
    %1663 = vmatmul.mubr.f32.gmra.mrb[0].mxu0 %v1578
    %v1664 = vpop.f32.mrb[0].mxu0
    %v1665 = vadd.f32 0.0, %v1664
    %v1666 = vpop.f32.mrb[0].mxu0
    %1667 = vmatprep.mubr.f32.mxu0 0.0
    %1668 = vmatmul.mubr.f32.gmra.mrb[0].mxu0 %v1581
    %v1669 = vpop.f32.mrb[0].mxu0
    %v1670 = vadd.f32 0.0, %v1669
    %v1671 = vpop.f32.mrb[0].mxu0
    %1672 = vdwg.mxu0
    %1678 = vrot.lane.b32.xlu0 %v1650, 48
    %v1679 = vpop.permute.xlu0 %1678
    %1680 = vrot.lane.b32.xlu0 %v1655, 48
    %v1681 = vpop.permute.xlu0 %1680
    %1682 = vrot.lane.b32.xlu0 %v1660, 48
    %v1683 = vpop.permute.xlu0 %1682
    %1684 = vrot.lane.b32.xlu0 %v1665, 48
    %v1685 = vpop.permute.xlu0 %1684
    %1686 = vrot.lane.b32.xlu0 %v1670, 48
    %v1687 = vpop.permute.xlu0 %1686
    %vm1693 = vcmask 523648
    %1694 = vst.msk [vmem:[#allocation2] sm:$0xff] %vm1693, %v1679
    %1695 = vst.msk [vmem:[#allocation2 + $0x8] sm:$0xff] %vm1693, %v1681
    %1696 = vst.msk [vmem:[#allocation2 + $0x10] sm:$0xff] %vm1693, %v1683
    %1697 = vst.msk [vmem:[#allocation2 + $0x18] sm:$0xff] %vm1693, %v1685
    %1698 = vst.msk [vmem:[#allocation2 + $0x20] sm:$0xff] %vm1693, %v1687
    %v1700 = vsel %vm414, %v36, 0
    %v1703 = vsel %vm414, %v37, 0
    %v1706 = vsel %vm414, %v38, 0
    %v1709 = vsel %vm414, %v39, 0
    %v1712 = vsel %vm414, %v40, 0
    %v1715 = vsel %vm414, %v313, 0
    %v1718 = vsel %vm414, %v314, 0
    %v1721 = vsel %vm414, %v315, 0
    %v1724 = vsel %vm414, %v316, 0
    %v1727 = vsel %vm414, %v317, 0
    %1729 = vmatprep.subr.mxu0 0.0
    %1730 = vmatpush1.xpose.msra.mxu0 %v1715
    %1731 = vmatprep.subr.mxu0 0.0
    %1732 = vmatpush1.xpose.msra.mxu0 %v1718
    %1733 = vmatprep.subr.mxu0 0.0
    %1734 = vmatpush1.xpose.msra.mxu0 %v1721
    %1735 = vmatprep.subr.mxu0 0.0
    %1736 = vmatpush1.xpose.msra.mxu0 %v1724
    %1737 = vmatprep.subr.mxu0 0.0
    %1738 = vmatpush1.xpose.msra.mxu0 %v1727
    %1739 = vmatprep.subr.mxu0 0.0
    %1740 = vmatpush1.xpose.msra.mxu0 0.0
    %1741 = vmatprep.subr.mxu0 0.0
    %1742 = vmatpush1.xpose.msra.mxu0 0.0
    %1743 = vmatprep.subr.mxu0 0.0
    %1744 = vmatpush1.xpose.msra.mxu0 0.0
    %1745 = vmatprep.subr.mxu0 0.0
    %1746 = vmatpush1.xpose.msra.mxu0 0.0
    %1747 = vmatprep.subr.mxu0 0.0
    %1748 = vmatpush1.xpose.msra.mxu0 0.0
    %1749 = vmatprep.subr.mxu0 0.0
    %1750 = vmatpush1.xpose.msra.mxu0 0.0
    %1751 = vmatprep.subr.mxu0 0.0
    %1752 = vmatpush1.xpose.msra.mxu0 0.0
    %1753 = vmatprep.subr.mxu0 0.0
    %1754 = vmatpush1.xpose.msra.mxu0 0.0
    %1755 = vmatprep.subr.mxu0 0.0
    %1756 = vmatpush1.xpose.msra.mxu0 0.0
    %1757 = vmatprep.subr.mxu0 0.0
    %1758 = vmatpush1.xpose.msra.mxu0 0.0
    %1759 = vmatprep.subr.mxu0 0.0
    %1760 = vmatpush1.xpose.msra.mxu0 0.0
    %1761 = vmatprep.subr.mxu0 0.0
    %1762 = vmatpush1.xpose.msra.mxu0 0.0
    %1763 = vmatprep.subr.mxu0 0.0
    %1764 = vmatpush1.xpose.msra.mxu0 0.0
    %1765 = vmatprep.subr.mxu0 0.0
    %1766 = vmatpush1.xpose.msra.mxu0 0.0
    %1767 = vmatprep.subr.mxu0 0.0
    %1768 = vmatpush1.xpose.msra.mxu0 0.0
    %1769 = vmatprep.subr.mxu0 0.0
    %1770 = vmatpush1.xpose.msra.mxu0 0.0
    %1771 = vmatprep.subr.mxu0 0.0
    %1772 = vmatpush1.xpose.msra.mxu0 0.0
    %1773 = vmatprep.subr.mxu0 0.0
    %1774 = vmatpush1.xpose.msra.mxu0 0.0
    %1775 = vmatprep.subr.mxu0 0.0
    %1776 = vmatpush1.xpose.msra.mxu0 0.0
    %1777 = vmatprep.subr.mxu0 0.0
    %1778 = vmatpush1.xpose.msra.mxu0 0.0
    %1779 = vmatprep.subr.mxu0 0.0
    %1780 = vmatpush1.xpose.msra.mxu0 0.0
    %1781 = vmatprep.subr.mxu0 0.0
    %1782 = vmatpush1.xpose.msra.mxu0 0.0
    %1783 = vmatprep.subr.mxu0 0.0
    %1784 = vmatpush1.xpose.msra.mxu0 0.0
    %1785 = vmatprep.subr.mxu0 0.0
    %1786 = vmatpush1.xpose.msra.mxu0 0.0
    %1787 = vmatprep.subr.mxu0 0.0
    %1788 = vmatpush1.xpose.msra.mxu0 0.0
    %1789 = vmatprep.subr.mxu0 0.0
    %1790 = vmatpush1.xpose.msra.mxu0 0.0
    %1791 = vmatprep.subr.mxu0 0.0
    %1792 = vmatpush1.xpose.msra.mxu0 0.0
    %1793 = vmatprep.mubr.f32.mxu0 0.0
    %1794 = vmatmul.mubr.f32.gmra.mrb[0].mxu0 %v1700
    %v1795 = vpop.f32.mrb[0].mxu0
    %v1796 = vadd.f32 0.0, %v1795
    %v1797 = vpop.f32.mrb[0].mxu0
    %1798 = vmatprep.mubr.f32.mxu0 0.0
    %1799 = vmatmul.mubr.f32.gmra.mrb[0].mxu0 %v1703
    %v1800 = vpop.f32.mrb[0].mxu0
    %v1801 = vadd.f32 0.0, %v1800
    %v1802 = vpop.f32.mrb[0].mxu0
    %1803 = vmatprep.mubr.f32.mxu0 0.0
    %1804 = vmatmul.mubr.f32.gmra.mrb[0].mxu0 %v1706
    %v1805 = vpop.f32.mrb[0].mxu0
    %v1806 = vadd.f32 0.0, %v1805
    %v1807 = vpop.f32.mrb[0].mxu0
    %1808 = vmatprep.mubr.f32.mxu0 0.0
    %1809 = vmatmul.mubr.f32.gmra.mrb[0].mxu0 %v1709
    %v1810 = vpop.f32.mrb[0].mxu0
    %v1811 = vadd.f32 0.0, %v1810
    %v1812 = vpop.f32.mrb[0].mxu0
    %1813 = vmatprep.mubr.f32.mxu0 0.0
    %1814 = vmatmul.mubr.f32.gmra.mrb[0].mxu0 %v1712
    %v1815 = vpop.f32.mrb[0].mxu0
    %v1816 = vadd.f32 0.0, %v1815
    %v1817 = vpop.f32.mrb[0].mxu0
    %1818 = vdwg.mxu0
    %v1819 = vsel %vm535, %v1796, -inf
    %1820 = vmax.xlane.f32.xlu0 %v1819
    %v1821 = vpop.xlane.xlu0 %1820
    %v1822 = vsel %vm535, %v1801, -inf
    %1823 = vmax.xlane.f32.xlu0 %v1822
    %v1824 = vpop.xlane.xlu0 %1823
    %v1825 = vsel %vm535, %v1806, -inf
    %1826 = vmax.xlane.f32.xlu0 %v1825
    %v1827 = vpop.xlane.xlu0 %1826
    %v1828 = vsel %vm535, %v1811, -inf
    %1829 = vmax.xlane.f32.xlu0 %v1828
    %v1830 = vpop.xlane.xlu0 %1829
    %v1831 = vsel %vm535, %v1816, -inf
    %1832 = vmax.xlane.f32.xlu0 %v1831
    %v1833 = vpop.xlane.xlu0 %1832
    %v1834 = vsub.f32 %v1796, %v1821
    %v1835 = vsub.f32 %v1801, %v1824
    %v1836 = vsub.f32 %v1806, %v1827
    %v1837 = vsub.f32 %v1811, %v1830
    %v1838 = vsub.f32 %v1816, %v1833
    %v1839 = vmul.f32 %v1834, 1.442695
    %v1840 = vpow.pop %v1839
    %v1841 = vmul.f32 %v1835, 1.442695
    %v1842 = vpow.pop %v1841
    %v1843 = vmul.f32 %v1836, 1.442695
    %v1844 = vpow.pop %v1843
    %v1845 = vmul.f32 %v1837, 1.442695
    %v1846 = vpow.pop %v1845
    %v1847 = vmul.f32 %v1838, 1.442695
    %v1848 = vpow.pop %v1847
    %v1849 = vsel %vm535, %v1840, 0.0
    %1850 = vadd.xlane.f32.xlu0 %v1849
    %v1851 = vpop.xlane.xlu0 %1850
    %v1852 = vsel %vm535, %v1842, 0.0
    %1853 = vadd.xlane.f32.xlu0 %v1852
    %v1854 = vpop.xlane.xlu0 %1853
    %v1855 = vsel %vm535, %v1844, 0.0
    %1856 = vadd.xlane.f32.xlu0 %v1855
    %v1857 = vpop.xlane.xlu0 %1856
    %v1858 = vsel %vm535, %v1846, 0.0
    %1859 = vadd.xlane.f32.xlu0 %v1858
    %v1860 = vpop.xlane.xlu0 %1859
    %v1861 = vsel %vm535, %v1848, 0.0
    %1862 = vadd.xlane.f32.xlu0 %v1861
    %v1863 = vpop.xlane.xlu0 %1862
    %v1864 = vrcp.pop %v1851
    %v1865 = vmul.f32 %v1840, %v1864
    %v1866 = vrcp.pop %v1854
    %v1867 = vmul.f32 %v1842, %v1866
    %v1868 = vrcp.pop %v1857
    %v1869 = vmul.f32 %v1844, %v1868
    %v1870 = vrcp.pop %v1860
    %v1871 = vmul.f32 %v1846, %v1870
    %v1872 = vrcp.pop %v1863
    %v1873 = vmul.f32 %v1848, %v1872
    %v1875 = vsel %vm535, %v1865, 0
    %v1878 = vsel %vm535, %v1867, 0
    %v1881 = vsel %vm535, %v1869, 0
    %v1884 = vsel %vm535, %v1871, 0
    %v1887 = vsel %vm535, %v1873, 0
    %1889 = vmatprep.subr.mxu0 0.0
    %1890 = vmatpush1.msra.mxu0 %v389
    %1891 = vmatprep.subr.mxu0 0.0
    %1892 = vmatpush1.msra.mxu0 %v390
    %1893 = vmatprep.subr.mxu0 0.0
    %1894 = vmatpush1.msra.mxu0 %v391
    %1895 = vmatprep.subr.mxu0 0.0
    %1896 = vmatpush1.msra.mxu0 %v392
    %1897 = vmatprep.subr.mxu0 0.0
    %1898 = vmatpush1.msra.mxu0 %v393
    %1899 = vmatprep.subr.mxu0 0.0
    %1900 = vmatpush1.msra.mxu0 0.0
    %1901 = vmatprep.subr.mxu0 0.0
    %1902 = vmatpush1.msra.mxu0 0.0
    %1903 = vmatprep.subr.mxu0 0.0
    %1904 = vmatpush1.msra.mxu0 0.0
    %1905 = vmatprep.subr.mxu0 0.0
    %1906 = vmatpush1.msra.mxu0 0.0
    %1907 = vmatprep.subr.mxu0 0.0
    %1908 = vmatpush1.msra.mxu0 0.0
    %1909 = vmatprep.subr.mxu0 0.0
    %1910 = vmatpush1.msra.mxu0 0.0
    %1911 = vmatprep.subr.mxu0 0.0
    %1912 = vmatpush1.msra.mxu0 0.0
    %1913 = vmatprep.subr.mxu0 0.0
    %1914 = vmatpush1.msra.mxu0 0.0
    %1915 = vmatprep.subr.mxu0 0.0
    %1916 = vmatpush1.msra.mxu0 0.0
    %1917 = vmatprep.subr.mxu0 0.0
    %1918 = vmatpush1.msra.mxu0 0.0
    %1919 = vmatprep.subr.mxu0 0.0
    %1920 = vmatpush1.msra.mxu0 0.0
    %1921 = vmatprep.subr.mxu0 0.0
    %1922 = vmatpush1.msra.mxu0 0.0
    %1923 = vmatprep.subr.mxu0 0.0
    %1924 = vmatpush1.msra.mxu0 0.0
    %1925 = vmatprep.subr.mxu0 0.0
    %1926 = vmatpush1.msra.mxu0 0.0
    %1927 = vmatprep.subr.mxu0 0.0
    %1928 = vmatpush1.msra.mxu0 0.0
    %1929 = vmatprep.subr.mxu0 0.0
    %1930 = vmatpush1.msra.mxu0 0.0
    %1931 = vmatprep.subr.mxu0 0.0
    %1932 = vmatpush1.msra.mxu0 0.0
    %1933 = vmatprep.subr.mxu0 0.0
    %1934 = vmatpush1.msra.mxu0 0.0
    %1935 = vmatprep.subr.mxu0 0.0
    %1936 = vmatpush1.msra.mxu0 0.0
    %1937 = vmatprep.subr.mxu0 0.0
    %1938 = vmatpush1.msra.mxu0 0.0
    %1939 = vmatprep.subr.mxu0 0.0
    %1940 = vmatpush1.msra.mxu0 0.0
    %1941 = vmatprep.subr.mxu0 0.0
    %1942 = vmatpush1.msra.mxu0 0.0
    %1943 = vmatprep.subr.mxu0 0.0
    %1944 = vmatpush1.msra.mxu0 0.0
    %1945 = vmatprep.subr.mxu0 0.0
    %1946 = vmatpush1.msra.mxu0 0.0
    %1947 = vmatprep.subr.mxu0 0.0
    %1948 = vmatpush1.msra.mxu0 0.0
    %1949 = vmatprep.subr.mxu0 0.0
    %1950 = vmatpush1.msra.mxu0 0.0
    %1951 = vmatprep.subr.mxu0 0.0
    %1952 = vmatpush1.msra.mxu0 0.0
    %1953 = vmatprep.mubr.f32.mxu0 0.0
    %1954 = vmatmul.mubr.f32.gmra.mrb[0].mxu0 %v1875
    %v1955 = vpop.f32.mrb[0].mxu0
    %v1956 = vadd.f32 0.0, %v1955
    %v1957 = vpop.f32.mrb[0].mxu0
    %1958 = vmatprep.mubr.f32.mxu0 0.0
    %1959 = vmatmul.mubr.f32.gmra.mrb[0].mxu0 %v1878
    %v1960 = vpop.f32.mrb[0].mxu0
    %v1961 = vadd.f32 0.0, %v1960
    %v1962 = vpop.f32.mrb[0].mxu0
    %1963 = vmatprep.mubr.f32.mxu0 0.0
    %1964 = vmatmul.mubr.f32.gmra.mrb[0].mxu0 %v1881
    %v1965 = vpop.f32.mrb[0].mxu0
    %v1966 = vadd.f32 0.0, %v1965
    %v1967 = vpop.f32.mrb[0].mxu0
    %1968 = vmatprep.mubr.f32.mxu0 0.0
    %1969 = vmatmul.mubr.f32.gmra.mrb[0].mxu0 %v1884
    %v1970 = vpop.f32.mrb[0].mxu0
    %v1971 = vadd.f32 0.0, %v1970
    %v1972 = vpop.f32.mrb[0].mxu0
    %1973 = vmatprep.mubr.f32.mxu0 0.0
    %1974 = vmatmul.mubr.f32.gmra.mrb[0].mxu0 %v1887
    %v1975 = vpop.f32.mrb[0].mxu0
    %v1976 = vadd.f32 0.0, %v1975
    %v1977 = vpop.f32.mrb[0].mxu0
    %1978 = vdwg.mxu0
    %1979 = vst.msk [vmem:[#allocation2 + $0x28] sm:$0xff] %vm414, %v1956
    %1980 = vst.msk [vmem:[#allocation2 + $0x30] sm:$0xff] %vm414, %v1961
    %1981 = vst.msk [vmem:[#allocation2 + $0x38] sm:$0xff] %vm414, %v1966
    %1982 = vst.msk [vmem:[#allocation2 + $0x40] sm:$0xff] %vm414, %v1971
    %1983 = vst.msk [vmem:[#allocation2 + $0x48] sm:$0xff] %vm414, %v1976
    %1984 = vrot.lane.b32.xlu0 %v36, 112
    %v1985 = vpop.permute.xlu0 %1984
    %1986 = vrot.lane.b32.xlu0 %v37, 112
    %v1987 = vpop.permute.xlu0 %1986
    %1988 = vrot.lane.b32.xlu0 %v38, 112
    %v1989 = vpop.permute.xlu0 %1988
    %1990 = vrot.lane.b32.xlu0 %v39, 112
    %v1991 = vpop.permute.xlu0 %1990
    %1992 = vrot.lane.b32.xlu0 %v40, 112
    %v1993 = vpop.permute.xlu0 %1992
    %1994 = vrot.lane.b32.xlu0 %v313, 112
    %v1995 = vpop.permute.xlu0 %1994
    %1996 = vrot.lane.b32.xlu0 %v314, 112
    %v1997 = vpop.permute.xlu0 %1996
    %1998 = vrot.lane.b32.xlu0 %v315, 112
    %v1999 = vpop.permute.xlu0 %1998
    %2000 = vrot.lane.b32.xlu0 %v316, 112
    %v2001 = vpop.permute.xlu0 %2000
    %2002 = vrot.lane.b32.xlu0 %v317, 112
    %v2003 = vpop.permute.xlu0 %2002
    %v2004 = vsel %vm414, %v1985, 0
    %v2006 = vsel %vm414, %v1987, 0
    %v2008 = vsel %vm414, %v1989, 0
    %v2010 = vsel %vm414, %v1991, 0
    %v2012 = vsel %vm414, %v1993, 0
    %v2014 = vsel %vm414, %v1995, 0
    %v2016 = vsel %vm414, %v1997, 0
    %v2018 = vsel %vm414, %v1999, 0
    %v2020 = vsel %vm414, %v2001, 0
    %v2022 = vsel %vm414, %v2003, 0
    %2024 = vmatprep.subr.mxu0 0.0
    %2025 = vmatpush1.xpose.msra.mxu0 %v2014
    %2026 = vmatprep.subr.mxu0 0.0
    %2027 = vmatpush1.xpose.msra.mxu0 %v2016
    %2028 = vmatprep.subr.mxu0 0.0
    %2029 = vmatpush1.xpose.msra.mxu0 %v2018
    %2030 = vmatprep.subr.mxu0 0.0
    %2031 = vmatpush1.xpose.msra.mxu0 %v2020
    %2032 = vmatprep.subr.mxu0 0.0
    %2033 = vmatpush1.xpose.msra.mxu0 %v2022
    %2034 = vmatprep.subr.mxu0 0.0
    %2035 = vmatpush1.xpose.msra.mxu0 0.0
    %2036 = vmatprep.subr.mxu0 0.0
    %2037 = vmatpush1.xpose.msra.mxu0 0.0
    %2038 = vmatprep.subr.mxu0 0.0
    %2039 = vmatpush1.xpose.msra.mxu0 0.0
    %2040 = vmatprep.subr.mxu0 0.0
    %2041 = vmatpush1.xpose.msra.mxu0 0.0
    %2042 = vmatprep.subr.mxu0 0.0
    %2043 = vmatpush1.xpose.msra.mxu0 0.0
    %2044 = vmatprep.subr.mxu0 0.0
    %2045 = vmatpush1.xpose.msra.mxu0 0.0
    %2046 = vmatprep.subr.mxu0 0.0
    %2047 = vmatpush1.xpose.msra.mxu0 0.0
    %2048 = vmatprep.subr.mxu0 0.0
    %2049 = vmatpush1.xpose.msra.mxu0 0.0
    %2050 = vmatprep.subr.mxu0 0.0
    %2051 = vmatpush1.xpose.msra.mxu0 0.0
    %2052 = vmatprep.subr.mxu0 0.0
    %2053 = vmatpush1.xpose.msra.mxu0 0.0
    %2054 = vmatprep.subr.mxu0 0.0
    %2055 = vmatpush1.xpose.msra.mxu0 0.0
    %2056 = vmatprep.subr.mxu0 0.0
    %2057 = vmatpush1.xpose.msra.mxu0 0.0
    %2058 = vmatprep.subr.mxu0 0.0
    %2059 = vmatpush1.xpose.msra.mxu0 0.0
    %2060 = vmatprep.subr.mxu0 0.0
    %2061 = vmatpush1.xpose.msra.mxu0 0.0
    %2062 = vmatprep.subr.mxu0 0.0
    %2063 = vmatpush1.xpose.msra.mxu0 0.0
    %2064 = vmatprep.subr.mxu0 0.0
    %2065 = vmatpush1.xpose.msra.mxu0 0.0
    %2066 = vmatprep.subr.mxu0 0.0
    %2067 = vmatpush1.xpose.msra.mxu0 0.0
    %2068 = vmatprep.subr.mxu0 0.0
    %2069 = vmatpush1.xpose.msra.mxu0 0.0
    %2070 = vmatprep.subr.mxu0 0.0
    %2071 = vmatpush1.xpose.msra.mxu0 0.0
    %2072 = vmatprep.subr.mxu0 0.0
    %2073 = vmatpush1.xpose.msra.mxu0 0.0
    %2074 = vmatprep.subr.mxu0 0.0
    %2075 = vmatpush1.xpose.msra.mxu0 0.0
    %2076 = vmatprep.subr.mxu0 0.0
    %2077 = vmatpush1.xpose.msra.mxu0 0.0
    %2078 = vmatprep.subr.mxu0 0.0
    %2079 = vmatpush1.xpose.msra.mxu0 0.0
    %2080 = vmatprep.subr.mxu0 0.0
    %2081 = vmatpush1.xpose.msra.mxu0 0.0
    %2082 = vmatprep.subr.mxu0 0.0
    %2083 = vmatpush1.xpose.msra.mxu0 0.0
    %2084 = vmatprep.subr.mxu0 0.0
    %2085 = vmatpush1.xpose.msra.mxu0 0.0
    %2086 = vmatprep.subr.mxu0 0.0
    %2087 = vmatpush1.xpose.msra.mxu0 0.0
    %2088 = vmatprep.mubr.f32.mxu0 0.0
    %2089 = vmatmul.mubr.f32.gmra.mrb[0].mxu0 %v2004
    %v2090 = vpop.f32.mrb[0].mxu0
    %v2091 = vadd.f32 0.0, %v2090
    %v2092 = vpop.f32.mrb[0].mxu0
    %2093 = vmatprep.mubr.f32.mxu0 0.0
    %2094 = vmatmul.mubr.f32.gmra.mrb[0].mxu0 %v2006
    %v2095 = vpop.f32.mrb[0].mxu0
    %v2096 = vadd.f32 0.0, %v2095
    %v2097 = vpop.f32.mrb[0].mxu0
    %2098 = vmatprep.mubr.f32.mxu0 0.0
    %2099 = vmatmul.mubr.f32.gmra.mrb[0].mxu0 %v2008
    %v2100 = vpop.f32.mrb[0].mxu0
    %v2101 = vadd.f32 0.0, %v2100
    %v2102 = vpop.f32.mrb[0].mxu0
    %2103 = vmatprep.mubr.f32.mxu0 0.0
    %2104 = vmatmul.mubr.f32.gmra.mrb[0].mxu0 %v2010
    %v2105 = vpop.f32.mrb[0].mxu0
    %v2106 = vadd.f32 0.0, %v2105
    %v2107 = vpop.f32.mrb[0].mxu0
    %2108 = vmatprep.mubr.f32.mxu0 0.0
    %2109 = vmatmul.mubr.f32.gmra.mrb[0].mxu0 %v2012
    %v2110 = vpop.f32.mrb[0].mxu0
    %v2111 = vadd.f32 0.0, %v2110
    %v2112 = vpop.f32.mrb[0].mxu0
    %2113 = vdwg.mxu0
    %v2114 = vsel %vm535, %v2091, -inf
    %2115 = vmax.xlane.f32.xlu0 %v2114
    %v2116 = vpop.xlane.xlu0 %2115
    %v2117 = vsel %vm535, %v2096, -inf
    %2118 = vmax.xlane.f32.xlu0 %v2117
    %v2119 = vpop.xlane.xlu0 %2118
    %v2120 = vsel %vm535, %v2101, -inf
    %2121 = vmax.xlane.f32.xlu0 %v2120
    %v2122 = vpop.xlane.xlu0 %2121
    %v2123 = vsel %vm535, %v2106, -inf
    %2124 = vmax.xlane.f32.xlu0 %v2123
    %v2125 = vpop.xlane.xlu0 %2124
    %v2126 = vsel %vm535, %v2111, -inf
    %2127 = vmax.xlane.f32.xlu0 %v2126
    %v2128 = vpop.xlane.xlu0 %2127
    %v2129 = vsub.f32 %v2091, %v2116
    %v2130 = vsub.f32 %v2096, %v2119
    %v2131 = vsub.f32 %v2101, %v2122
    %v2132 = vsub.f32 %v2106, %v2125
    %v2133 = vsub.f32 %v2111, %v2128
    %v2134 = vmul.f32 %v2129, 1.442695
    %v2135 = vpow.pop %v2134
    %v2136 = vmul.f32 %v2130, 1.442695
    %v2137 = vpow.pop %v2136
    %v2138 = vmul.f32 %v2131, 1.442695
    %v2139 = vpow.pop %v2138
    %v2140 = vmul.f32 %v2132, 1.442695
    %v2141 = vpow.pop %v2140
    %v2142 = vmul.f32 %v2133, 1.442695
    %v2143 = vpow.pop %v2142
    %v2144 = vsel %vm535, %v2135, 0.0
    %2145 = vadd.xlane.f32.xlu0 %v2144
    %v2146 = vpop.xlane.xlu0 %2145
    %v2147 = vsel %vm535, %v2137, 0.0
    %2148 = vadd.xlane.f32.xlu0 %v2147
    %v2149 = vpop.xlane.xlu0 %2148
    %v2150 = vsel %vm535, %v2139, 0.0
    %2151 = vadd.xlane.f32.xlu0 %v2150
    %v2152 = vpop.xlane.xlu0 %2151
    %v2153 = vsel %vm535, %v2141, 0.0
    %2154 = vadd.xlane.f32.xlu0 %v2153
    %v2155 = vpop.xlane.xlu0 %2154
    %v2156 = vsel %vm535, %v2143, 0.0
    %2157 = vadd.xlane.f32.xlu0 %v2156
    %v2158 = vpop.xlane.xlu0 %2157
    %v2159 = vrcp.pop %v2146
    %v2160 = vmul.f32 %v2135, %v2159
    %v2161 = vrcp.pop %v2149
    %v2162 = vmul.f32 %v2137, %v2161
    %v2163 = vrcp.pop %v2152
    %v2164 = vmul.f32 %v2139, %v2163
    %v2165 = vrcp.pop %v2155
    %v2166 = vmul.f32 %v2141, %v2165
    %v2167 = vrcp.pop %v2158
    %v2168 = vmul.f32 %v2143, %v2167
    %2174 = vrot.lane.b32.xlu0 %v389, 112
    %v2175 = vpop.permute.xlu0 %2174
    %2176 = vrot.lane.b32.xlu0 %v390, 112
    %v2177 = vpop.permute.xlu0 %2176
    %2178 = vrot.lane.b32.xlu0 %v391, 112
    %v2179 = vpop.permute.xlu0 %2178
    %2180 = vrot.lane.b32.xlu0 %v392, 112
    %v2181 = vpop.permute.xlu0 %2180
    %2182 = vrot.lane.b32.xlu0 %v393, 112
    %v2183 = vpop.permute.xlu0 %2182
    %v2190 = vsel %vm535, %v2160, 0
    %v2193 = vsel %vm535, %v2162, 0
    %v2196 = vsel %vm535, %v2164, 0
    %v2199 = vsel %vm535, %v2166, 0
    %v2202 = vsel %vm535, %v2168, 0
    %2204 = vmatprep.subr.mxu0 0.0
    %2205 = vmatpush1.msra.mxu0 %v2175
    %2206 = vmatprep.subr.mxu0 0.0
    %2207 = vmatpush1.msra.mxu0 %v2177
    %2208 = vmatprep.subr.mxu0 0.0
    %2209 = vmatpush1.msra.mxu0 %v2179
    %2210 = vmatprep.subr.mxu0 0.0
    %2211 = vmatpush1.msra.mxu0 %v2181
    %2212 = vmatprep.subr.mxu0 0.0
    %2213 = vmatpush1.msra.mxu0 %v2183
    %2214 = vmatprep.subr.mxu0 0.0
    %2215 = vmatpush1.msra.mxu0 0.0
    %2216 = vmatprep.subr.mxu0 0.0
    %2217 = vmatpush1.msra.mxu0 0.0
    %2218 = vmatprep.subr.mxu0 0.0
    %2219 = vmatpush1.msra.mxu0 0.0
    %2220 = vmatprep.subr.mxu0 0.0
    %2221 = vmatpush1.msra.mxu0 0.0
    %2222 = vmatprep.subr.mxu0 0.0
    %2223 = vmatpush1.msra.mxu0 0.0
    %2224 = vmatprep.subr.mxu0 0.0
    %2225 = vmatpush1.msra.mxu0 0.0
    %2226 = vmatprep.subr.mxu0 0.0
    %2227 = vmatpush1.msra.mxu0 0.0
    %2228 = vmatprep.subr.mxu0 0.0
    %2229 = vmatpush1.msra.mxu0 0.0
    %2230 = vmatprep.subr.mxu0 0.0
    %2231 = vmatpush1.msra.mxu0 0.0
    %2232 = vmatprep.subr.mxu0 0.0
    %2233 = vmatpush1.msra.mxu0 0.0
    %2234 = vmatprep.subr.mxu0 0.0
    %2235 = vmatpush1.msra.mxu0 0.0
    %2236 = vmatprep.subr.mxu0 0.0
    %2237 = vmatpush1.msra.mxu0 0.0
    %2238 = vmatprep.subr.mxu0 0.0
    %2239 = vmatpush1.msra.mxu0 0.0
    %2240 = vmatprep.subr.mxu0 0.0
    %2241 = vmatpush1.msra.mxu0 0.0
    %2242 = vmatprep.subr.mxu0 0.0
    %2243 = vmatpush1.msra.mxu0 0.0
    %2244 = vmatprep.subr.mxu0 0.0
    %2245 = vmatpush1.msra.mxu0 0.0
    %2246 = vmatprep.subr.mxu0 0.0
    %2247 = vmatpush1.msra.mxu0 0.0
    %2248 = vmatprep.subr.mxu0 0.0
    %2249 = vmatpush1.msra.mxu0 0.0
    %2250 = vmatprep.subr.mxu0 0.0
    %2251 = vmatpush1.msra.mxu0 0.0
    %2252 = vmatprep.subr.mxu0 0.0
    %2253 = vmatpush1.msra.mxu0 0.0
    %2254 = vmatprep.subr.mxu0 0.0
    %2255 = vmatpush1.msra.mxu0 0.0
    %2256 = vmatprep.subr.mxu0 0.0
    %2257 = vmatpush1.msra.mxu0 0.0
    %2258 = vmatprep.subr.mxu0 0.0
    %2259 = vmatpush1.msra.mxu0 0.0
    %2260 = vmatprep.subr.mxu0 0.0
    %2261 = vmatpush1.msra.mxu0 0.0
    %2262 = vmatprep.subr.mxu0 0.0
    %2263 = vmatpush1.msra.mxu0 0.0
    %2264 = vmatprep.subr.mxu0 0.0
    %2265 = vmatpush1.msra.mxu0 0.0
    %2266 = vmatprep.subr.mxu0 0.0
    %2267 = vmatpush1.msra.mxu0 0.0
    %2268 = vmatprep.mubr.f32.mxu0 0.0
    %2269 = vmatmul.mubr.f32.gmra.mrb[0].mxu0 %v2190
    %v2270 = vpop.f32.mrb[0].mxu0
    %v2271 = vadd.f32 0.0, %v2270
    %v2272 = vpop.f32.mrb[0].mxu0
    %2273 = vmatprep.mubr.f32.mxu0 0.0
    %2274 = vmatmul.mubr.f32.gmra.mrb[0].mxu0 %v2193
    %v2275 = vpop.f32.mrb[0].mxu0
    %v2276 = vadd.f32 0.0, %v2275
    %v2277 = vpop.f32.mrb[0].mxu0
    %2278 = vmatprep.mubr.f32.mxu0 0.0
    %2279 = vmatmul.mubr.f32.gmra.mrb[0].mxu0 %v2196
    %v2280 = vpop.f32.mrb[0].mxu0
    %v2281 = vadd.f32 0.0, %v2280
    %v2282 = vpop.f32.mrb[0].mxu0
    %2283 = vmatprep.mubr.f32.mxu0 0.0
    %2284 = vmatmul.mubr.f32.gmra.mrb[0].mxu0 %v2199
    %v2285 = vpop.f32.mrb[0].mxu0
    %v2286 = vadd.f32 0.0, %v2285
    %v2287 = vpop.f32.mrb[0].mxu0
    %2288 = vmatprep.mubr.f32.mxu0 0.0
    %2289 = vmatmul.mubr.f32.gmra.mrb[0].mxu0 %v2202
    %v2290 = vpop.f32.mrb[0].mxu0
    %v2291 = vadd.f32 0.0, %v2290
    %v2292 = vpop.f32.mrb[0].mxu0
    %2293 = vdwg.mxu0
    %2299 = vrot.lane.b32.xlu0 %v2271, 16
    %v2300 = vpop.permute.xlu0 %2299
    %2301 = vrot.lane.b32.xlu0 %v2276, 16
    %v2302 = vpop.permute.xlu0 %2301
    %2303 = vrot.lane.b32.xlu0 %v2281, 16
    %v2304 = vpop.permute.xlu0 %2303
    %2305 = vrot.lane.b32.xlu0 %v2286, 16
    %v2306 = vpop.permute.xlu0 %2305
    %2307 = vrot.lane.b32.xlu0 %v2291, 16
    %v2308 = vpop.permute.xlu0 %2307
    %2314 = vst.msk [vmem:[#allocation2 + $0x28] sm:$0xff] %vm1031, %v2300
    %2315 = vst.msk [vmem:[#allocation2 + $0x30] sm:$0xff] %vm1031, %v2302
    %2316 = vst.msk [vmem:[#allocation2 + $0x38] sm:$0xff] %vm1031, %v2304
    %2317 = vst.msk [vmem:[#allocation2 + $0x40] sm:$0xff] %vm1031, %v2306
    %2318 = vst.msk [vmem:[#allocation2 + $0x48] sm:$0xff] %vm1031, %v2308
    %2319 = vrot.lane.b32.xlu0 %v36, 96
    %v2320 = vpop.permute.xlu0 %2319
    %2321 = vrot.lane.b32.xlu0 %v37, 96
    %v2322 = vpop.permute.xlu0 %2321
    %2323 = vrot.lane.b32.xlu0 %v38, 96
    %v2324 = vpop.permute.xlu0 %2323
    %2325 = vrot.lane.b32.xlu0 %v39, 96
    %v2326 = vpop.permute.xlu0 %2325
    %2327 = vrot.lane.b32.xlu0 %v40, 96
    %v2328 = vpop.permute.xlu0 %2327
    %2329 = vrot.lane.b32.xlu0 %v313, 96
    %v2330 = vpop.permute.xlu0 %2329
    %2331 = vrot.lane.b32.xlu0 %v314, 96
    %v2332 = vpop.permute.xlu0 %2331
    %2333 = vrot.lane.b32.xlu0 %v315, 96
    %v2334 = vpop.permute.xlu0 %2333
    %2335 = vrot.lane.b32.xlu0 %v316, 96
    %v2336 = vpop.permute.xlu0 %2335
    %2337 = vrot.lane.b32.xlu0 %v317, 96
    %v2338 = vpop.permute.xlu0 %2337
    %v2339 = vsel %vm414, %v2320, 0
    %v2341 = vsel %vm414, %v2322, 0
    %v2343 = vsel %vm414, %v2324, 0
    %v2345 = vsel %vm414, %v2326, 0
    %v2347 = vsel %vm414, %v2328, 0
    %v2349 = vsel %vm414, %v2330, 0
    %v2351 = vsel %vm414, %v2332, 0
    %v2353 = vsel %vm414, %v2334, 0
    %v2355 = vsel %vm414, %v2336, 0
    %v2357 = vsel %vm414, %v2338, 0
    %2359 = vmatprep.subr.mxu0 0.0
    %2360 = vmatpush1.xpose.msra.mxu0 %v2349
    %2361 = vmatprep.subr.mxu0 0.0
    %2362 = vmatpush1.xpose.msra.mxu0 %v2351
    %2363 = vmatprep.subr.mxu0 0.0
    %2364 = vmatpush1.xpose.msra.mxu0 %v2353
    %2365 = vmatprep.subr.mxu0 0.0
    %2366 = vmatpush1.xpose.msra.mxu0 %v2355
    %2367 = vmatprep.subr.mxu0 0.0
    %2368 = vmatpush1.xpose.msra.mxu0 %v2357
    %2369 = vmatprep.subr.mxu0 0.0
    %2370 = vmatpush1.xpose.msra.mxu0 0.0
    %2371 = vmatprep.subr.mxu0 0.0
    %2372 = vmatpush1.xpose.msra.mxu0 0.0
    %2373 = vmatprep.subr.mxu0 0.0
    %2374 = vmatpush1.xpose.msra.mxu0 0.0
    %2375 = vmatprep.subr.mxu0 0.0
    %2376 = vmatpush1.xpose.msra.mxu0 0.0
    %2377 = vmatprep.subr.mxu0 0.0
    %2378 = vmatpush1.xpose.msra.mxu0 0.0
    %2379 = vmatprep.subr.mxu0 0.0
    %2380 = vmatpush1.xpose.msra.mxu0 0.0
    %2381 = vmatprep.subr.mxu0 0.0
    %2382 = vmatpush1.xpose.msra.mxu0 0.0
    %2383 = vmatprep.subr.mxu0 0.0
    %2384 = vmatpush1.xpose.msra.mxu0 0.0
    %2385 = vmatprep.subr.mxu0 0.0
    %2386 = vmatpush1.xpose.msra.mxu0 0.0
    %2387 = vmatprep.subr.mxu0 0.0
    %2388 = vmatpush1.xpose.msra.mxu0 0.0
    %2389 = vmatprep.subr.mxu0 0.0
    %2390 = vmatpush1.xpose.msra.mxu0 0.0
    %2391 = vmatprep.subr.mxu0 0.0
    %2392 = vmatpush1.xpose.msra.mxu0 0.0
    %2393 = vmatprep.subr.mxu0 0.0
    %2394 = vmatpush1.xpose.msra.mxu0 0.0
    %2395 = vmatprep.subr.mxu0 0.0
    %2396 = vmatpush1.xpose.msra.mxu0 0.0
    %2397 = vmatprep.subr.mxu0 0.0
    %2398 = vmatpush1.xpose.msra.mxu0 0.0
    %2399 = vmatprep.subr.mxu0 0.0
    %2400 = vmatpush1.xpose.msra.mxu0 0.0
    %2401 = vmatprep.subr.mxu0 0.0
    %2402 = vmatpush1.xpose.msra.mxu0 0.0
    %2403 = vmatprep.subr.mxu0 0.0
    %2404 = vmatpush1.xpose.msra.mxu0 0.0
    %2405 = vmatprep.subr.mxu0 0.0
    %2406 = vmatpush1.xpose.msra.mxu0 0.0
    %2407 = vmatprep.subr.mxu0 0.0
    %2408 = vmatpush1.xpose.msra.mxu0 0.0
    %2409 = vmatprep.subr.mxu0 0.0
    %2410 = vmatpush1.xpose.msra.mxu0 0.0
    %2411 = vmatprep.subr.mxu0 0.0
    %2412 = vmatpush1.xpose.msra.mxu0 0.0
    %2413 = vmatprep.subr.mxu0 0.0
    %2414 = vmatpush1.xpose.msra.mxu0 0.0
    %2415 = vmatprep.subr.mxu0 0.0
    %2416 = vmatpush1.xpose.msra.mxu0 0.0
    %2417 = vmatprep.subr.mxu0 0.0
    %2418 = vmatpush1.xpose.msra.mxu0 0.0
    %2419 = vmatprep.subr.mxu0 0.0
    %2420 = vmatpush1.xpose.msra.mxu0 0.0
    %2421 = vmatprep.subr.mxu0 0.0
    %2422 = vmatpush1.xpose.msra.mxu0 0.0
    %2423 = vmatprep.mubr.f32.mxu0 0.0
    %2424 = vmatmul.mubr.f32.gmra.mrb[0].mxu0 %v2339
    %v2425 = vpop.f32.mrb[0].mxu0
    %v2426 = vadd.f32 0.0, %v2425
    %v2427 = vpop.f32.mrb[0].mxu0
    %2428 = vmatprep.mubr.f32.mxu0 0.0
    %2429 = vmatmul.mubr.f32.gmra.mrb[0].mxu0 %v2341
    %v2430 = vpop.f32.mrb[0].mxu0
    %v2431 = vadd.f32 0.0, %v2430
    %v2432 = vpop.f32.mrb[0].mxu0
    %2433 = vmatprep.mubr.f32.mxu0 0.0
    %2434 = vmatmul.mubr.f32.gmra.mrb[0].mxu0 %v2343
    %v2435 = vpop.f32.mrb[0].mxu0
    %v2436 = vadd.f32 0.0, %v2435
    %v2437 = vpop.f32.mrb[0].mxu0
    %2438 = vmatprep.mubr.f32.mxu0 0.0
    %2439 = vmatmul.mubr.f32.gmra.mrb[0].mxu0 %v2345
    %v2440 = vpop.f32.mrb[0].mxu0
    %v2441 = vadd.f32 0.0, %v2440
    %v2442 = vpop.f32.mrb[0].mxu0
    %2443 = vmatprep.mubr.f32.mxu0 0.0
    %2444 = vmatmul.mubr.f32.gmra.mrb[0].mxu0 %v2347
    %v2445 = vpop.f32.mrb[0].mxu0
    %v2446 = vadd.f32 0.0, %v2445
    %v2447 = vpop.f32.mrb[0].mxu0
    %2448 = vdwg.mxu0
    %v2449 = vsel %vm535, %v2426, -inf
    %2450 = vmax.xlane.f32.xlu0 %v2449
    %v2451 = vpop.xlane.xlu0 %2450
    %v2452 = vsel %vm535, %v2431, -inf
    %2453 = vmax.xlane.f32.xlu0 %v2452
    %v2454 = vpop.xlane.xlu0 %2453
    %v2455 = vsel %vm535, %v2436, -inf
    %2456 = vmax.xlane.f32.xlu0 %v2455
    %v2457 = vpop.xlane.xlu0 %2456
    %v2458 = vsel %vm535, %v2441, -inf
    %2459 = vmax.xlane.f32.xlu0 %v2458
    %v2460 = vpop.xlane.xlu0 %2459
    %v2461 = vsel %vm535, %v2446, -inf
    %2462 = vmax.xlane.f32.xlu0 %v2461
    %v2463 = vpop.xlane.xlu0 %2462
    %v2464 = vsub.f32 %v2426, %v2451
    %v2465 = vsub.f32 %v2431, %v2454
    %v2466 = vsub.f32 %v2436, %v2457
    %v2467 = vsub.f32 %v2441, %v2460
    %v2468 = vsub.f32 %v2446, %v2463
    %v2469 = vmul.f32 %v2464, 1.442695
    %v2470 = vpow.pop %v2469
    %v2471 = vmul.f32 %v2465, 1.442695
    %v2472 = vpow.pop %v2471
    %v2473 = vmul.f32 %v2466, 1.442695
    %v2474 = vpow.pop %v2473
    %v2475 = vmul.f32 %v2467, 1.442695
    %v2476 = vpow.pop %v2475
    %v2477 = vmul.f32 %v2468, 1.442695
    %v2478 = vpow.pop %v2477
    %v2479 = vsel %vm535, %v2470, 0.0
    %2480 = vadd.xlane.f32.xlu0 %v2479
    %v2481 = vpop.xlane.xlu0 %2480
    %v2482 = vsel %vm535, %v2472, 0.0
    %2483 = vadd.xlane.f32.xlu0 %v2482
    %v2484 = vpop.xlane.xlu0 %2483
    %v2485 = vsel %vm535, %v2474, 0.0
    %2486 = vadd.xlane.f32.xlu0 %v2485
    %v2487 = vpop.xlane.xlu0 %2486
    %v2488 = vsel %vm535, %v2476, 0.0
    %2489 = vadd.xlane.f32.xlu0 %v2488
    %v2490 = vpop.xlane.xlu0 %2489
    %v2491 = vsel %vm535, %v2478, 0.0
    %2492 = vadd.xlane.f32.xlu0 %v2491
    %v2493 = vpop.xlane.xlu0 %2492
    %v2494 = vrcp.pop %v2481
    %v2495 = vmul.f32 %v2470, %v2494
    %v2496 = vrcp.pop %v2484
    %v2497 = vmul.f32 %v2472, %v2496
    %v2498 = vrcp.pop %v2487
    %v2499 = vmul.f32 %v2474, %v2498
    %v2500 = vrcp.pop %v2490
    %v2501 = vmul.f32 %v2476, %v2500
    %v2502 = vrcp.pop %v2493
    %v2503 = vmul.f32 %v2478, %v2502
    %2504 = vrot.lane.b32.xlu0 %v389, 96
    %v2505 = vpop.permute.xlu0 %2504
    %2506 = vrot.lane.b32.xlu0 %v390, 96
    %v2507 = vpop.permute.xlu0 %2506
    %2508 = vrot.lane.b32.xlu0 %v391, 96
    %v2509 = vpop.permute.xlu0 %2508
    %2510 = vrot.lane.b32.xlu0 %v392, 96
    %v2511 = vpop.permute.xlu0 %2510
    %2512 = vrot.lane.b32.xlu0 %v393, 96
    %v2513 = vpop.permute.xlu0 %2512
    %v2520 = vsel %vm535, %v2495, 0
    %v2523 = vsel %vm535, %v2497, 0
    %v2526 = vsel %vm535, %v2499, 0
    %v2529 = vsel %vm535, %v2501, 0
    %v2532 = vsel %vm535, %v2503, 0
    %2534 = vmatprep.subr.mxu0 0.0
    %2535 = vmatpush1.msra.mxu0 %v2505
    %2536 = vmatprep.subr.mxu0 0.0
    %2537 = vmatpush1.msra.mxu0 %v2507
    %2538 = vmatprep.subr.mxu0 0.0
    %2539 = vmatpush1.msra.mxu0 %v2509
    %2540 = vmatprep.subr.mxu0 0.0
    %2541 = vmatpush1.msra.mxu0 %v2511
    %2542 = vmatprep.subr.mxu0 0.0
    %2543 = vmatpush1.msra.mxu0 %v2513
    %2544 = vmatprep.subr.mxu0 0.0
    %2545 = vmatpush1.msra.mxu0 0.0
    %2546 = vmatprep.subr.mxu0 0.0
    %2547 = vmatpush1.msra.mxu0 0.0
    %2548 = vmatprep.subr.mxu0 0.0
    %2549 = vmatpush1.msra.mxu0 0.0
    %2550 = vmatprep.subr.mxu0 0.0
    %2551 = vmatpush1.msra.mxu0 0.0
    %2552 = vmatprep.subr.mxu0 0.0
    %2553 = vmatpush1.msra.mxu0 0.0
    %2554 = vmatprep.subr.mxu0 0.0
    %2555 = vmatpush1.msra.mxu0 0.0
    %2556 = vmatprep.subr.mxu0 0.0
    %2557 = vmatpush1.msra.mxu0 0.0
    %2558 = vmatprep.subr.mxu0 0.0
    %2559 = vmatpush1.msra.mxu0 0.0
    %2560 = vmatprep.subr.mxu0 0.0
    %2561 = vmatpush1.msra.mxu0 0.0
    %2562 = vmatprep.subr.mxu0 0.0
    %2563 = vmatpush1.msra.mxu0 0.0
    %2564 = vmatprep.subr.mxu0 0.0
    %2565 = vmatpush1.msra.mxu0 0.0
    %2566 = vmatprep.subr.mxu0 0.0
    %2567 = vmatpush1.msra.mxu0 0.0
    %2568 = vmatprep.subr.mxu0 0.0
    %2569 = vmatpush1.msra.mxu0 0.0
    %2570 = vmatprep.subr.mxu0 0.0
    %2571 = vmatpush1.msra.mxu0 0.0
    %2572 = vmatprep.subr.mxu0 0.0
    %2573 = vmatpush1.msra.mxu0 0.0
    %2574 = vmatprep.subr.mxu0 0.0
    %2575 = vmatpush1.msra.mxu0 0.0
    %2576 = vmatprep.subr.mxu0 0.0
    %2577 = vmatpush1.msra.mxu0 0.0
    %2578 = vmatprep.subr.mxu0 0.0
    %2579 = vmatpush1.msra.mxu0 0.0
    %2580 = vmatprep.subr.mxu0 0.0
    %2581 = vmatpush1.msra.mxu0 0.0
    %2582 = vmatprep.subr.mxu0 0.0
    %2583 = vmatpush1.msra.mxu0 0.0
    %2584 = vmatprep.subr.mxu0 0.0
    %2585 = vmatpush1.msra.mxu0 0.0
    %2586 = vmatprep.subr.mxu0 0.0
    %2587 = vmatpush1.msra.mxu0 0.0
    %2588 = vmatprep.subr.mxu0 0.0
    %2589 = vmatpush1.msra.mxu0 0.0
    %2590 = vmatprep.subr.mxu0 0.0
    %2591 = vmatpush1.msra.mxu0 0.0
    %2592 = vmatprep.subr.mxu0 0.0
    %2593 = vmatpush1.msra.mxu0 0.0
    %2594 = vmatprep.subr.mxu0 0.0
    %2595 = vmatpush1.msra.mxu0 0.0
    %2596 = vmatprep.subr.mxu0 0.0
    %2597 = vmatpush1.msra.mxu0 0.0
    %2598 = vmatprep.mubr.f32.mxu0 0.0
    %2599 = vmatmul.mubr.f32.gmra.mrb[0].mxu0 %v2520
    %v2600 = vpop.f32.mrb[0].mxu0
    %v2601 = vadd.f32 0.0, %v2600
    %v2602 = vpop.f32.mrb[0].mxu0
    %2603 = vmatprep.mubr.f32.mxu0 0.0
    %2604 = vmatmul.mubr.f32.gmra.mrb[0].mxu0 %v2523
    %v2605 = vpop.f32.mrb[0].mxu0
    %v2606 = vadd.f32 0.0, %v2605
    %v2607 = vpop.f32.mrb[0].mxu0
    %2608 = vmatprep.mubr.f32.mxu0 0.0
    %2609 = vmatmul.mubr.f32.gmra.mrb[0].mxu0 %v2526
    %v2610 = vpop.f32.mrb[0].mxu0
    %v2611 = vadd.f32 0.0, %v2610
    %v2612 = vpop.f32.mrb[0].mxu0
    %2613 = vmatprep.mubr.f32.mxu0 0.0
    %2614 = vmatmul.mubr.f32.gmra.mrb[0].mxu0 %v2529
    %v2615 = vpop.f32.mrb[0].mxu0
    %v2616 = vadd.f32 0.0, %v2615
    %v2617 = vpop.f32.mrb[0].mxu0
    %2618 = vmatprep.mubr.f32.mxu0 0.0
    %2619 = vmatmul.mubr.f32.gmra.mrb[0].mxu0 %v2532
    %v2620 = vpop.f32.mrb[0].mxu0
    %v2621 = vadd.f32 0.0, %v2620
    %v2622 = vpop.f32.mrb[0].mxu0
    %2623 = vdwg.mxu0
    %2629 = vrot.lane.b32.xlu0 %v2601, 32
    %v2630 = vpop.permute.xlu0 %2629
    %2631 = vrot.lane.b32.xlu0 %v2606, 32
    %v2632 = vpop.permute.xlu0 %2631
    %2633 = vrot.lane.b32.xlu0 %v2611, 32
    %v2634 = vpop.permute.xlu0 %2633
    %2635 = vrot.lane.b32.xlu0 %v2616, 32
    %v2636 = vpop.permute.xlu0 %2635
    %2637 = vrot.lane.b32.xlu0 %v2621, 32
    %v2638 = vpop.permute.xlu0 %2637
    %2644 = vst.msk [vmem:[#allocation2 + $0x28] sm:$0xff] %vm1362, %v2630
    %2645 = vst.msk [vmem:[#allocation2 + $0x30] sm:$0xff] %vm1362, %v2632
    %2646 = vst.msk [vmem:[#allocation2 + $0x38] sm:$0xff] %vm1362, %v2634
    %2647 = vst.msk [vmem:[#allocation2 + $0x40] sm:$0xff] %vm1362, %v2636
    %2648 = vst.msk [vmem:[#allocation2 + $0x48] sm:$0xff] %vm1362, %v2638
    %2649 = vrot.lane.b32.xlu0 %v36, 80
    %v2650 = vpop.permute.xlu0 %2649
    %2651 = vrot.lane.b32.xlu0 %v37, 80
    %v2652 = vpop.permute.xlu0 %2651
    %2653 = vrot.lane.b32.xlu0 %v38, 80
    %v2654 = vpop.permute.xlu0 %2653
    %2655 = vrot.lane.b32.xlu0 %v39, 80
    %v2656 = vpop.permute.xlu0 %2655
    %2657 = vrot.lane.b32.xlu0 %v40, 80
    %v2658 = vpop.permute.xlu0 %2657
    %2659 = vrot.lane.b32.xlu0 %v313, 80
    %v2660 = vpop.permute.xlu0 %2659
    %2661 = vrot.lane.b32.xlu0 %v314, 80
    %v2662 = vpop.permute.xlu0 %2661
    %2663 = vrot.lane.b32.xlu0 %v315, 80
    %v2664 = vpop.permute.xlu0 %2663
    %2665 = vrot.lane.b32.xlu0 %v316, 80
    %v2666 = vpop.permute.xlu0 %2665
    %2667 = vrot.lane.b32.xlu0 %v317, 80
    %v2668 = vpop.permute.xlu0 %2667
    %v2669 = vsel %vm414, %v2650, 0
    %v2671 = vsel %vm414, %v2652, 0
    %v2673 = vsel %vm414, %v2654, 0
    %v2675 = vsel %vm414, %v2656, 0
    %v2677 = vsel %vm414, %v2658, 0
    %v2679 = vsel %vm414, %v2660, 0
    %v2681 = vsel %vm414, %v2662, 0
    %v2683 = vsel %vm414, %v2664, 0
    %v2685 = vsel %vm414, %v2666, 0
    %v2687 = vsel %vm414, %v2668, 0
    %2689 = vmatprep.subr.mxu0 0.0
    %2690 = vmatpush1.xpose.msra.mxu0 %v2679
    %2691 = vmatprep.subr.mxu0 0.0
    %2692 = vmatpush1.xpose.msra.mxu0 %v2681
    %2693 = vmatprep.subr.mxu0 0.0
    %2694 = vmatpush1.xpose.msra.mxu0 %v2683
    %2695 = vmatprep.subr.mxu0 0.0
    %2696 = vmatpush1.xpose.msra.mxu0 %v2685
    %2697 = vmatprep.subr.mxu0 0.0
    %2698 = vmatpush1.xpose.msra.mxu0 %v2687
    %2699 = vmatprep.subr.mxu0 0.0
    %2700 = vmatpush1.xpose.msra.mxu0 0.0
    %2701 = vmatprep.subr.mxu0 0.0
    %2702 = vmatpush1.xpose.msra.mxu0 0.0
    %2703 = vmatprep.subr.mxu0 0.0
    %2704 = vmatpush1.xpose.msra.mxu0 0.0
    %2705 = vmatprep.subr.mxu0 0.0
    %2706 = vmatpush1.xpose.msra.mxu0 0.0
    %2707 = vmatprep.subr.mxu0 0.0
    %2708 = vmatpush1.xpose.msra.mxu0 0.0
    %2709 = vmatprep.subr.mxu0 0.0
    %2710 = vmatpush1.xpose.msra.mxu0 0.0
    %2711 = vmatprep.subr.mxu0 0.0
    %2712 = vmatpush1.xpose.msra.mxu0 0.0
    %2713 = vmatprep.subr.mxu0 0.0
    %2714 = vmatpush1.xpose.msra.mxu0 0.0
    %2715 = vmatprep.subr.mxu0 0.0
    %2716 = vmatpush1.xpose.msra.mxu0 0.0
    %2717 = vmatprep.subr.mxu0 0.0
    %2718 = vmatpush1.xpose.msra.mxu0 0.0
    %2719 = vmatprep.subr.mxu0 0.0
    %2720 = vmatpush1.xpose.msra.mxu0 0.0
    %2721 = vmatprep.subr.mxu0 0.0
    %2722 = vmatpush1.xpose.msra.mxu0 0.0
    %2723 = vmatprep.subr.mxu0 0.0
    %2724 = vmatpush1.xpose.msra.mxu0 0.0
    %2725 = vmatprep.subr.mxu0 0.0
    %2726 = vmatpush1.xpose.msra.mxu0 0.0
    %2727 = vmatprep.subr.mxu0 0.0
    %2728 = vmatpush1.xpose.msra.mxu0 0.0
    %2729 = vmatprep.subr.mxu0 0.0
    %2730 = vmatpush1.xpose.msra.mxu0 0.0
    %2731 = vmatprep.subr.mxu0 0.0
    %2732 = vmatpush1.xpose.msra.mxu0 0.0
    %2733 = vmatprep.subr.mxu0 0.0
    %2734 = vmatpush1.xpose.msra.mxu0 0.0
    %2735 = vmatprep.subr.mxu0 0.0
    %2736 = vmatpush1.xpose.msra.mxu0 0.0
    %2737 = vmatprep.subr.mxu0 0.0
    %2738 = vmatpush1.xpose.msra.mxu0 0.0
    %2739 = vmatprep.subr.mxu0 0.0
    %2740 = vmatpush1.xpose.msra.mxu0 0.0
    %2741 = vmatprep.subr.mxu0 0.0
    %2742 = vmatpush1.xpose.msra.mxu0 0.0
    %2743 = vmatprep.subr.mxu0 0.0
    %2744 = vmatpush1.xpose.msra.mxu0 0.0
    %2745 = vmatprep.subr.mxu0 0.0
    %2746 = vmatpush1.xpose.msra.mxu0 0.0
    %2747 = vmatprep.subr.mxu0 0.0
    %2748 = vmatpush1.xpose.msra.mxu0 0.0
    %2749 = vmatprep.subr.mxu0 0.0
    %2750 = vmatpush1.xpose.msra.mxu0 0.0
    %2751 = vmatprep.subr.mxu0 0.0
    %2752 = vmatpush1.xpose.msra.mxu0 0.0
    %2753 = vmatprep.mubr.f32.mxu0 0.0
    %2754 = vmatmul.mubr.f32.gmra.mrb[0].mxu0 %v2669
    %v2755 = vpop.f32.mrb[0].mxu0
    %v2756 = vadd.f32 0.0, %v2755
    %v2757 = vpop.f32.mrb[0].mxu0
    %2758 = vmatprep.mubr.f32.mxu0 0.0
    %2759 = vmatmul.mubr.f32.gmra.mrb[0].mxu0 %v2671
    %v2760 = vpop.f32.mrb[0].mxu0
    %v2761 = vadd.f32 0.0, %v2760
    %v2762 = vpop.f32.mrb[0].mxu0
    %2763 = vmatprep.mubr.f32.mxu0 0.0
    %2764 = vmatmul.mubr.f32.gmra.mrb[0].mxu0 %v2673
    %v2765 = vpop.f32.mrb[0].mxu0
    %v2766 = vadd.f32 0.0, %v2765
    %v2767 = vpop.f32.mrb[0].mxu0
    %2768 = vmatprep.mubr.f32.mxu0 0.0
    %2769 = vmatmul.mubr.f32.gmra.mrb[0].mxu0 %v2675
    %v2770 = vpop.f32.mrb[0].mxu0
    %v2771 = vadd.f32 0.0, %v2770
    %v2772 = vpop.f32.mrb[0].mxu0
    %2773 = vmatprep.mubr.f32.mxu0 0.0
    %2774 = vmatmul.mubr.f32.gmra.mrb[0].mxu0 %v2677
    %v2775 = vpop.f32.mrb[0].mxu0
    %v2776 = vadd.f32 0.0, %v2775
    %v2777 = vpop.f32.mrb[0].mxu0
    %2778 = vdwg.mxu0
    %v2779 = vsel %vm535, %v2756, -inf
    %2780 = vmax.xlane.f32.xlu0 %v2779
    %v2781 = vpop.xlane.xlu0 %2780
    %v2782 = vsel %vm535, %v2761, -inf
    %2783 = vmax.xlane.f32.xlu0 %v2782
    %v2784 = vpop.xlane.xlu0 %2783
    %v2785 = vsel %vm535, %v2766, -inf
    %2786 = vmax.xlane.f32.xlu0 %v2785
    %v2787 = vpop.xlane.xlu0 %2786
    %v2788 = vsel %vm535, %v2771, -inf
    %2789 = vmax.xlane.f32.xlu0 %v2788
    %v2790 = vpop.xlane.xlu0 %2789
    %v2791 = vsel %vm535, %v2776, -inf
    %2792 = vmax.xlane.f32.xlu0 %v2791
    %v2793 = vpop.xlane.xlu0 %2792
    %v2794 = vsub.f32 %v2756, %v2781
    %v2795 = vsub.f32 %v2761, %v2784
    %v2796 = vsub.f32 %v2766, %v2787
    %v2797 = vsub.f32 %v2771, %v2790
    %v2798 = vsub.f32 %v2776, %v2793
    %v2799 = vmul.f32 %v2794, 1.442695
    %v2800 = vpow.pop %v2799
    %v2801 = vmul.f32 %v2795, 1.442695
    %v2802 = vpow.pop %v2801
    %v2803 = vmul.f32 %v2796, 1.442695
    %v2804 = vpow.pop %v2803
    %v2805 = vmul.f32 %v2797, 1.442695
    %v2806 = vpow.pop %v2805
    %v2807 = vmul.f32 %v2798, 1.442695
    %v2808 = vpow.pop %v2807
    %v2809 = vsel %vm535, %v2800, 0.0
    %2810 = vadd.xlane.f32.xlu0 %v2809
    %v2811 = vpop.xlane.xlu0 %2810
    %v2812 = vsel %vm535, %v2802, 0.0
    %2813 = vadd.xlane.f32.xlu0 %v2812
    %v2814 = vpop.xlane.xlu0 %2813
    %v2815 = vsel %vm535, %v2804, 0.0
    %2816 = vadd.xlane.f32.xlu0 %v2815
    %v2817 = vpop.xlane.xlu0 %2816
    %v2818 = vsel %vm535, %v2806, 0.0
    %2819 = vadd.xlane.f32.xlu0 %v2818
    %v2820 = vpop.xlane.xlu0 %2819
    %v2821 = vsel %vm535, %v2808, 0.0
    %2822 = vadd.xlane.f32.xlu0 %v2821
    %v2823 = vpop.xlane.xlu0 %2822
    %v2824 = vrcp.pop %v2811
    %v2825 = vmul.f32 %v2800, %v2824
    %v2826 = vrcp.pop %v2814
    %v2827 = vmul.f32 %v2802, %v2826
    %v2828 = vrcp.pop %v2817
    %v2829 = vmul.f32 %v2804, %v2828
    %v2830 = vrcp.pop %v2820
    %v2831 = vmul.f32 %v2806, %v2830
    %v2832 = vrcp.pop %v2823
    %v2833 = vmul.f32 %v2808, %v2832
    %2834 = vrot.lane.b32.xlu0 %v389, 80
    %v2835 = vpop.permute.xlu0 %2834
    %2836 = vrot.lane.b32.xlu0 %v390, 80
    %v2837 = vpop.permute.xlu0 %2836
    %2838 = vrot.lane.b32.xlu0 %v391, 80
    %v2839 = vpop.permute.xlu0 %2838
    %2840 = vrot.lane.b32.xlu0 %v392, 80
    %v2841 = vpop.permute.xlu0 %2840
    %2842 = vrot.lane.b32.xlu0 %v393, 80
    %v2843 = vpop.permute.xlu0 %2842
    %v2850 = vsel %vm535, %v2825, 0
    %v2853 = vsel %vm535, %v2827, 0
    %v2856 = vsel %vm535, %v2829, 0
    %v2859 = vsel %vm535, %v2831, 0
    %v2862 = vsel %vm535, %v2833, 0
    %2864 = vmatprep.subr.mxu0 0.0
    %2865 = vmatpush1.msra.mxu0 %v2835
    %2866 = vmatprep.subr.mxu0 0.0
    %2867 = vmatpush1.msra.mxu0 %v2837
    %2868 = vmatprep.subr.mxu0 0.0
    %2869 = vmatpush1.msra.mxu0 %v2839
    %2870 = vmatprep.subr.mxu0 0.0
    %2871 = vmatpush1.msra.mxu0 %v2841
    %2872 = vmatprep.subr.mxu0 0.0
    %2873 = vmatpush1.msra.mxu0 %v2843
    %2874 = vmatprep.subr.mxu0 0.0
    %2875 = vmatpush1.msra.mxu0 0.0
    %2876 = vmatprep.subr.mxu0 0.0
    %2877 = vmatpush1.msra.mxu0 0.0
    %2878 = vmatprep.subr.mxu0 0.0
    %2879 = vmatpush1.msra.mxu0 0.0
    %2880 = vmatprep.subr.mxu0 0.0
    %2881 = vmatpush1.msra.mxu0 0.0
    %2882 = vmatprep.subr.mxu0 0.0
    %2883 = vmatpush1.msra.mxu0 0.0
    %2884 = vmatprep.subr.mxu0 0.0
    %2885 = vmatpush1.msra.mxu0 0.0
    %2886 = vmatprep.subr.mxu0 0.0
    %2887 = vmatpush1.msra.mxu0 0.0
    %2888 = vmatprep.subr.mxu0 0.0
    %2889 = vmatpush1.msra.mxu0 0.0
    %2890 = vmatprep.subr.mxu0 0.0
    %2891 = vmatpush1.msra.mxu0 0.0
    %2892 = vmatprep.subr.mxu0 0.0
    %2893 = vmatpush1.msra.mxu0 0.0
    %2894 = vmatprep.subr.mxu0 0.0
    %2895 = vmatpush1.msra.mxu0 0.0
    %2896 = vmatprep.subr.mxu0 0.0
    %2897 = vmatpush1.msra.mxu0 0.0
    %2898 = vmatprep.subr.mxu0 0.0
    %2899 = vmatpush1.msra.mxu0 0.0
    %2900 = vmatprep.subr.mxu0 0.0
    %2901 = vmatpush1.msra.mxu0 0.0
    %2902 = vmatprep.subr.mxu0 0.0
    %2903 = vmatpush1.msra.mxu0 0.0
    %2904 = vmatprep.subr.mxu0 0.0
    %2905 = vmatpush1.msra.mxu0 0.0
    %2906 = vmatprep.subr.mxu0 0.0
    %2907 = vmatpush1.msra.mxu0 0.0
    %2908 = vmatprep.subr.mxu0 0.0
    %2909 = vmatpush1.msra.mxu0 0.0
    %2910 = vmatprep.subr.mxu0 0.0
    %2911 = vmatpush1.msra.mxu0 0.0
    %2912 = vmatprep.subr.mxu0 0.0
    %2913 = vmatpush1.msra.mxu0 0.0
    %2914 = vmatprep.subr.mxu0 0.0
    %2915 = vmatpush1.msra.mxu0 0.0
    %2916 = vmatprep.subr.mxu0 0.0
    %2917 = vmatpush1.msra.mxu0 0.0
    %2918 = vmatprep.subr.mxu0 0.0
    %2919 = vmatpush1.msra.mxu0 0.0
    %2920 = vmatprep.subr.mxu0 0.0
    %2921 = vmatpush1.msra.mxu0 0.0
    %2922 = vmatprep.subr.mxu0 0.0
    %2923 = vmatpush1.msra.mxu0 0.0
    %2924 = vmatprep.subr.mxu0 0.0
    %2925 = vmatpush1.msra.mxu0 0.0
    %2926 = vmatprep.subr.mxu0 0.0
    %2927 = vmatpush1.msra.mxu0 0.0
    %2928 = vmatprep.mubr.f32.mxu0 0.0
    %2929 = vmatmul.mubr.f32.gmra.mrb[0].mxu0 %v2850
    %v2930 = vpop.f32.mrb[0].mxu0
    %v2931 = vadd.f32 0.0, %v2930
    %v2932 = vpop.f32.mrb[0].mxu0
    %2933 = vmatprep.mubr.f32.mxu0 0.0
    %2934 = vmatmul.mubr.f32.gmra.mrb[0].mxu0 %v2853
    %v2935 = vpop.f32.mrb[0].mxu0
    %v2936 = vadd.f32 0.0, %v2935
    %v2937 = vpop.f32.mrb[0].mxu0
    %2938 = vmatprep.mubr.f32.mxu0 0.0
    %2939 = vmatmul.mubr.f32.gmra.mrb[0].mxu0 %v2856
    %v2940 = vpop.f32.mrb[0].mxu0
    %v2941 = vadd.f32 0.0, %v2940
    %v2942 = vpop.f32.mrb[0].mxu0
    %2943 = vmatprep.mubr.f32.mxu0 0.0
    %2944 = vmatmul.mubr.f32.gmra.mrb[0].mxu0 %v2859
    %v2945 = vpop.f32.mrb[0].mxu0
    %v2946 = vadd.f32 0.0, %v2945
    %v2947 = vpop.f32.mrb[0].mxu0
    %2948 = vmatprep.mubr.f32.mxu0 0.0
    %2949 = vmatmul.mubr.f32.gmra.mrb[0].mxu0 %v2862
    %v2950 = vpop.f32.mrb[0].mxu0
    %v2951 = vadd.f32 0.0, %v2950
    %v2952 = vpop.f32.mrb[0].mxu0
    %2953 = vdwg.mxu0
    %2959 = vrot.lane.b32.xlu0 %v2931, 48
    %v2960 = vpop.permute.xlu0 %2959
    %2961 = vrot.lane.b32.xlu0 %v2936, 48
    %v2962 = vpop.permute.xlu0 %2961
    %2963 = vrot.lane.b32.xlu0 %v2941, 48
    %v2964 = vpop.permute.xlu0 %2963
    %2965 = vrot.lane.b32.xlu0 %v2946, 48
    %v2966 = vpop.permute.xlu0 %2965
    %2967 = vrot.lane.b32.xlu0 %v2951, 48
    %v2968 = vpop.permute.xlu0 %2967
    %2974 = vst.msk [vmem:[#allocation2 + $0x28] sm:$0xff] %vm1693, %v2960
    %2975 = vst.msk [vmem:[#allocation2 + $0x30] sm:$0xff] %vm1693, %v2962
    %2976 = vst.msk [vmem:[#allocation2 + $0x38] sm:$0xff] %vm1693, %v2964
    %2977 = vst.msk [vmem:[#allocation2 + $0x40] sm:$0xff] %vm1693, %v2966
    %2978 = vst.msk [vmem:[#allocation2 + $0x48] sm:$0xff] %vm1693, %v2968
    %v2979 = vld [vmem:[#allocation2] sm:$0xff]
    %v2980 = vld [vmem:[#allocation2 + $0x8] sm:$0xff]
    %v2981 = vld [vmem:[#allocation2 + $0x10] sm:$0xff]
    %v2982 = vld [vmem:[#allocation2 + $0x18] sm:$0xff]
    %v2983 = vld [vmem:[#allocation2 + $0x20] sm:$0xff]
    %v2984 = vld [vmem:[#allocation2 + $0x28] sm:$0xff]
    %v2985 = vld [vmem:[#allocation2 + $0x30] sm:$0xff]
    %v2986 = vld [vmem:[#allocation2 + $0x38] sm:$0xff]
    %v2987 = vld [vmem:[#allocation2 + $0x40] sm:$0xff]
    %v2988 = vld [vmem:[#allocation2 + $0x48] sm:$0xff]
    %v2989 = vand.u32 2147483647, %v2979
    %v2990 = vand.u32 2147483647, %v2980
    %v2991 = vand.u32 2147483647, %v2981
    %v2992 = vand.u32 2147483647, %v2982
    %v2993 = vand.u32 2147483647, %v2983
    %v2994 = vand.u32 2147483647, %v2984
    %v2995 = vand.u32 2147483647, %v2985
    %v2996 = vand.u32 2147483647, %v2986
    %v2997 = vand.u32 2147483647, %v2987
    %v2998 = vand.u32 2147483647, %v2988
    %v2999 = vsel %vm66, %v2989, -inf
    %3000 = vmax.xlane.f32.xlu0 %v2999
    %v3001 = vpop.xlane.xlu0 %3000
    %v3002 = vsel %vm66, %v2990, -inf
    %3003 = vmax.xlane.f32.xlu0 %v3002
    %v3004 = vpop.xlane.xlu0 %3003
    %v3005 = vsel %vm66, %v2991, -inf
    %3006 = vmax.xlane.f32.xlu0 %v3005
    %v3007 = vpop.xlane.xlu0 %3006
    %v3008 = vsel %vm66, %v2992, -inf
    %3009 = vmax.xlane.f32.xlu0 %v3008
    %v3010 = vpop.xlane.xlu0 %3009
    %v3011 = vsel %vm66, %v2993, -inf
    %3012 = vmax.xlane.f32.xlu0 %v3011
    %v3013 = vpop.xlane.xlu0 %3012
    %v3014 = vsel %vm66, %v2994, -inf
    %3015 = vmax.xlane.f32.xlu0 %v3014
    %v3016 = vpop.xlane.xlu0 %3015
    %v3017 = vsel %vm66, %v2995, -inf
    %3018 = vmax.xlane.f32.xlu0 %v3017
    %v3019 = vpop.xlane.xlu0 %3018
    %v3020 = vsel %vm66, %v2996, -inf
    %3021 = vmax.xlane.f32.xlu0 %v3020
    %v3022 = vpop.xlane.xlu0 %3021
    %v3023 = vsel %vm66, %v2997, -inf
    %3024 = vmax.xlane.f32.xlu0 %v3023
    %v3025 = vpop.xlane.xlu0 %3024
    %v3026 = vsel %vm66, %v2998, -inf
    %3027 = vmax.xlane.f32.xlu0 %v3026
    %v3028 = vpop.xlane.xlu0 %3027
    %v3029 = vmax.f32 %v3001, 1e-05
    %v3030 = vmax.f32 %v3004, 1e-05
    %v3031 = vmax.f32 %v3007, 1e-05
    %v3032 = vmax.f32 %v3010, 1e-05
    %v3033 = vmax.f32 %v3013, 1e-05
    %v3034 = vmax.f32 %v3016, 1e-05
    %v3035 = vmax.f32 %v3019, 1e-05
    %v3036 = vmax.f32 %v3022, 1e-05
    %v3037 = vmax.f32 %v3025, 1e-05
    %v3038 = vmax.f32 %v3028, 1e-05
    %v3039 = vmul.f32 %v3029, %v82
    %v3040 = vmul.f32 %v3030, %v82
    %v3041 = vmul.f32 %v3031, %v82
    %v3042 = vmul.f32 %v3032, %v82
    %v3043 = vmul.f32 %v3033, %v82
    %v3044 = vmul.f32 %v3034, %v82
    %v3045 = vmul.f32 %v3035, %v82
    %v3046 = vmul.f32 %v3036, %v82
    %v3047 = vmul.f32 %v3037, %v82
    %v3048 = vmul.f32 %v3038, %v82
    %v3049 = vrcp.pop %v3039
    %v3050 = vmul.f32 %v2979, %v3049
    %v3051 = vrcp.pop %v3040
    %v3052 = vmul.f32 %v2980, %v3051
    %v3053 = vrcp.pop %v3041
    %v3054 = vmul.f32 %v2981, %v3053
    %v3055 = vrcp.pop %v3042
    %v3056 = vmul.f32 %v2982, %v3055
    %v3057 = vrcp.pop %v3043
    %v3058 = vmul.f32 %v2983, %v3057
    %v3059 = vrcp.pop %v3044
    %v3060 = vmul.f32 %v2984, %v3059
    %v3061 = vrcp.pop %v3045
    %v3062 = vmul.f32 %v2985, %v3061
    %v3063 = vrcp.pop %v3046
    %v3064 = vmul.f32 %v2986, %v3063
    %v3065 = vrcp.pop %v3047
    %v3066 = vmul.f32 %v2987, %v3065
    %v3067 = vrcp.pop %v3048
    %v3068 = vmul.f32 %v2988, %v3067
    %v3069 = vround.ne.pseudo %v3050
    %v3070 = vround.ne.pseudo %v3052
    %v3071 = vround.ne.pseudo %v3054
    %v3072 = vround.ne.pseudo %v3056
    %v3073 = vround.ne.pseudo %v3058
    %v3074 = vround.ne.pseudo %v3060
    %v3075 = vround.ne.pseudo %v3062
    %v3076 = vround.ne.pseudo %v3064
    %v3077 = vround.ne.pseudo %v3066
    %v3078 = vround.ne.pseudo %v3068
    %v3079 = vmul.f32 %v3069, %v3039
    %v3080 = vmul.f32 %v3070, %v3040
    %v3081 = vmul.f32 %v3071, %v3041
    %v3082 = vmul.f32 %v3072, %v3042
    %v3083 = vmul.f32 %v3073, %v3043
    %v3084 = vmul.f32 %v3074, %v3044
    %v3085 = vmul.f32 %v3075, %v3045
    %v3086 = vmul.f32 %v3076, %v3046
    %v3087 = vmul.f32 %v3077, %v3047
    %v3088 = vmul.f32 %v3078, %v3048
    %v3089 = vld [vmem:[%s4] sm:$0xff]
    %v3090 = vld [vmem:[%s4 + $0x8] sm:$0xff]
    %v3091 = vld [vmem:[%s4 + $0x10] sm:$0xff]
    %v3092 = vld [vmem:[%s4 + $0x18] sm:$0xff]
    %v3093 = vld [vmem:[%s4 + $0x20] sm:$0xff]
    %v3094 = vld [vmem:[%s4 + $0x28] sm:$0xff]
    %v3095 = vld [vmem:[%s4 + $0x30] sm:$0xff]
    %v3096 = vld [vmem:[%s4 + $0x38] sm:$0xff]
    %v3097 = vld [vmem:[%s5] sm:$0x1]
    %v3099 = vlaneseq
    %v3100 = vshrl.u32 %v3099, 7
    %v3101 = vsub.s32 0, %v3100
    %v3102 = vrot.slane %v3097, %v3101
    %v3105 = vsel %vm66, %v3079, 0
    %v3108 = vsel %vm66, %v3080, 0
    %v3111 = vsel %vm66, %v3081, 0
    %v3114 = vsel %vm66, %v3082, 0
    %v3117 = vsel %vm66, %v3083, 0
    %v3120 = vsel %vm66, %v3084, 0
    %v3123 = vsel %vm66, %v3085, 0
    %v3126 = vsel %vm66, %v3086, 0
    %v3129 = vsel %vm66, %v3087, 0
    %v3132 = vsel %vm66, %v3088, 0
    %3134 = vmatprep.subr.mxu0 0.0
    %3135 = vmatpush1.msra.mxu0 %v3089
    %3136 = vmatprep.subr.mxu0 0.0
    %3137 = vmatpush1.msra.mxu0 %v3090
    %3138 = vmatprep.subr.mxu0 0.0
    %3139 = vmatpush1.msra.mxu0 %v3091
    %3140 = vmatprep.subr.mxu0 0.0
    %3141 = vmatpush1.msra.mxu0 %v3092
    %3142 = vmatprep.subr.mxu0 0.0
    %3143 = vmatpush1.msra.mxu0 %v3093
    %3144 = vmatprep.subr.mxu0 0.0
    %3145 = vmatpush1.msra.mxu0 %v3094
    %3146 = vmatprep.subr.mxu0 0.0
    %3147 = vmatpush1.msra.mxu0 %v3095
    %3148 = vmatprep.subr.mxu0 0.0
    %3149 = vmatpush1.msra.mxu0 %v3096
    %3150 = vmatprep.subr.mxu0 0.0
    %3151 = vmatpush1.msra.mxu0 0.0
    %3152 = vmatprep.subr.mxu0 0.0
    %3153 = vmatpush1.msra.mxu0 0.0
    %3154 = vmatprep.subr.mxu0 0.0
    %3155 = vmatpush1.msra.mxu0 0.0
    %3156 = vmatprep.subr.mxu0 0.0
    %3157 = vmatpush1.msra.mxu0 0.0
    %3158 = vmatprep.subr.mxu0 0.0
    %3159 = vmatpush1.msra.mxu0 0.0
    %3160 = vmatprep.subr.mxu0 0.0
    %3161 = vmatpush1.msra.mxu0 0.0
    %3162 = vmatprep.subr.mxu0 0.0
    %3163 = vmatpush1.msra.mxu0 0.0
    %3164 = vmatprep.subr.mxu0 0.0
    %3165 = vmatpush1.msra.mxu0 0.0
    %3166 = vmatprep.subr.mxu0 0.0
    %3167 = vmatpush1.msra.mxu0 0.0
    %3168 = vmatprep.subr.mxu0 0.0
    %3169 = vmatpush1.msra.mxu0 0.0
    %3170 = vmatprep.subr.mxu0 0.0
    %3171 = vmatpush1.msra.mxu0 0.0
    %3172 = vmatprep.subr.mxu0 0.0
    %3173 = vmatpush1.msra.mxu0 0.0
    %3174 = vmatprep.subr.mxu0 0.0
    %3175 = vmatpush1.msra.mxu0 0.0
    %3176 = vmatprep.subr.mxu0 0.0
    %3177 = vmatpush1.msra.mxu0 0.0
    %3178 = vmatprep.subr.mxu0 0.0
    %3179 = vmatpush1.msra.mxu0 0.0
    %3180 = vmatprep.subr.mxu0 0.0
    %3181 = vmatpush1.msra.mxu0 0.0
    %3182 = vmatprep.subr.mxu0 0.0
    %3183 = vmatpush1.msra.mxu0 0.0
    %3184 = vmatprep.subr.mxu0 0.0
    %3185 = vmatpush1.msra.mxu0 0.0
    %3186 = vmatprep.subr.mxu0 0.0
    %3187 = vmatpush1.msra.mxu0 0.0
    %3188 = vmatprep.subr.mxu0 0.0
    %3189 = vmatpush1.msra.mxu0 0.0
    %3190 = vmatprep.subr.mxu0 0.0
    %3191 = vmatpush1.msra.mxu0 0.0
    %3192 = vmatprep.subr.mxu0 0.0
    %3193 = vmatpush1.msra.mxu0 0.0
    %3194 = vmatprep.subr.mxu0 0.0
    %3195 = vmatpush1.msra.mxu0 0.0
    %3196 = vmatprep.subr.mxu0 0.0
    %3197 = vmatpush1.msra.mxu0 0.0
    %3198 = vmatprep.mubr.f32.mxu0 0.0
    %3199 = vmatmul.mubr.f32.gmra.mrb[0].mxu0 %v3105
    %v3200 = vpop.f32.mrb[0].mxu0
    %v3201 = vadd.f32 %v3102, %v3200
    %v3202 = vpop.f32.mrb[0].mxu0
    %3203 = vmatprep.mubr.f32.mxu0 0.0
    %3204 = vmatmul.mubr.f32.gmra.mrb[0].mxu0 %v3108
    %v3205 = vpop.f32.mrb[0].mxu0
    %v3206 = vadd.f32 %v3102, %v3205
    %v3207 = vpop.f32.mrb[0].mxu0
    %3208 = vmatprep.mubr.f32.mxu0 0.0
    %3209 = vmatmul.mubr.f32.gmra.mrb[0].mxu0 %v3111
    %v3210 = vpop.f32.mrb[0].mxu0
    %v3211 = vadd.f32 %v3102, %v3210
    %v3212 = vpop.f32.mrb[0].mxu0
    %3213 = vmatprep.mubr.f32.mxu0 0.0
    %3214 = vmatmul.mubr.f32.gmra.mrb[0].mxu0 %v3114
    %v3215 = vpop.f32.mrb[0].mxu0
    %v3216 = vadd.f32 %v3102, %v3215
    %v3217 = vpop.f32.mrb[0].mxu0
    %3218 = vmatprep.mubr.f32.mxu0 0.0
    %3219 = vmatmul.mubr.f32.gmra.mrb[0].mxu0 %v3117
    %v3220 = vpop.f32.mrb[0].mxu0
    %v3221 = vadd.f32 %v3102, %v3220
    %v3222 = vpop.f32.mrb[0].mxu0
    %3223 = vmatprep.mubr.f32.mxu0 0.0
    %3224 = vmatmul.mubr.f32.gmra.mrb[0].mxu0 %v3120
    %v3225 = vpop.f32.mrb[0].mxu0
    %v3226 = vadd.f32 %v3102, %v3225
    %v3227 = vpop.f32.mrb[0].mxu0
    %3228 = vmatprep.mubr.f32.mxu0 0.0
    %3229 = vmatmul.mubr.f32.gmra.mrb[0].mxu0 %v3123
    %v3230 = vpop.f32.mrb[0].mxu0
    %v3231 = vadd.f32 %v3102, %v3230
    %v3232 = vpop.f32.mrb[0].mxu0
    %3233 = vmatprep.mubr.f32.mxu0 0.0
    %3234 = vmatmul.mubr.f32.gmra.mrb[0].mxu0 %v3126
    %v3235 = vpop.f32.mrb[0].mxu0
    %v3236 = vadd.f32 %v3102, %v3235
    %v3237 = vpop.f32.mrb[0].mxu0
    %3238 = vmatprep.mubr.f32.mxu0 0.0
    %3239 = vmatmul.mubr.f32.gmra.mrb[0].mxu0 %v3129
    %v3240 = vpop.f32.mrb[0].mxu0
    %v3241 = vadd.f32 %v3102, %v3240
    %v3242 = vpop.f32.mrb[0].mxu0
    %3243 = vmatprep.mubr.f32.mxu0 0.0
    %3244 = vmatmul.mubr.f32.gmra.mrb[0].mxu0 %v3132
    %v3245 = vpop.f32.mrb[0].mxu0
    %v3246 = vadd.f32 %v3102, %v3245
    %v3247 = vpop.f32.mrb[0].mxu0
    %3248 = vdwg.mxu0
    %3249 = vst.msk [vmem:[#allocation5] sm:$0xff] %vm66, %v3201
    %3250 = vst.msk [vmem:[#allocation5 + $0x8] sm:$0xff] %vm66, %v3206
    %3251 = vst.msk [vmem:[#allocation5 + $0x10] sm:$0xff] %vm66, %v3211
    %3252 = vst.msk [vmem:[#allocation5 + $0x18] sm:$0xff] %vm66, %v3216
    %3253 = vst.msk [vmem:[#allocation5 + $0x20] sm:$0xff] %vm66, %v3221
    %3254 = vst.msk [vmem:[#allocation5 + $0x28] sm:$0xff] %vm66, %v3226
    %3255 = vst.msk [vmem:[#allocation5 + $0x30] sm:$0xff] %vm66, %v3231
    %3256 = vst.msk [vmem:[#allocation5 + $0x38] sm:$0xff] %vm66, %v3236
    %3257 = vst.msk [vmem:[#allocation5 + $0x40] sm:$0xff] %vm66, %v3241
    %3258 = vst.msk [vmem:[#allocation5 + $0x48] sm:$0xff] %vm66, %v3246
    // Predicated region
    $region22: #{cal_scale_opt_attention.3} parent=1 // pred_check
      _
    $region23: #{cal_scale_opt_attention.3} parent=1 // pred_check_branch
      %3260 = sbr.rel (0) target = $region25
    $region24: #{cal_scale_opt_attention.3} parent=1 // pred_region
      %s3262 = ssub.s32 1280, 1280
      %3263 = vsyncadd [#allocation6], %s3262
      %s3264 = sshll.u32 [#allocation5], 4
      %s3265 = int_to_ptr.vmem [resolvable:$true] %s3264
      %3270 = dma.vmem_to_hbm [thread:$0]  %s3265, 1280, %s6, [#allocation6], 128, 128, 8
    $region25: #{cal_scale_opt_attention.3} parent=1 // pred_fallthru
      _
    // Predicated region
    $region26: #{cal_scale_opt_attention.3} parent=1 // pred_check
      _
    $region27: #{cal_scale_opt_attention.3} parent=1 // pred_check_branch
      %3272 = sbr.rel (0) target = $region29
    $region28: #{cal_scale_opt_attention.3} parent=1 // pred_region
      _
    $region29: #{cal_scale_opt_attention.3} parent=1 // pred_fallthru
      _
    // Predicated region
    $region30: #{cal_scale_opt_attention.3} parent=1 // pred_check
      _
    $region31: #{cal_scale_opt_attention.3} parent=1 // pred_check_branch
      %3274 = sbr.rel (0) target = $region33
    $region32: #{cal_scale_opt_attention.3} parent=1 // pred_region
      _
    $region33: #{cal_scale_opt_attention.3} parent=1 // pred_fallthru
      _
    // Predicated region
    $region34: #{cal_scale_opt_attention.3} parent=1 // pred_check
      _
    $region35: #{cal_scale_opt_attention.3} parent=1 // pred_check_branch
      %3276 = sbr.rel (0) target = $region37
    $region36: #{cal_scale_opt_attention.3} parent=1 // pred_region
      %3277 = dma.done [#allocation6], 1280
    $region37: #{cal_scale_opt_attention.3} parent=1 // pred_fallthru
      _
    // Predicated region
    $region38: #{cal_scale_opt_attention.3} parent=1 // pred_check
      _
    $region39: #{cal_scale_opt_attention.3} parent=1 // pred_check_branch
      %3279 = sbr.rel (0) target = $region41
    $region40: #{cal_scale_opt_attention.3} parent=1 // pred_region
      _
    $region41: #{cal_scale_opt_attention.3} parent=1 // pred_fallthru
      _
    // Predicated region
    $region42: #{cal_scale_opt_attention.3} parent=1 // pred_check
      _
    $region43: #{cal_scale_opt_attention.3} parent=1 // pred_check_branch
      %3281 = sbr.rel (0) target = $region45
    $region44: #{cal_scale_opt_attention.3} parent=1 // pred_region
      _
    $region45: #{cal_scale_opt_attention.3} parent=1 // pred_fallthru
      _
    %3282 = vsyncpa [#allocation6], 1

</llo_original>
